<compile_context>
chip_gen: v5e
topology: v5e:2x2
jax: 0.10.0
libtpu: 0.0.40
codegen_flags: <defaults>
</compile_context>

<pallas_src>
import functools
import itertools
import math

import numpy as np
import jax
import jax.numpy as jnp
from jax.experimental import pallas as pl
from jax.experimental.pallas import tpu as pltpu

EPS = 1e-6

# --------------------------- Clifford algebra (host) ---------------------------

METRIC = (1.0, 1.0, 1.0)          # 3D Euclidean
DIM = len(METRIC)
N_BLADES = 2 ** DIM               # 8


def _build_algebra(metric):
    d = len(metric)
    blades = []
    for g in range(d + 1):
        blades.extend(itertools.combinations(range(d), g))
    idx = {b: i for i, b in enumerate(blades)}
    grades = [len(b) for b in blades]
    subspaces = [math.comb(d, g) for g in range(d + 1)]
    offs = np.cumsum([0] + subspaces)
    grade_slices = [(int(offs[g]), int(offs[g + 1])) for g in range(d + 1)]

    def mul(a, b):
        arr = list(a) + list(b)
        sign = 1.0
        for i in range(1, len(arr)):          # insertion sort, count swaps
            j = i
            while j > 0 and arr[j - 1] > arr[j]:
                arr[j - 1], arr[j] = arr[j], arr[j - 1]
                sign = -sign
                j -= 1
        out = []
        i = 0
        while i < len(arr):
            if i + 1 < len(arr) and arr[i] == arr[i + 1]:
                sign *= metric[arr[i]]
                i += 2
            else:
                out.append(arr[i])
                i += 1
        return sign, tuple(out)

    n = len(blades)
    cayley = np.zeros((n, n, n), dtype=np.float64)
    for i, bi in enumerate(blades):
        for k, bk in enumerate(blades):
            s, bj = mul(bi, bk)
            cayley[i, idx[bj], k] += s
    # blade quadratic-form signs (extended bilinear form of the CGENN paper)
    bbs = [float(np.prod([metric[t] for t in b])) if len(b) else 1.0 for b in blades]
    return blades, grades, subspaces, grade_slices, cayley, bbs


(_BLADES, BLADE_GRADE, SUBSPACES, GRADE_SLICES, CAYLEY, BBS) = _build_algebra(METRIC)

# statically-known nonzero Cayley entries: e_i * e_k = sign * e_j  (64 for 3D)
GEO_TERMS = [(i, j, k, float(CAYLEY[i, j, k]))
             for i in range(N_BLADES) for j in range(N_BLADES) for k in range(N_BLADES)
             if CAYLEY[i, j, k] != 0.0]


# --------------------- shared layer math (kernel + reference) ------------------
# All helpers operate on a list of 8 per-blade [rows, channels] float32 tiles.

def _smooth_abs_sqrt(q):
    # CliffordAlgebra._smooth_abs_sqrt: (q^2 + 1e-16) ** 0.25
    return jnp.sqrt(jnp.sqrt(q * q + 1e-16))


def _grade_q(mv, g):
    # quadratic form of the grade-g component (sum of sign-weighted squares)
    s, e = GRADE_SLICES[g]
    q = None
    for i in range(s, e):
        t = mv[i] * mv[i]
        if BBS[i] != 1.0:
            t = t * BBS[i]
        q = t if q is None else q + t
    return q


def mv_linear(mv, w8, bias=None):
    """MVLinear (subspaces=True): per-blade channel mixing, grade-shared weights.
    w8: [8, Cin, Cout] (blade-expanded). bias: [1, Cout] added to scalar blade only."""
    out = [jnp.dot(mv[i], w8[i], preferred_element_type=jnp.float32)
           for i in range(N_BLADES)]
    if bias is not None:
        out[0] = out[0] + bias
    return out


def mv_silu(mv, a, b):
    """MVSiLU (invariant='mag2'): gate_g = sigmoid(a_g*inv_g + b_g); out_i = gate_{grade(i)}*x_i."""
    gates = []
    for g in range(DIM + 1):
        inv_g = mv[0] if g == 0 else _grade_q(mv, g)
        gates.append(jax.nn.sigmoid(a[g:g + 1, :] * inv_g + b[g:g + 1, :]))
    return [gates[BLADE_GRADE[i]] * mv[i] for i in range(N_BLADES)]


def normalization_layer(mv, a):
    """NormalizationLayer: x_i / (sigmoid(a_g) * (||x_g|| - 1) + 1 + EPS)."""
    out = list(mv)
    for g in range(DIM + 1):
        s, e = GRADE_SLICES[g]
        norm_g = _smooth_abs_sqrt(_grade_q(mv, g))
        denom = jax.nn.sigmoid(a[g:g + 1, :]) * (norm_g - 1.0) + 1.0 + EPS
        scale = 1.0 / denom
        for i in range(s, e):
            out[i] = mv[i] * scale
    return out


def geometric_product(mv_l, mv_r, geo_w):
    """out_j = sum over nonzero cayley (i,j,k): cayley_sign * w[:,gi,gj,gk] * x_i * y_k.
    geo_w: [T, C] with sign and per-channel weight folded in (host precompute)."""
    out = [None] * N_BLADES
    for t, (i, j, k, _sign) in enumerate(GEO_TERMS):
        c = geo_w[t:t + 1, :] * (mv_l[i] * mv_r[k])
        out[j] = c if out[j] is None else out[j] + c
    return [o if o is not None else jnp.zeros_like(mv_l[0]) for o in out]


def sgp_layer(mv, w8_right, a_norm, w8_left, b_left, geo_w):
    """SteerableGeometricProductLayer (include_first_order=True)."""
    r = mv_linear(mv, w8_right, None)          # linear_right (no bias)
    r = normalization_layer(r, a_norm)
    left = mv_linear(mv, w8_left, b_left)      # linear_left (bias)
    gp = geometric_product(mv, r, geo_w)
    inv_sqrt2 = 1.0 / math.sqrt(2.0)
    return [(left[i] + gp[i]) * inv_sqrt2 for i in range(N_BLADES)]


def mv_layernorm(mv, a):
    """MVLayerNorm: a_c * x / (mean_c ||x||_full + EPS)."""
    q = None
    for i in range(N_BLADES):
        t = mv[i] * mv[i]
        if BBS[i] != 1.0:
            t = t * BBS[i]
        q = t if q is None else q + t
    norm = _smooth_abs_sqrt(q)                              # [R, C]
    denom = jnp.mean(norm, axis=1, keepdims=True) + EPS     # [R, 1]
    scale = a / denom                                       # [R, C]
    return [mv[i] * scale for i in range(N_BLADES)]


def cemlp_layer(mv, w_lin, b_lin, a_si, b_si, w_r, a_n, w_l, b_l, geo_w, a_ln):
    mv = mv_linear(mv, w_lin, b_lin)
    mv = mv_silu(mv, a_si, b_si)
    mv = sgp_layer(mv, w_r, a_n, w_l, b_l, geo_w)
    mv = mv_layernorm(mv, a_ln)
    return mv


# -------------------------------- Pallas kernel --------------------------------

PER_LAYER_PARAMS = 10
PARAM_ORDER = ("w_lin", "b_lin", "a_silu", "b_silu", "w_right",
               "a_norm", "w_left", "b_left", "geo_w", "a_ln")


def _cemlp_kernel(n_layers, c_in, c_out, *refs):
    x_ref = refs[0]
    o_ref = refs[-1]
    w = refs[1:-1]

    xb = x_ref[...]                                           # [TB, 8*c_in], lane-dense
    mv = [xb[:, i * c_in:(i + 1) * c_in] for i in range(N_BLADES)]

    for l in range(n_layers):
        (w_lin, b_lin, a_si, b_si, w_r, a_n, w_l, b_l, gw, a_ln) = \
            w[l * PER_LAYER_PARAMS:(l + 1) * PER_LAYER_PARAMS]
        mv = cemlp_layer(mv, w_lin, b_lin[...], a_si[...], b_si[...],
                         w_r, a_n[...], w_l, b_l[...], gw[...], a_ln[...])

    for i in range(N_BLADES):
        o_ref[:, i * c_out:(i + 1) * c_out] = mv[i]


def _const_index_map(ndim):
    zeros = (0,) * ndim
    return lambda b: zeros


def cemlp_forward(x, params, *, block_b=128):
    """x: [B, C_in, 8] float32 multivectors.  params: list (per layer) of dicts."""
    B, c_in, nb = x.shape
    assert nb == N_BLADES
    n_layers = len(params)
    c_out = params[-1]["a_ln"].shape[1]

    tb = min(block_b, max(8, 8 * ((B + 7) // 8)))
    tb = max(8, (tb // 8) * 8)                      # sublane-aligned batch tile
    b_pad = ((B + tb - 1) // tb) * tb

    # blade-major, lane-dense HBM layout: flat[b, i*C + c] = x[b, c, i]
    x_flat = jnp.transpose(x, (0, 2, 1)).reshape(B, nb * c_in)
    if b_pad != B:
        x_flat = jnp.pad(x_flat, ((0, b_pad - B), (0, 0)))

    flat_w = []
    for p in params:
        for key in PARAM_ORDER:
            flat_w.append(p[key])

    in_specs = [pl.BlockSpec((tb, nb * c_in), lambda b: (b, 0))]
    in_specs += [pl.BlockSpec(wa.shape, _const_index_map(wa.ndim)) for wa in flat_w]
    out_spec = pl.BlockSpec((tb, nb * c_out), lambda b: (b, 0))

    kernel = functools.partial(_cemlp_kernel, n_layers, c_in, c_out)
    out_flat = pl.pallas_call(
        kernel,
        out_shape=jax.ShapeDtypeStruct((b_pad, nb * c_out), jnp.float32),
        grid=(b_pad // tb,),
        in_specs=in_specs,
        out_specs=out_spec,
        compiler_params=pltpu.CompilerParams(
            dimension_semantics=("parallel",)),
    )(x_flat, *flat_w)

    out = out_flat[:B].reshape(B, nb, c_out)
    return jnp.transpose(out, (0, 2, 1))            # [B, C_out, 8]


# ------------------------------- parameter init --------------------------------
# NOTE: torch's reset_parameters uses zeros/ones for several params; small random
# values are used here instead so the self-check exercises every code path.

def init_cemlp_params(key, in_features, hidden_features, out_features, n_layers):
    feats = [in_features] + [hidden_features] * (n_layers - 1) + [out_features]
    blade_grade = np.array(BLADE_GRADE)
    params = []
    for l in range(n_layers):
        cin, cout = feats[l], feats[l + 1]
        key, *ks = jax.random.split(key, 12)

        def normal(k, shape, std):
            return std * jax.random.normal(k, shape, dtype=jnp.float32)

        # MVLinear weights: [cout, cin, n_subspaces], std = 1/sqrt(fan_in)
        w_main = normal(ks[0], (cout, cin, DIM + 1), 1.0 / math.sqrt(cin))
        w_right = normal(ks[1], (cout, cout, DIM + 1), 1.0 / math.sqrt(cout))
        w_left = normal(ks[2], (cout, cout, DIM + 1), 1.0 / math.sqrt(cout))
        # SGP grade-path weights: [cout, 4, 4, 4], std = 1/sqrt(dim+1)
        w_path = normal(ks[3], (cout, DIM + 1, DIM + 1, DIM + 1), 1.0 / math.sqrt(DIM + 1))

        def expand_blades(w):                 # [cout, cin, 4] -> [8, cin, cout]
            wt = jnp.transpose(w, (2, 1, 0))  # [4, cin, cout]
            return wt[blade_grade]

        geo_rows = []
        for (i, j, k, sign) in GEO_TERMS:
            geo_rows.append(
                sign * w_path[:, BLADE_GRADE[i], BLADE_GRADE[j], BLADE_GRADE[k]])
        geo_w = jnp.stack(geo_rows, axis=0)   # [64, cout]

        params.append(dict(
            w_lin=expand_blades(w_main),
            b_lin=0.1 * jax.random.normal(ks[4], (1, cout), dtype=jnp.float32),
            a_silu=1.0 + 0.1 * jax.random.normal(ks[5], (DIM + 1, cout), dtype=jnp.float32),
            b_silu=0.1 * jax.random.normal(ks[6], (DIM + 1, cout), dtype=jnp.float32),
            w_right=expand_blades(w_right),
            a_norm=0.1 * jax.random.normal(ks[7], (DIM + 1, cout), dtype=jnp.float32),
            w_left=expand_blades(w_left),
            b_left=0.1 * jax.random.normal(ks[8], (1, cout), dtype=jnp.float32),
            geo_w=geo_w,
            a_ln=1.0 + 0.1 * jax.random.normal(ks[9], (1, cout), dtype=jnp.float32),
        ))
    return params


# --------------------------- pure-JAX reference (XLA) ---------------------------

def cemlp_reference(x, params):
    mv = [x[:, :, i] for i in range(N_BLADES)]
    for p in params:
        mv = cemlp_layer(mv, p["w_lin"], p["b_lin"], p["a_silu"], p["b_silu"],
                         p["w_right"], p["a_norm"], p["w_left"], p["b_left"],
                         p["geo_w"], p["a_ln"])
    return jnp.stack(mv, axis=-1)


# ------------------------------------ main --------------------------------------

if __name__ == "__main__":
    key = jax.random.PRNGKey(0)
    B, c_in, hidden, c_out, n_layers = 16, 4, 32, 8, 2

    kx, kp = jax.random.split(key)
    x = jax.random.normal(kx, (B, c_in, N_BLADES), dtype=jnp.float32)
    params = init_cemlp_params(kp, c_in, hidden, c_out, n_layers)

    fwd = jax.jit(functools.partial(cemlp_forward, block_b=8))
    out = fwd(x, params)
    jax.block_until_ready(out)
    assert out.shape == (B, c_out, N_BLADES)

    # sanity check of the Pallas plumbing against the same math compiled by XLA
    with jax.default_matmul_precision("float32"):
        ref = jax.jit(cemlp_reference)(x, params)
    jax.block_until_ready(ref)
    err = float(jnp.max(jnp.abs(out - ref)))
    assert math.isfinite(err) and err < 2e-2, f"max abs err {err}"

    print("KERNEL_OK")
</pallas_src>

<mosaic_0001>
module attributes {stable_mosaic.version = 11 : i64} {
  func.func @_cemlp_kernel(%arg0: i32, %arg1: memref<8x32xf32, #tpu.memory_space<vmem>>, %arg2: memref<8x4x32xf32, #tpu.memory_space<vmem>>, %arg3: memref<1x32xf32, #tpu.memory_space<vmem>>, %arg4: memref<4x32xf32, #tpu.memory_space<vmem>>, %arg5: memref<4x32xf32, #tpu.memory_space<vmem>>, %arg6: memref<8x32x32xf32, #tpu.memory_space<vmem>>, %arg7: memref<4x32xf32, #tpu.memory_space<vmem>>, %arg8: memref<8x32x32xf32, #tpu.memory_space<vmem>>, %arg9: memref<1x32xf32, #tpu.memory_space<vmem>>, %arg10: memref<64x32xf32, #tpu.memory_space<vmem>>, %arg11: memref<1x32xf32, #tpu.memory_space<vmem>>, %arg12: memref<8x32x8xf32, #tpu.memory_space<vmem>>, %arg13: memref<1x8xf32, #tpu.memory_space<vmem>>, %arg14: memref<4x8xf32, #tpu.memory_space<vmem>>, %arg15: memref<4x8xf32, #tpu.memory_space<vmem>>, %arg16: memref<8x8x8xf32, #tpu.memory_space<vmem>>, %arg17: memref<4x8xf32, #tpu.memory_space<vmem>>, %arg18: memref<8x8x8xf32, #tpu.memory_space<vmem>>, %arg19: memref<1x8xf32, #tpu.memory_space<vmem>>, %arg20: memref<64x8xf32, #tpu.memory_space<vmem>>, %arg21: memref<1x8xf32, #tpu.memory_space<vmem>>, %arg22: memref<8x64xf32, #tpu.memory_space<vmem>>) attributes {dimension_semantics = [#tpu.dimension_semantics<parallel>], iteration_bounds = array<i64: 2>, scalar_prefetch = 0 : i64, scratch_operands = 0 : i64, tpu.core_type = #tpu.core_type<tc>, window_params = [{transform_indices = @transform_0, window_bounds = array<i64: 8, 32>}, {pipeline_mode = #tpu.pipeline_mode<synchronous>, transform_indices = @transform_1, window_bounds = array<i64: 8, 4, 32>}, {pipeline_mode = #tpu.pipeline_mode<synchronous>, transform_indices = @transform_2, window_bounds = array<i64: 1, 32>}, {pipeline_mode = #tpu.pipeline_mode<synchronous>, transform_indices = @transform_3, window_bounds = array<i64: 4, 32>}, {pipeline_mode = #tpu.pipeline_mode<synchronous>, transform_indices = @transform_4, window_bounds = array<i64: 4, 32>}, {pipeline_mode = #tpu.pipeline_mode<synchronous>, transform_indices = @transform_5, window_bounds = array<i64: 8, 32, 32>}, {pipeline_mode = #tpu.pipeline_mode<synchronous>, transform_indices = @transform_6, window_bounds = array<i64: 4, 32>}, {pipeline_mode = #tpu.pipeline_mode<synchronous>, transform_indices = @transform_7, window_bounds = array<i64: 8, 32, 32>}, {pipeline_mode = #tpu.pipeline_mode<synchronous>, transform_indices = @transform_8, window_bounds = array<i64: 1, 32>}, {pipeline_mode = #tpu.pipeline_mode<synchronous>, transform_indices = @transform_9, window_bounds = array<i64: 64, 32>}, {pipeline_mode = #tpu.pipeline_mode<synchronous>, transform_indices = @transform_10, window_bounds = array<i64: 1, 32>}, {pipeline_mode = #tpu.pipeline_mode<synchronous>, transform_indices = @transform_11, window_bounds = array<i64: 8, 32, 8>}, {pipeline_mode = #tpu.pipeline_mode<synchronous>, transform_indices = @transform_12, window_bounds = array<i64: 1, 8>}, {pipeline_mode = #tpu.pipeline_mode<synchronous>, transform_indices = @transform_13, window_bounds = array<i64: 4, 8>}, {pipeline_mode = #tpu.pipeline_mode<synchronous>, transform_indices = @transform_14, window_bounds = array<i64: 4, 8>}, {pipeline_mode = #tpu.pipeline_mode<synchronous>, transform_indices = @transform_15, window_bounds = array<i64: 8, 8, 8>}, {pipeline_mode = #tpu.pipeline_mode<synchronous>, transform_indices = @transform_16, window_bounds = array<i64: 4, 8>}, {pipeline_mode = #tpu.pipeline_mode<synchronous>, transform_indices = @transform_17, window_bounds = array<i64: 8, 8, 8>}, {pipeline_mode = #tpu.pipeline_mode<synchronous>, transform_indices = @transform_18, window_bounds = array<i64: 1, 8>}, {pipeline_mode = #tpu.pipeline_mode<synchronous>, transform_indices = @transform_19, window_bounds = array<i64: 64, 8>}, {pipeline_mode = #tpu.pipeline_mode<synchronous>, transform_indices = @transform_20, window_bounds = array<i64: 1, 8>}, {transform_indices = @transform_21, window_bounds = array<i64: 8, 64>}]} {
    %c0 = arith.constant 0 : index
    %c0_0 = arith.constant 0 : index
    %0 = vector.load %arg1[%c0, %c0_0] : memref<8x32xf32, #tpu.memory_space<vmem>>, vector<8x32xf32>
    %1 = vector.extract_strided_slice %0 {offsets = [0, 0], sizes = [8, 4], strides = [1, 1]} : vector<8x32xf32> to vector<8x4xf32>
    %2 = vector.extract_strided_slice %0 {offsets = [0, 4], sizes = [8, 4], strides = [1, 1]} : vector<8x32xf32> to vector<8x4xf32>
    %3 = vector.extract_strided_slice %0 {offsets = [0, 8], sizes = [8, 4], strides = [1, 1]} : vector<8x32xf32> to vector<8x4xf32>
    %4 = vector.extract_strided_slice %0 {offsets = [0, 12], sizes = [8, 4], strides = [1, 1]} : vector<8x32xf32> to vector<8x4xf32>
    %5 = vector.extract_strided_slice %0 {offsets = [0, 16], sizes = [8, 4], strides = [1, 1]} : vector<8x32xf32> to vector<8x4xf32>
    %6 = vector.extract_strided_slice %0 {offsets = [0, 20], sizes = [8, 4], strides = [1, 1]} : vector<8x32xf32> to vector<8x4xf32>
    %7 = vector.extract_strided_slice %0 {offsets = [0, 24], sizes = [8, 4], strides = [1, 1]} : vector<8x32xf32> to vector<8x4xf32>
    %8 = vector.extract_strided_slice %0 {offsets = [0, 28], sizes = [8, 4], strides = [1, 1]} : vector<8x32xf32> to vector<8x4xf32>
    %c0_1 = arith.constant 0 : index
    %c0_2 = arith.constant 0 : index
    %9 = vector.load %arg3[%c0_1, %c0_2] : memref<1x32xf32, #tpu.memory_space<vmem>>, vector<1x32xf32>
    %c0_3 = arith.constant 0 : index
    %c0_4 = arith.constant 0 : index
    %10 = vector.load %arg4[%c0_3, %c0_4] : memref<4x32xf32, #tpu.memory_space<vmem>>, vector<4x32xf32>
    %c0_5 = arith.constant 0 : index
    %c0_6 = arith.constant 0 : index
    %11 = vector.load %arg5[%c0_5, %c0_6] : memref<4x32xf32, #tpu.memory_space<vmem>>, vector<4x32xf32>
    %c0_7 = arith.constant 0 : index
    %c0_8 = arith.constant 0 : index
    %12 = vector.load %arg7[%c0_7, %c0_8] : memref<4x32xf32, #tpu.memory_space<vmem>>, vector<4x32xf32>
    %c0_9 = arith.constant 0 : index
    %c0_10 = arith.constant 0 : index
    %13 = vector.load %arg9[%c0_9, %c0_10] : memref<1x32xf32, #tpu.memory_space<vmem>>, vector<1x32xf32>
    %c0_11 = arith.constant 0 : index
    %c0_12 = arith.constant 0 : index
    %14 = vector.load %arg10[%c0_11, %c0_12] : memref<64x32xf32, #tpu.memory_space<vmem>>, vector<64x32xf32>
    %c0_13 = arith.constant 0 : index
    %c0_14 = arith.constant 0 : index
    %15 = vector.load %arg11[%c0_13, %c0_14] : memref<1x32xf32, #tpu.memory_space<vmem>>, vector<1x32xf32>
    %c0_15 = arith.constant 0 : index
    %c0_16 = arith.constant 0 : index
    %c0_17 = arith.constant 0 : index
    %16 = vector.load %arg2[%c0_15, %c0_16, %c0_17] : memref<8x4x32xf32, #tpu.memory_space<vmem>>, vector<1x4x32xf32>
    %17 = vector.shape_cast %16 : vector<1x4x32xf32> to vector<4x32xf32>
    %cst = arith.constant dense<0.000000e+00> : vector<8x32xf32>
    %18 = tpu.matmul %1, %17, %cst {dimension_numbers = #tpu.dot_dimension_numbers<[1], [0], [0], [1], [0, 0, 1, 1], [], []>} : vector<8x4xf32>, vector<4x32xf32>, vector<8x32xf32> -> vector<8x32xf32>
    %c1 = arith.constant 1 : index
    %c0_18 = arith.constant 0 : index
    %c0_19 = arith.constant 0 : index
    %19 = vector.load %arg2[%c1, %c0_18, %c0_19] : memref<8x4x32xf32, #tpu.memory_space<vmem>>, vector<1x4x32xf32>
    %20 = vector.shape_cast %19 : vector<1x4x32xf32> to vector<4x32xf32>
    %cst_20 = arith.constant dense<0.000000e+00> : vector<8x32xf32>
    %21 = tpu.matmul %2, %20, %cst_20 {dimension_numbers = #tpu.dot_dimension_numbers<[1], [0], [0], [1], [0, 0, 1, 1], [], []>} : vector<8x4xf32>, vector<4x32xf32>, vector<8x32xf32> -> vector<8x32xf32>
    %c2 = arith.constant 2 : index
    %c0_21 = arith.constant 0 : index
    %c0_22 = arith.constant 0 : index
    %22 = vector.load %arg2[%c2, %c0_21, %c0_22] : memref<8x4x32xf32, #tpu.memory_space<vmem>>, vector<1x4x32xf32>
    %23 = vector.shape_cast %22 : vector<1x4x32xf32> to vector<4x32xf32>
    %cst_23 = arith.constant dense<0.000000e+00> : vector<8x32xf32>
    %24 = tpu.matmul %3, %23, %cst_23 {dimension_numbers = #tpu.dot_dimension_numbers<[1], [0], [0], [1], [0, 0, 1, 1], [], []>} : vector<8x4xf32>, vector<4x32xf32>, vector<8x32xf32> -> vector<8x32xf32>
    %c3 = arith.constant 3 : index
    %c0_24 = arith.constant 0 : index
    %c0_25 = arith.constant 0 : index
    %25 = vector.load %arg2[%c3, %c0_24, %c0_25] : memref<8x4x32xf32, #tpu.memory_space<vmem>>, vector<1x4x32xf32>
    %26 = vector.shape_cast %25 : vector<1x4x32xf32> to vector<4x32xf32>
    %cst_26 = arith.constant dense<0.000000e+00> : vector<8x32xf32>
    %27 = tpu.matmul %4, %26, %cst_26 {dimension_numbers = #tpu.dot_dimension_numbers<[1], [0], [0], [1], [0, 0, 1, 1], [], []>} : vector<8x4xf32>, vector<4x32xf32>, vector<8x32xf32> -> vector<8x32xf32>
    %c4 = arith.constant 4 : index
    %c0_27 = arith.constant 0 : index
    %c0_28 = arith.constant 0 : index
    %28 = vector.load %arg2[%c4, %c0_27, %c0_28] : memref<8x4x32xf32, #tpu.memory_space<vmem>>, vector<1x4x32xf32>
    %29 = vector.shape_cast %28 : vector<1x4x32xf32> to vector<4x32xf32>
    %cst_29 = arith.constant dense<0.000000e+00> : vector<8x32xf32>
    %30 = tpu.matmul %5, %29, %cst_29 {dimension_numbers = #tpu.dot_dimension_numbers<[1], [0], [0], [1], [0, 0, 1, 1], [], []>} : vector<8x4xf32>, vector<4x32xf32>, vector<8x32xf32> -> vector<8x32xf32>
    %c5 = arith.constant 5 : index
    %c0_30 = arith.constant 0 : index
    %c0_31 = arith.constant 0 : index
    %31 = vector.load %arg2[%c5, %c0_30, %c0_31] : memref<8x4x32xf32, #tpu.memory_space<vmem>>, vector<1x4x32xf32>
    %32 = vector.shape_cast %31 : vector<1x4x32xf32> to vector<4x32xf32>
    %cst_32 = arith.constant dense<0.000000e+00> : vector<8x32xf32>
    %33 = tpu.matmul %6, %32, %cst_32 {dimension_numbers = #tpu.dot_dimension_numbers<[1], [0], [0], [1], [0, 0, 1, 1], [], []>} : vector<8x4xf32>, vector<4x32xf32>, vector<8x32xf32> -> vector<8x32xf32>
    %c6 = arith.constant 6 : index
    %c0_33 = arith.constant 0 : index
    %c0_34 = arith.constant 0 : index
    %34 = vector.load %arg2[%c6, %c0_33, %c0_34] : memref<8x4x32xf32, #tpu.memory_space<vmem>>, vector<1x4x32xf32>
    %35 = vector.shape_cast %34 : vector<1x4x32xf32> to vector<4x32xf32>
    %cst_35 = arith.constant dense<0.000000e+00> : vector<8x32xf32>
    %36 = tpu.matmul %7, %35, %cst_35 {dimension_numbers = #tpu.dot_dimension_numbers<[1], [0], [0], [1], [0, 0, 1, 1], [], []>} : vector<8x4xf32>, vector<4x32xf32>, vector<8x32xf32> -> vector<8x32xf32>
    %c7 = arith.constant 7 : index
    %c0_36 = arith.constant 0 : index
    %c0_37 = arith.constant 0 : index
    %37 = vector.load %arg2[%c7, %c0_36, %c0_37] : memref<8x4x32xf32, #tpu.memory_space<vmem>>, vector<1x4x32xf32>
    %38 = vector.shape_cast %37 : vector<1x4x32xf32> to vector<4x32xf32>
    %cst_38 = arith.constant dense<0.000000e+00> : vector<8x32xf32>
    %39 = tpu.matmul %8, %38, %cst_38 {dimension_numbers = #tpu.dot_dimension_numbers<[1], [0], [0], [1], [0, 0, 1, 1], [], []>} : vector<8x4xf32>, vector<4x32xf32>, vector<8x32xf32> -> vector<8x32xf32>
    %40 = vector.broadcast %9 : vector<1x32xf32> to vector<8x32xf32>
    %41 = arith.addf %18, %40 : vector<8x32xf32>
    %42 = vector.extract_strided_slice %10 {offsets = [0, 0], sizes = [1, 32], strides = [1, 1]} : vector<4x32xf32> to vector<1x32xf32>
    %43 = vector.broadcast %42 : vector<1x32xf32> to vector<8x32xf32>
    %44 = arith.mulf %43, %41 : vector<8x32xf32>
    %45 = vector.extract_strided_slice %11 {offsets = [0, 0], sizes = [1, 32], strides = [1, 1]} : vector<4x32xf32> to vector<1x32xf32>
    %46 = vector.broadcast %45 : vector<1x32xf32> to vector<8x32xf32>
    %47 = arith.addf %44, %46 : vector<8x32xf32>
    %48 = arith.negf %47 : vector<8x32xf32>
    %49 = math.exp %48 : vector<8x32xf32>
    %cst_39 = arith.constant 1.000000e+00 : f32
    %50 = vector.broadcast %cst_39 : f32 to vector<8x32xf32>
    %51 = arith.addf %50, %49 : vector<8x32xf32>
    %52 = arith.divf %50, %51 : vector<8x32xf32>
    %53 = arith.mulf %21, %21 : vector<8x32xf32>
    %54 = arith.mulf %24, %24 : vector<8x32xf32>
    %55 = arith.addf %53, %54 : vector<8x32xf32>
    %56 = arith.mulf %27, %27 : vector<8x32xf32>
    %57 = arith.addf %55, %56 : vector<8x32xf32>
    %58 = vector.extract_strided_slice %10 {offsets = [1, 0], sizes = [1, 32], strides = [1, 1]} : vector<4x32xf32> to vector<1x32xf32>
    %59 = vector.broadcast %58 : vector<1x32xf32> to vector<8x32xf32>
    %60 = arith.mulf %59, %57 : vector<8x32xf32>
    %61 = vector.extract_strided_slice %11 {offsets = [1, 0], sizes = [1, 32], strides = [1, 1]} : vector<4x32xf32> to vector<1x32xf32>
    %62 = vector.broadcast %61 : vector<1x32xf32> to vector<8x32xf32>
    %63 = arith.addf %60, %62 : vector<8x32xf32>
    %64 = arith.negf %63 : vector<8x32xf32>
    %65 = math.exp %64 : vector<8x32xf32>
    %cst_40 = arith.constant 1.000000e+00 : f32
    %66 = vector.broadcast %cst_40 : f32 to vector<8x32xf32>
    %67 = arith.addf %66, %65 : vector<8x32xf32>
    %68 = arith.divf %66, %67 : vector<8x32xf32>
    %69 = arith.mulf %30, %30 : vector<8x32xf32>
    %70 = arith.mulf %33, %33 : vector<8x32xf32>
    %71 = arith.addf %69, %70 : vector<8x32xf32>
    %72 = arith.mulf %36, %36 : vector<8x32xf32>
    %73 = arith.addf %71, %72 : vector<8x32xf32>
    %74 = vector.extract_strided_slice %10 {offsets = [2, 0], sizes = [1, 32], strides = [1, 1]} : vector<4x32xf32> to vector<1x32xf32>
    %75 = vector.broadcast %74 : vector<1x32xf32> to vector<8x32xf32>
    %76 = arith.mulf %75, %73 : vector<8x32xf32>
    %77 = vector.extract_strided_slice %11 {offsets = [2, 0], sizes = [1, 32], strides = [1, 1]} : vector<4x32xf32> to vector<1x32xf32>
    %78 = vector.broadcast %77 : vector<1x32xf32> to vector<8x32xf32>
    %79 = arith.addf %76, %78 : vector<8x32xf32>
    %80 = arith.negf %79 : vector<8x32xf32>
    %81 = math.exp %80 : vector<8x32xf32>
    %cst_41 = arith.constant 1.000000e+00 : f32
    %82 = vector.broadcast %cst_41 : f32 to vector<8x32xf32>
    %83 = arith.addf %82, %81 : vector<8x32xf32>
    %84 = arith.divf %82, %83 : vector<8x32xf32>
    %85 = arith.mulf %39, %39 : vector<8x32xf32>
    %86 = vector.extract_strided_slice %10 {offsets = [3, 0], sizes = [1, 32], strides = [1, 1]} : vector<4x32xf32> to vector<1x32xf32>
    %87 = vector.broadcast %86 : vector<1x32xf32> to vector<8x32xf32>
    %88 = arith.mulf %87, %85 : vector<8x32xf32>
    %89 = vector.extract_strided_slice %11 {offsets = [3, 0], sizes = [1, 32], strides = [1, 1]} : vector<4x32xf32> to vector<1x32xf32>
    %90 = vector.broadcast %89 : vector<1x32xf32> to vector<8x32xf32>
    %91 = arith.addf %88, %90 : vector<8x32xf32>
    %92 = arith.negf %91 : vector<8x32xf32>
    %93 = math.exp %92 : vector<8x32xf32>
    %cst_42 = arith.constant 1.000000e+00 : f32
    %94 = vector.broadcast %cst_42 : f32 to vector<8x32xf32>
    %95 = arith.addf %94, %93 : vector<8x32xf32>
    %96 = arith.divf %94, %95 : vector<8x32xf32>
    %97 = arith.mulf %52, %41 : vector<8x32xf32>
    %98 = arith.mulf %68, %21 : vector<8x32xf32>
    %99 = arith.mulf %68, %24 : vector<8x32xf32>
    %100 = arith.mulf %68, %27 : vector<8x32xf32>
    %101 = arith.mulf %84, %30 : vector<8x32xf32>
    %102 = arith.mulf %84, %33 : vector<8x32xf32>
    %103 = arith.mulf %84, %36 : vector<8x32xf32>
    %104 = arith.mulf %96, %39 : vector<8x32xf32>
    %c0_43 = arith.constant 0 : index
    %c0_44 = arith.constant 0 : index
    %c0_45 = arith.constant 0 : index
    %105 = vector.load %arg6[%c0_43, %c0_44, %c0_45] : memref<8x32x32xf32, #tpu.memory_space<vmem>>, vector<1x32x32xf32>
    %106 = vector.shape_cast %105 : vector<1x32x32xf32> to vector<32x32xf32>
    %cst_46 = arith.constant dense<0.000000e+00> : vector<8x32xf32>
    %107 = tpu.matmul %97, %106, %cst_46 {dimension_numbers = #tpu.dot_dimension_numbers<[1], [0], [0], [1], [0, 0, 1, 1], [], []>} : vector<8x32xf32>, vector<32x32xf32>, vector<8x32xf32> -> vector<8x32xf32>
    %c1_47 = arith.constant 1 : index
    %c0_48 = arith.constant 0 : index
    %c0_49 = arith.constant 0 : index
    %108 = vector.load %arg6[%c1_47, %c0_48, %c0_49] : memref<8x32x32xf32, #tpu.memory_space<vmem>>, vector<1x32x32xf32>
    %109 = vector.shape_cast %108 : vector<1x32x32xf32> to vector<32x32xf32>
    %cst_50 = arith.constant dense<0.000000e+00> : vector<8x32xf32>
    %110 = tpu.matmul %98, %109, %cst_50 {dimension_numbers = #tpu.dot_dimension_numbers<[1], [0], [0], [1], [0, 0, 1, 1], [], []>} : vector<8x32xf32>, vector<32x32xf32>, vector<8x32xf32> -> vector<8x32xf32>
    %c2_51 = arith.constant 2 : index
    %c0_52 = arith.constant 0 : index
    %c0_53 = arith.constant 0 : index
    %111 = vector.load %arg6[%c2_51, %c0_52, %c0_53] : memref<8x32x32xf32, #tpu.memory_space<vmem>>, vector<1x32x32xf32>
    %112 = vector.shape_cast %111 : vector<1x32x32xf32> to vector<32x32xf32>
    %cst_54 = arith.constant dense<0.000000e+00> : vector<8x32xf32>
    %113 = tpu.matmul %99, %112, %cst_54 {dimension_numbers = #tpu.dot_dimension_numbers<[1], [0], [0], [1], [0, 0, 1, 1], [], []>} : vector<8x32xf32>, vector<32x32xf32>, vector<8x32xf32> -> vector<8x32xf32>
    %c3_55 = arith.constant 3 : index
    %c0_56 = arith.constant 0 : index
    %c0_57 = arith.constant 0 : index
    %114 = vector.load %arg6[%c3_55, %c0_56, %c0_57] : memref<8x32x32xf32, #tpu.memory_space<vmem>>, vector<1x32x32xf32>
    %115 = vector.shape_cast %114 : vector<1x32x32xf32> to vector<32x32xf32>
    %cst_58 = arith.constant dense<0.000000e+00> : vector<8x32xf32>
    %116 = tpu.matmul %100, %115, %cst_58 {dimension_numbers = #tpu.dot_dimension_numbers<[1], [0], [0], [1], [0, 0, 1, 1], [], []>} : vector<8x32xf32>, vector<32x32xf32>, vector<8x32xf32> -> vector<8x32xf32>
    %c4_59 = arith.constant 4 : index
    %c0_60 = arith.constant 0 : index
    %c0_61 = arith.constant 0 : index
    %117 = vector.load %arg6[%c4_59, %c0_60, %c0_61] : memref<8x32x32xf32, #tpu.memory_space<vmem>>, vector<1x32x32xf32>
    %118 = vector.shape_cast %117 : vector<1x32x32xf32> to vector<32x32xf32>
    %cst_62 = arith.constant dense<0.000000e+00> : vector<8x32xf32>
    %119 = tpu.matmul %101, %118, %cst_62 {dimension_numbers = #tpu.dot_dimension_numbers<[1], [0], [0], [1], [0, 0, 1, 1], [], []>} : vector<8x32xf32>, vector<32x32xf32>, vector<8x32xf32> -> vector<8x32xf32>
    %c5_63 = arith.constant 5 : index
    %c0_64 = arith.constant 0 : index
    %c0_65 = arith.constant 0 : index
    %120 = vector.load %arg6[%c5_63, %c0_64, %c0_65] : memref<8x32x32xf32, #tpu.memory_space<vmem>>, vector<1x32x32xf32>
    %121 = vector.shape_cast %120 : vector<1x32x32xf32> to vector<32x32xf32>
    %cst_66 = arith.constant dense<0.000000e+00> : vector<8x32xf32>
    %122 = tpu.matmul %102, %121, %cst_66 {dimension_numbers = #tpu.dot_dimension_numbers<[1], [0], [0], [1], [0, 0, 1, 1], [], []>} : vector<8x32xf32>, vector<32x32xf32>, vector<8x32xf32> -> vector<8x32xf32>
    %c6_67 = arith.constant 6 : index
    %c0_68 = arith.constant 0 : index
    %c0_69 = arith.constant 0 : index
    %123 = vector.load %arg6[%c6_67, %c0_68, %c0_69] : memref<8x32x32xf32, #tpu.memory_space<vmem>>, vector<1x32x32xf32>
    %124 = vector.shape_cast %123 : vector<1x32x32xf32> to vector<32x32xf32>
    %cst_70 = arith.constant dense<0.000000e+00> : vector<8x32xf32>
    %125 = tpu.matmul %103, %124, %cst_70 {dimension_numbers = #tpu.dot_dimension_numbers<[1], [0], [0], [1], [0, 0, 1, 1], [], []>} : vector<8x32xf32>, vector<32x32xf32>, vector<8x32xf32> -> vector<8x32xf32>
    %c7_71 = arith.constant 7 : index
    %c0_72 = arith.constant 0 : index
    %c0_73 = arith.constant 0 : index
    %126 = vector.load %arg6[%c7_71, %c0_72, %c0_73] : memref<8x32x32xf32, #tpu.memory_space<vmem>>, vector<1x32x32xf32>
    %127 = vector.shape_cast %126 : vector<1x32x32xf32> to vector<32x32xf32>
    %cst_74 = arith.constant dense<0.000000e+00> : vector<8x32xf32>
    %128 = tpu.matmul %104, %127, %cst_74 {dimension_numbers = #tpu.dot_dimension_numbers<[1], [0], [0], [1], [0, 0, 1, 1], [], []>} : vector<8x32xf32>, vector<32x32xf32>, vector<8x32xf32> -> vector<8x32xf32>
    %129 = arith.mulf %107, %107 : vector<8x32xf32>
    %130 = arith.mulf %129, %129 : vector<8x32xf32>
    %cst_75 = arith.constant 1.000000e-16 : f32
    %131 = vector.broadcast %cst_75 : f32 to vector<8x32xf32>
    %132 = arith.addf %130, %131 : vector<8x32xf32>
    %133 = math.sqrt %132 : vector<8x32xf32>
    %134 = math.sqrt %133 : vector<8x32xf32>
    %135 = vector.extract_strided_slice %12 {offsets = [0, 0], sizes = [1, 32], strides = [1, 1]} : vector<4x32xf32> to vector<1x32xf32>
    %136 = arith.negf %135 : vector<1x32xf32>
    %137 = math.exp %136 : vector<1x32xf32>
    %cst_76 = arith.constant 1.000000e+00 : f32
    %138 = vector.broadcast %cst_76 : f32 to vector<1x32xf32>
    %139 = arith.addf %138, %137 : vector<1x32xf32>
    %140 = arith.divf %138, %139 : vector<1x32xf32>
    %cst_77 = arith.constant 1.000000e+00 : f32
    %141 = vector.broadcast %cst_77 : f32 to vector<8x32xf32>
    %142 = arith.subf %134, %141 : vector<8x32xf32>
    %143 = vector.broadcast %140 : vector<1x32xf32> to vector<8x32xf32>
    %144 = arith.mulf %143, %142 : vector<8x32xf32>
    %cst_78 = arith.constant 1.000000e+00 : f32
    %145 = vector.broadcast %cst_78 : f32 to vector<8x32xf32>
    %146 = arith.addf %144, %145 : vector<8x32xf32>
    %cst_79 = arith.constant 9.99999997E-7 : f32
    %147 = vector.broadcast %cst_79 : f32 to vector<8x32xf32>
    %148 = arith.addf %146, %147 : vector<8x32xf32>
    %cst_80 = arith.constant 1.000000e+00 : f32
    %149 = vector.broadcast %cst_80 : f32 to vector<8x32xf32>
    %150 = arith.divf %149, %148 : vector<8x32xf32>
    %151 = arith.mulf %107, %150 : vector<8x32xf32>
    %152 = arith.mulf %110, %110 : vector<8x32xf32>
    %153 = arith.mulf %113, %113 : vector<8x32xf32>
    %154 = arith.addf %152, %153 : vector<8x32xf32>
    %155 = arith.mulf %116, %116 : vector<8x32xf32>
    %156 = arith.addf %154, %155 : vector<8x32xf32>
    %157 = arith.mulf %156, %156 : vector<8x32xf32>
    %cst_81 = arith.constant 1.000000e-16 : f32
    %158 = vector.broadcast %cst_81 : f32 to vector<8x32xf32>
    %159 = arith.addf %157, %158 : vector<8x32xf32>
    %160 = math.sqrt %159 : vector<8x32xf32>
    %161 = math.sqrt %160 : vector<8x32xf32>
    %162 = vector.extract_strided_slice %12 {offsets = [1, 0], sizes = [1, 32], strides = [1, 1]} : vector<4x32xf32> to vector<1x32xf32>
    %163 = arith.negf %162 : vector<1x32xf32>
    %164 = math.exp %163 : vector<1x32xf32>
    %cst_82 = arith.constant 1.000000e+00 : f32
    %165 = vector.broadcast %cst_82 : f32 to vector<1x32xf32>
    %166 = arith.addf %165, %164 : vector<1x32xf32>
    %167 = arith.divf %165, %166 : vector<1x32xf32>
    %cst_83 = arith.constant 1.000000e+00 : f32
    %168 = vector.broadcast %cst_83 : f32 to vector<8x32xf32>
    %169 = arith.subf %161, %168 : vector<8x32xf32>
    %170 = vector.broadcast %167 : vector<1x32xf32> to vector<8x32xf32>
    %171 = arith.mulf %170, %169 : vector<8x32xf32>
    %cst_84 = arith.constant 1.000000e+00 : f32
    %172 = vector.broadcast %cst_84 : f32 to vector<8x32xf32>
    %173 = arith.addf %171, %172 : vector<8x32xf32>
    %cst_85 = arith.constant 9.99999997E-7 : f32
    %174 = vector.broadcast %cst_85 : f32 to vector<8x32xf32>
    %175 = arith.addf %173, %174 : vector<8x32xf32>
    %cst_86 = arith.constant 1.000000e+00 : f32
    %176 = vector.broadcast %cst_86 : f32 to vector<8x32xf32>
    %177 = arith.divf %176, %175 : vector<8x32xf32>
    %178 = arith.mulf %110, %177 : vector<8x32xf32>
    %179 = arith.mulf %113, %177 : vector<8x32xf32>
    %180 = arith.mulf %116, %177 : vector<8x32xf32>
    %181 = arith.mulf %119, %119 : vector<8x32xf32>
    %182 = arith.mulf %122, %122 : vector<8x32xf32>
    %183 = arith.addf %181, %182 : vector<8x32xf32>
    %184 = arith.mulf %125, %125 : vector<8x32xf32>
    %185 = arith.addf %183, %184 : vector<8x32xf32>
    %186 = arith.mulf %185, %185 : vector<8x32xf32>
    %cst_87 = arith.constant 1.000000e-16 : f32
    %187 = vector.broadcast %cst_87 : f32 to vector<8x32xf32>
    %188 = arith.addf %186, %187 : vector<8x32xf32>
    %189 = math.sqrt %188 : vector<8x32xf32>
    %190 = math.sqrt %189 : vector<8x32xf32>
    %191 = vector.extract_strided_slice %12 {offsets = [2, 0], sizes = [1, 32], strides = [1, 1]} : vector<4x32xf32> to vector<1x32xf32>
    %192 = arith.negf %191 : vector<1x32xf32>
    %193 = math.exp %192 : vector<1x32xf32>
    %cst_88 = arith.constant 1.000000e+00 : f32
    %194 = vector.broadcast %cst_88 : f32 to vector<1x32xf32>
    %195 = arith.addf %194, %193 : vector<1x32xf32>
    %196 = arith.divf %194, %195 : vector<1x32xf32>
    %cst_89 = arith.constant 1.000000e+00 : f32
    %197 = vector.broadcast %cst_89 : f32 to vector<8x32xf32>
    %198 = arith.subf %190, %197 : vector<8x32xf32>
    %199 = vector.broadcast %196 : vector<1x32xf32> to vector<8x32xf32>
    %200 = arith.mulf %199, %198 : vector<8x32xf32>
    %cst_90 = arith.constant 1.000000e+00 : f32
    %201 = vector.broadcast %cst_90 : f32 to vector<8x32xf32>
    %202 = arith.addf %200, %201 : vector<8x32xf32>
    %cst_91 = arith.constant 9.99999997E-7 : f32
    %203 = vector.broadcast %cst_91 : f32 to vector<8x32xf32>
    %204 = arith.addf %202, %203 : vector<8x32xf32>
    %cst_92 = arith.constant 1.000000e+00 : f32
    %205 = vector.broadcast %cst_92 : f32 to vector<8x32xf32>
    %206 = arith.divf %205, %204 : vector<8x32xf32>
    %207 = arith.mulf %119, %206 : vector<8x32xf32>
    %208 = arith.mulf %122, %206 : vector<8x32xf32>
    %209 = arith.mulf %125, %206 : vector<8x32xf32>
    %210 = arith.mulf %128, %128 : vector<8x32xf32>
    %211 = arith.mulf %210, %210 : vector<8x32xf32>
    %cst_93 = arith.constant 1.000000e-16 : f32
    %212 = vector.broadcast %cst_93 : f32 to vector<8x32xf32>
    %213 = arith.addf %211, %212 : vector<8x32xf32>
    %214 = math.sqrt %213 : vector<8x32xf32>
    %215 = math.sqrt %214 : vector<8x32xf32>
    %216 = vector.extract_strided_slice %12 {offsets = [3, 0], sizes = [1, 32], strides = [1, 1]} : vector<4x32xf32> to vector<1x32xf32>
    %217 = arith.negf %216 : vector<1x32xf32>
    %218 = math.exp %217 : vector<1x32xf32>
    %cst_94 = arith.constant 1.000000e+00 : f32
    %219 = vector.broadcast %cst_94 : f32 to vector<1x32xf32>
    %220 = arith.addf %219, %218 : vector<1x32xf32>
    %221 = arith.divf %219, %220 : vector<1x32xf32>
    %cst_95 = arith.constant 1.000000e+00 : f32
    %222 = vector.broadcast %cst_95 : f32 to vector<8x32xf32>
    %223 = arith.subf %215, %222 : vector<8x32xf32>
    %224 = vector.broadcast %221 : vector<1x32xf32> to vector<8x32xf32>
    %225 = arith.mulf %224, %223 : vector<8x32xf32>
    %cst_96 = arith.constant 1.000000e+00 : f32
    %226 = vector.broadcast %cst_96 : f32 to vector<8x32xf32>
    %227 = arith.addf %225, %226 : vector<8x32xf32>
    %cst_97 = arith.constant 9.99999997E-7 : f32
    %228 = vector.broadcast %cst_97 : f32 to vector<8x32xf32>
    %229 = arith.addf %227, %228 : vector<8x32xf32>
    %cst_98 = arith.constant 1.000000e+00 : f32
    %230 = vector.broadcast %cst_98 : f32 to vector<8x32xf32>
    %231 = arith.divf %230, %229 : vector<8x32xf32>
    %232 = arith.mulf %128, %231 : vector<8x32xf32>
    %c0_99 = arith.constant 0 : index
    %c0_100 = arith.constant 0 : index
    %c0_101 = arith.constant 0 : index
    %233 = vector.load %arg8[%c0_99, %c0_100, %c0_101] : memref<8x32x32xf32, #tpu.memory_space<vmem>>, vector<1x32x32xf32>
    %234 = vector.shape_cast %233 : vector<1x32x32xf32> to vector<32x32xf32>
    %cst_102 = arith.constant dense<0.000000e+00> : vector<8x32xf32>
    %235 = tpu.matmul %97, %234, %cst_102 {dimension_numbers = #tpu.dot_dimension_numbers<[1], [0], [0], [1], [0, 0, 1, 1], [], []>} : vector<8x32xf32>, vector<32x32xf32>, vector<8x32xf32> -> vector<8x32xf32>
    %c1_103 = arith.constant 1 : index
    %c0_104 = arith.constant 0 : index
    %c0_105 = arith.constant 0 : index
    %236 = vector.load %arg8[%c1_103, %c0_104, %c0_105] : memref<8x32x32xf32, #tpu.memory_space<vmem>>, vector<1x32x32xf32>
    %237 = vector.shape_cast %236 : vector<1x32x32xf32> to vector<32x32xf32>
    %cst_106 = arith.constant dense<0.000000e+00> : vector<8x32xf32>
    %238 = tpu.matmul %98, %237, %cst_106 {dimension_numbers = #tpu.dot_dimension_numbers<[1], [0], [0], [1], [0, 0, 1, 1], [], []>} : vector<8x32xf32>, vector<32x32xf32>, vector<8x32xf32> -> vector<8x32xf32>
    %c2_107 = arith.constant 2 : index
    %c0_108 = arith.constant 0 : index
    %c0_109 = arith.constant 0 : index
    %239 = vector.load %arg8[%c2_107, %c0_108, %c0_109] : memref<8x32x32xf32, #tpu.memory_space<vmem>>, vector<1x32x32xf32>
    %240 = vector.shape_cast %239 : vector<1x32x32xf32> to vector<32x32xf32>
    %cst_110 = arith.constant dense<0.000000e+00> : vector<8x32xf32>
    %241 = tpu.matmul %99, %240, %cst_110 {dimension_numbers = #tpu.dot_dimension_numbers<[1], [0], [0], [1], [0, 0, 1, 1], [], []>} : vector<8x32xf32>, vector<32x32xf32>, vector<8x32xf32> -> vector<8x32xf32>
    %c3_111 = arith.constant 3 : index
    %c0_112 = arith.constant 0 : index
    %c0_113 = arith.constant 0 : index
    %242 = vector.load %arg8[%c3_111, %c0_112, %c0_113] : memref<8x32x32xf32, #tpu.memory_space<vmem>>, vector<1x32x32xf32>
    %243 = vector.shape_cast %242 : vector<1x32x32xf32> to vector<32x32xf32>
    %cst_114 = arith.constant dense<0.000000e+00> : vector<8x32xf32>
    %244 = tpu.matmul %100, %243, %cst_114 {dimension_numbers = #tpu.dot_dimension_numbers<[1], [0], [0], [1], [0, 0, 1, 1], [], []>} : vector<8x32xf32>, vector<32x32xf32>, vector<8x32xf32> -> vector<8x32xf32>
    %c4_115 = arith.constant 4 : index
    %c0_116 = arith.constant 0 : index
    %c0_117 = arith.constant 0 : index
    %245 = vector.load %arg8[%c4_115, %c0_116, %c0_117] : memref<8x32x32xf32, #tpu.memory_space<vmem>>, vector<1x32x32xf32>
    %246 = vector.shape_cast %245 : vector<1x32x32xf32> to vector<32x32xf32>
    %cst_118 = arith.constant dense<0.000000e+00> : vector<8x32xf32>
    %247 = tpu.matmul %101, %246, %cst_118 {dimension_numbers = #tpu.dot_dimension_numbers<[1], [0], [0], [1], [0, 0, 1, 1], [], []>} : vector<8x32xf32>, vector<32x32xf32>, vector<8x32xf32> -> vector<8x32xf32>
    %c5_119 = arith.constant 5 : index
    %c0_120 = arith.constant 0 : index
    %c0_121 = arith.constant 0 : index
    %248 = vector.load %arg8[%c5_119, %c0_120, %c0_121] : memref<8x32x32xf32, #tpu.memory_space<vmem>>, vector<1x32x32xf32>
    %249 = vector.shape_cast %248 : vector<1x32x32xf32> to vector<32x32xf32>
    %cst_122 = arith.constant dense<0.000000e+00> : vector<8x32xf32>
    %250 = tpu.matmul %102, %249, %cst_122 {dimension_numbers = #tpu.dot_dimension_numbers<[1], [0], [0], [1], [0, 0, 1, 1], [], []>} : vector<8x32xf32>, vector<32x32xf32>, vector<8x32xf32> -> vector<8x32xf32>
    %c6_123 = arith.constant 6 : index
    %c0_124 = arith.constant 0 : index
    %c0_125 = arith.constant 0 : index
    %251 = vector.load %arg8[%c6_123, %c0_124, %c0_125] : memref<8x32x32xf32, #tpu.memory_space<vmem>>, vector<1x32x32xf32>
    %252 = vector.shape_cast %251 : vector<1x32x32xf32> to vector<32x32xf32>
    %cst_126 = arith.constant dense<0.000000e+00> : vector<8x32xf32>
    %253 = tpu.matmul %103, %252, %cst_126 {dimension_numbers = #tpu.dot_dimension_numbers<[1], [0], [0], [1], [0, 0, 1, 1], [], []>} : vector<8x32xf32>, vector<32x32xf32>, vector<8x32xf32> -> vector<8x32xf32>
    %c7_127 = arith.constant 7 : index
    %c0_128 = arith.constant 0 : index
    %c0_129 = arith.constant 0 : index
    %254 = vector.load %arg8[%c7_127, %c0_128, %c0_129] : memref<8x32x32xf32, #tpu.memory_space<vmem>>, vector<1x32x32xf32>
    %255 = vector.shape_cast %254 : vector<1x32x32xf32> to vector<32x32xf32>
    %cst_130 = arith.constant dense<0.000000e+00> : vector<8x32xf32>
    %256 = tpu.matmul %104, %255, %cst_130 {dimension_numbers = #tpu.dot_dimension_numbers<[1], [0], [0], [1], [0, 0, 1, 1], [], []>} : vector<8x32xf32>, vector<32x32xf32>, vector<8x32xf32> -> vector<8x32xf32>
    %257 = vector.broadcast %13 : vector<1x32xf32> to vector<8x32xf32>
    %258 = arith.addf %235, %257 : vector<8x32xf32>
    %259 = vector.extract_strided_slice %14 {offsets = [0, 0], sizes = [1, 32], strides = [1, 1]} : vector<64x32xf32> to vector<1x32xf32>
    %260 = arith.mulf %97, %151 : vector<8x32xf32>
    %261 = vector.broadcast %259 : vector<1x32xf32> to vector<8x32xf32>
    %262 = arith.mulf %261, %260 : vector<8x32xf32>
    %263 = vector.extract_strided_slice %14 {offsets = [1, 0], sizes = [1, 32], strides = [1, 1]} : vector<64x32xf32> to vector<1x32xf32>
    %264 = arith.mulf %97, %178 : vector<8x32xf32>
    %265 = vector.broadcast %263 : vector<1x32xf32> to vector<8x32xf32>
    %266 = arith.mulf %265, %264 : vector<8x32xf32>
    %267 = vector.extract_strided_slice %14 {offsets = [2, 0], sizes = [1, 32], strides = [1, 1]} : vector<64x32xf32> to vector<1x32xf32>
    %268 = arith.mulf %97, %179 : vector<8x32xf32>
    %269 = vector.broadcast %267 : vector<1x32xf32> to vector<8x32xf32>
    %270 = arith.mulf %269, %268 : vector<8x32xf32>
    %271 = vector.extract_strided_slice %14 {offsets = [3, 0], sizes = [1, 32], strides = [1, 1]} : vector<64x32xf32> to vector<1x32xf32>
    %272 = arith.mulf %97, %180 : vector<8x32xf32>
    %273 = vector.broadcast %271 : vector<1x32xf32> to vector<8x32xf32>
    %274 = arith.mulf %273, %272 : vector<8x32xf32>
    %275 = vector.extract_strided_slice %14 {offsets = [4, 0], sizes = [1, 32], strides = [1, 1]} : vector<64x32xf32> to vector<1x32xf32>
    %276 = arith.mulf %97, %207 : vector<8x32xf32>
    %277 = vector.broadcast %275 : vector<1x32xf32> to vector<8x32xf32>
    %278 = arith.mulf %277, %276 : vector<8x32xf32>
    %279 = vector.extract_strided_slice %14 {offsets = [5, 0], sizes = [1, 32], strides = [1, 1]} : vector<64x32xf32> to vector<1x32xf32>
    %280 = arith.mulf %97, %208 : vector<8x32xf32>
    %281 = vector.broadcast %279 : vector<1x32xf32> to vector<8x32xf32>
    %282 = arith.mulf %281, %280 : vector<8x32xf32>
    %283 = vector.extract_strided_slice %14 {offsets = [6, 0], sizes = [1, 32], strides = [1, 1]} : vector<64x32xf32> to vector<1x32xf32>
    %284 = arith.mulf %97, %209 : vector<8x32xf32>
    %285 = vector.broadcast %283 : vector<1x32xf32> to vector<8x32xf32>
    %286 = arith.mulf %285, %284 : vector<8x32xf32>
    %287 = vector.extract_strided_slice %14 {offsets = [7, 0], sizes = [1, 32], strides = [1, 1]} : vector<64x32xf32> to vector<1x32xf32>
    %288 = arith.mulf %97, %232 : vector<8x32xf32>
    %289 = vector.broadcast %287 : vector<1x32xf32> to vector<8x32xf32>
    %290 = arith.mulf %289, %288 : vector<8x32xf32>
    %291 = vector.extract_strided_slice %14 {offsets = [8, 0], sizes = [1, 32], strides = [1, 1]} : vector<64x32xf32> to vector<1x32xf32>
    %292 = arith.mulf %98, %178 : vector<8x32xf32>
    %293 = vector.broadcast %291 : vector<1x32xf32> to vector<8x32xf32>
    %294 = arith.mulf %293, %292 : vector<8x32xf32>
    %295 = arith.addf %262, %294 : vector<8x32xf32>
    %296 = vector.extract_strided_slice %14 {offsets = [9, 0], sizes = [1, 32], strides = [1, 1]} : vector<64x32xf32> to vector<1x32xf32>
    %297 = arith.mulf %98, %151 : vector<8x32xf32>
    %298 = vector.broadcast %296 : vector<1x32xf32> to vector<8x32xf32>
    %299 = arith.mulf %298, %297 : vector<8x32xf32>
    %300 = arith.addf %266, %299 : vector<8x32xf32>
    %301 = vector.extract_strided_slice %14 {offsets = [10, 0], sizes = [1, 32], strides = [1, 1]} : vector<64x32xf32> to vector<1x32xf32>
    %302 = arith.mulf %98, %207 : vector<8x32xf32>
    %303 = vector.broadcast %301 : vector<1x32xf32> to vector<8x32xf32>
    %304 = arith.mulf %303, %302 : vector<8x32xf32>
    %305 = arith.addf %270, %304 : vector<8x32xf32>
    %306 = vector.extract_strided_slice %14 {offsets = [11, 0], sizes = [1, 32], strides = [1, 1]} : vector<64x32xf32> to vector<1x32xf32>
    %307 = arith.mulf %98, %208 : vector<8x32xf32>
    %308 = vector.broadcast %306 : vector<1x32xf32> to vector<8x32xf32>
    %309 = arith.mulf %308, %307 : vector<8x32xf32>
    %310 = arith.addf %274, %309 : vector<8x32xf32>
    %311 = vector.extract_strided_slice %14 {offsets = [12, 0], sizes = [1, 32], strides = [1, 1]} : vector<64x32xf32> to vector<1x32xf32>
    %312 = arith.mulf %98, %179 : vector<8x32xf32>
    %313 = vector.broadcast %311 : vector<1x32xf32> to vector<8x32xf32>
    %314 = arith.mulf %313, %312 : vector<8x32xf32>
    %315 = arith.addf %278, %314 : vector<8x32xf32>
    %316 = vector.extract_strided_slice %14 {offsets = [13, 0], sizes = [1, 32], strides = [1, 1]} : vector<64x32xf32> to vector<1x32xf32>
    %317 = arith.mulf %98, %180 : vector<8x32xf32>
    %318 = vector.broadcast %316 : vector<1x32xf32> to vector<8x32xf32>
    %319 = arith.mulf %318, %317 : vector<8x32xf32>
    %320 = arith.addf %282, %319 : vector<8x32xf32>
    %321 = vector.extract_strided_slice %14 {offsets = [14, 0], sizes = [1, 32], strides = [1, 1]} : vector<64x32xf32> to vector<1x32xf32>
    %322 = arith.mulf %98, %232 : vector<8x32xf32>
    %323 = vector.broadcast %321 : vector<1x32xf32> to vector<8x32xf32>
    %324 = arith.mulf %323, %322 : vector<8x32xf32>
    %325 = arith.addf %286, %324 : vector<8x32xf32>
    %326 = vector.extract_strided_slice %14 {offsets = [15, 0], sizes = [1, 32], strides = [1, 1]} : vector<64x32xf32> to vector<1x32xf32>
    %327 = arith.mulf %98, %209 : vector<8x32xf32>
    %328 = vector.broadcast %326 : vector<1x32xf32> to vector<8x32xf32>
    %329 = arith.mulf %328, %327 : vector<8x32xf32>
    %330 = arith.addf %290, %329 : vector<8x32xf32>
    %331 = vector.extract_strided_slice %14 {offsets = [16, 0], sizes = [1, 32], strides = [1, 1]} : vector<64x32xf32> to vector<1x32xf32>
    %332 = arith.mulf %99, %179 : vector<8x32xf32>
    %333 = vector.broadcast %331 : vector<1x32xf32> to vector<8x32xf32>
    %334 = arith.mulf %333, %332 : vector<8x32xf32>
    %335 = arith.addf %295, %334 : vector<8x32xf32>
    %336 = vector.extract_strided_slice %14 {offsets = [17, 0], sizes = [1, 32], strides = [1, 1]} : vector<64x32xf32> to vector<1x32xf32>
    %337 = arith.mulf %99, %207 : vector<8x32xf32>
    %338 = vector.broadcast %336 : vector<1x32xf32> to vector<8x32xf32>
    %339 = arith.mulf %338, %337 : vector<8x32xf32>
    %340 = arith.addf %300, %339 : vector<8x32xf32>
    %341 = vector.extract_strided_slice %14 {offsets = [18, 0], sizes = [1, 32], strides = [1, 1]} : vector<64x32xf32> to vector<1x32xf32>
    %342 = arith.mulf %99, %151 : vector<8x32xf32>
    %343 = vector.broadcast %341 : vector<1x32xf32> to vector<8x32xf32>
    %344 = arith.mulf %343, %342 : vector<8x32xf32>
    %345 = arith.addf %305, %344 : vector<8x32xf32>
    %346 = vector.extract_strided_slice %14 {offsets = [19, 0], sizes = [1, 32], strides = [1, 1]} : vector<64x32xf32> to vector<1x32xf32>
    %347 = arith.mulf %99, %209 : vector<8x32xf32>
    %348 = vector.broadcast %346 : vector<1x32xf32> to vector<8x32xf32>
    %349 = arith.mulf %348, %347 : vector<8x32xf32>
    %350 = arith.addf %310, %349 : vector<8x32xf32>
    %351 = vector.extract_strided_slice %14 {offsets = [20, 0], sizes = [1, 32], strides = [1, 1]} : vector<64x32xf32> to vector<1x32xf32>
    %352 = arith.mulf %99, %178 : vector<8x32xf32>
    %353 = vector.broadcast %351 : vector<1x32xf32> to vector<8x32xf32>
    %354 = arith.mulf %353, %352 : vector<8x32xf32>
    %355 = arith.addf %315, %354 : vector<8x32xf32>
    %356 = vector.extract_strided_slice %14 {offsets = [21, 0], sizes = [1, 32], strides = [1, 1]} : vector<64x32xf32> to vector<1x32xf32>
    %357 = arith.mulf %99, %232 : vector<8x32xf32>
    %358 = vector.broadcast %356 : vector<1x32xf32> to vector<8x32xf32>
    %359 = arith.mulf %358, %357 : vector<8x32xf32>
    %360 = arith.addf %320, %359 : vector<8x32xf32>
    %361 = vector.extract_strided_slice %14 {offsets = [22, 0], sizes = [1, 32], strides = [1, 1]} : vector<64x32xf32> to vector<1x32xf32>
    %362 = arith.mulf %99, %180 : vector<8x32xf32>
    %363 = vector.broadcast %361 : vector<1x32xf32> to vector<8x32xf32>
    %364 = arith.mulf %363, %362 : vector<8x32xf32>
    %365 = arith.addf %325, %364 : vector<8x32xf32>
    %366 = vector.extract_strided_slice %14 {offsets = [23, 0], sizes = [1, 32], strides = [1, 1]} : vector<64x32xf32> to vector<1x32xf32>
    %367 = arith.mulf %99, %208 : vector<8x32xf32>
    %368 = vector.broadcast %366 : vector<1x32xf32> to vector<8x32xf32>
    %369 = arith.mulf %368, %367 : vector<8x32xf32>
    %370 = arith.addf %330, %369 : vector<8x32xf32>
    %371 = vector.extract_strided_slice %14 {offsets = [24, 0], sizes = [1, 32], strides = [1, 1]} : vector<64x32xf32> to vector<1x32xf32>
    %372 = arith.mulf %100, %180 : vector<8x32xf32>
    %373 = vector.broadcast %371 : vector<1x32xf32> to vector<8x32xf32>
    %374 = arith.mulf %373, %372 : vector<8x32xf32>
    %375 = arith.addf %335, %374 : vector<8x32xf32>
    %376 = vector.extract_strided_slice %14 {offsets = [25, 0], sizes = [1, 32], strides = [1, 1]} : vector<64x32xf32> to vector<1x32xf32>
    %377 = arith.mulf %100, %208 : vector<8x32xf32>
    %378 = vector.broadcast %376 : vector<1x32xf32> to vector<8x32xf32>
    %379 = arith.mulf %378, %377 : vector<8x32xf32>
    %380 = arith.addf %340, %379 : vector<8x32xf32>
    %381 = vector.extract_strided_slice %14 {offsets = [26, 0], sizes = [1, 32], strides = [1, 1]} : vector<64x32xf32> to vector<1x32xf32>
    %382 = arith.mulf %100, %209 : vector<8x32xf32>
    %383 = vector.broadcast %381 : vector<1x32xf32> to vector<8x32xf32>
    %384 = arith.mulf %383, %382 : vector<8x32xf32>
    %385 = arith.addf %345, %384 : vector<8x32xf32>
    %386 = vector.extract_strided_slice %14 {offsets = [27, 0], sizes = [1, 32], strides = [1, 1]} : vector<64x32xf32> to vector<1x32xf32>
    %387 = arith.mulf %100, %151 : vector<8x32xf32>
    %388 = vector.broadcast %386 : vector<1x32xf32> to vector<8x32xf32>
    %389 = arith.mulf %388, %387 : vector<8x32xf32>
    %390 = arith.addf %350, %389 : vector<8x32xf32>
    %391 = vector.extract_strided_slice %14 {offsets = [28, 0], sizes = [1, 32], strides = [1, 1]} : vector<64x32xf32> to vector<1x32xf32>
    %392 = arith.mulf %100, %232 : vector<8x32xf32>
    %393 = vector.broadcast %391 : vector<1x32xf32> to vector<8x32xf32>
    %394 = arith.mulf %393, %392 : vector<8x32xf32>
    %395 = arith.addf %355, %394 : vector<8x32xf32>
    %396 = vector.extract_strided_slice %14 {offsets = [29, 0], sizes = [1, 32], strides = [1, 1]} : vector<64x32xf32> to vector<1x32xf32>
    %397 = arith.mulf %100, %178 : vector<8x32xf32>
    %398 = vector.broadcast %396 : vector<1x32xf32> to vector<8x32xf32>
    %399 = arith.mulf %398, %397 : vector<8x32xf32>
    %400 = arith.addf %360, %399 : vector<8x32xf32>
    %401 = vector.extract_strided_slice %14 {offsets = [30, 0], sizes = [1, 32], strides = [1, 1]} : vector<64x32xf32> to vector<1x32xf32>
    %402 = arith.mulf %100, %179 : vector<8x32xf32>
    %403 = vector.broadcast %401 : vector<1x32xf32> to vector<8x32xf32>
    %404 = arith.mulf %403, %402 : vector<8x32xf32>
    %405 = arith.addf %365, %404 : vector<8x32xf32>
    %406 = vector.extract_strided_slice %14 {offsets = [31, 0], sizes = [1, 32], strides = [1, 1]} : vector<64x32xf32> to vector<1x32xf32>
    %407 = arith.mulf %100, %207 : vector<8x32xf32>
    %408 = vector.broadcast %406 : vector<1x32xf32> to vector<8x32xf32>
    %409 = arith.mulf %408, %407 : vector<8x32xf32>
    %410 = arith.addf %370, %409 : vector<8x32xf32>
    %411 = vector.extract_strided_slice %14 {offsets = [32, 0], sizes = [1, 32], strides = [1, 1]} : vector<64x32xf32> to vector<1x32xf32>
    %412 = arith.mulf %101, %207 : vector<8x32xf32>
    %413 = vector.broadcast %411 : vector<1x32xf32> to vector<8x32xf32>
    %414 = arith.mulf %413, %412 : vector<8x32xf32>
    %415 = arith.addf %375, %414 : vector<8x32xf32>
    %416 = vector.extract_strided_slice %14 {offsets = [33, 0], sizes = [1, 32], strides = [1, 1]} : vector<64x32xf32> to vector<1x32xf32>
    %417 = arith.mulf %101, %179 : vector<8x32xf32>
    %418 = vector.broadcast %416 : vector<1x32xf32> to vector<8x32xf32>
    %419 = arith.mulf %418, %417 : vector<8x32xf32>
    %420 = arith.addf %380, %419 : vector<8x32xf32>
    %421 = vector.extract_strided_slice %14 {offsets = [34, 0], sizes = [1, 32], strides = [1, 1]} : vector<64x32xf32> to vector<1x32xf32>
    %422 = arith.mulf %101, %178 : vector<8x32xf32>
    %423 = vector.broadcast %421 : vector<1x32xf32> to vector<8x32xf32>
    %424 = arith.mulf %423, %422 : vector<8x32xf32>
    %425 = arith.addf %385, %424 : vector<8x32xf32>
    %426 = vector.extract_strided_slice %14 {offsets = [35, 0], sizes = [1, 32], strides = [1, 1]} : vector<64x32xf32> to vector<1x32xf32>
    %427 = arith.mulf %101, %232 : vector<8x32xf32>
    %428 = vector.broadcast %426 : vector<1x32xf32> to vector<8x32xf32>
    %429 = arith.mulf %428, %427 : vector<8x32xf32>
    %430 = arith.addf %390, %429 : vector<8x32xf32>
    %431 = vector.extract_strided_slice %14 {offsets = [36, 0], sizes = [1, 32], strides = [1, 1]} : vector<64x32xf32> to vector<1x32xf32>
    %432 = arith.mulf %101, %151 : vector<8x32xf32>
    %433 = vector.broadcast %431 : vector<1x32xf32> to vector<8x32xf32>
    %434 = arith.mulf %433, %432 : vector<8x32xf32>
    %435 = arith.addf %395, %434 : vector<8x32xf32>
    %436 = vector.extract_strided_slice %14 {offsets = [37, 0], sizes = [1, 32], strides = [1, 1]} : vector<64x32xf32> to vector<1x32xf32>
    %437 = arith.mulf %101, %209 : vector<8x32xf32>
    %438 = vector.broadcast %436 : vector<1x32xf32> to vector<8x32xf32>
    %439 = arith.mulf %438, %437 : vector<8x32xf32>
    %440 = arith.addf %400, %439 : vector<8x32xf32>
    %441 = vector.extract_strided_slice %14 {offsets = [38, 0], sizes = [1, 32], strides = [1, 1]} : vector<64x32xf32> to vector<1x32xf32>
    %442 = arith.mulf %101, %208 : vector<8x32xf32>
    %443 = vector.broadcast %441 : vector<1x32xf32> to vector<8x32xf32>
    %444 = arith.mulf %443, %442 : vector<8x32xf32>
    %445 = arith.addf %405, %444 : vector<8x32xf32>
    %446 = vector.extract_strided_slice %14 {offsets = [39, 0], sizes = [1, 32], strides = [1, 1]} : vector<64x32xf32> to vector<1x32xf32>
    %447 = arith.mulf %101, %180 : vector<8x32xf32>
    %448 = vector.broadcast %446 : vector<1x32xf32> to vector<8x32xf32>
    %449 = arith.mulf %448, %447 : vector<8x32xf32>
    %450 = arith.addf %410, %449 : vector<8x32xf32>
    %451 = vector.extract_strided_slice %14 {offsets = [40, 0], sizes = [1, 32], strides = [1, 1]} : vector<64x32xf32> to vector<1x32xf32>
    %452 = arith.mulf %102, %208 : vector<8x32xf32>
    %453 = vector.broadcast %451 : vector<1x32xf32> to vector<8x32xf32>
    %454 = arith.mulf %453, %452 : vector<8x32xf32>
    %455 = arith.addf %415, %454 : vector<8x32xf32>
    %456 = vector.extract_strided_slice %14 {offsets = [41, 0], sizes = [1, 32], strides = [1, 1]} : vector<64x32xf32> to vector<1x32xf32>
    %457 = arith.mulf %102, %180 : vector<8x32xf32>
    %458 = vector.broadcast %456 : vector<1x32xf32> to vector<8x32xf32>
    %459 = arith.mulf %458, %457 : vector<8x32xf32>
    %460 = arith.addf %420, %459 : vector<8x32xf32>
    %461 = vector.extract_strided_slice %14 {offsets = [42, 0], sizes = [1, 32], strides = [1, 1]} : vector<64x32xf32> to vector<1x32xf32>
    %462 = arith.mulf %102, %232 : vector<8x32xf32>
    %463 = vector.broadcast %461 : vector<1x32xf32> to vector<8x32xf32>
    %464 = arith.mulf %463, %462 : vector<8x32xf32>
    %465 = arith.addf %425, %464 : vector<8x32xf32>
    %466 = vector.extract_strided_slice %14 {offsets = [43, 0], sizes = [1, 32], strides = [1, 1]} : vector<64x32xf32> to vector<1x32xf32>
    %467 = arith.mulf %102, %178 : vector<8x32xf32>
    %468 = vector.broadcast %466 : vector<1x32xf32> to vector<8x32xf32>
    %469 = arith.mulf %468, %467 : vector<8x32xf32>
    %470 = arith.addf %430, %469 : vector<8x32xf32>
    %471 = vector.extract_strided_slice %14 {offsets = [44, 0], sizes = [1, 32], strides = [1, 1]} : vector<64x32xf32> to vector<1x32xf32>
    %472 = arith.mulf %102, %209 : vector<8x32xf32>
    %473 = vector.broadcast %471 : vector<1x32xf32> to vector<8x32xf32>
    %474 = arith.mulf %473, %472 : vector<8x32xf32>
    %475 = arith.addf %435, %474 : vector<8x32xf32>
    %476 = vector.extract_strided_slice %14 {offsets = [45, 0], sizes = [1, 32], strides = [1, 1]} : vector<64x32xf32> to vector<1x32xf32>
    %477 = arith.mulf %102, %151 : vector<8x32xf32>
    %478 = vector.broadcast %476 : vector<1x32xf32> to vector<8x32xf32>
    %479 = arith.mulf %478, %477 : vector<8x32xf32>
    %480 = arith.addf %440, %479 : vector<8x32xf32>
    %481 = vector.extract_strided_slice %14 {offsets = [46, 0], sizes = [1, 32], strides = [1, 1]} : vector<64x32xf32> to vector<1x32xf32>
    %482 = arith.mulf %102, %207 : vector<8x32xf32>
    %483 = vector.broadcast %481 : vector<1x32xf32> to vector<8x32xf32>
    %484 = arith.mulf %483, %482 : vector<8x32xf32>
    %485 = arith.addf %445, %484 : vector<8x32xf32>
    %486 = vector.extract_strided_slice %14 {offsets = [47, 0], sizes = [1, 32], strides = [1, 1]} : vector<64x32xf32> to vector<1x32xf32>
    %487 = arith.mulf %102, %179 : vector<8x32xf32>
    %488 = vector.broadcast %486 : vector<1x32xf32> to vector<8x32xf32>
    %489 = arith.mulf %488, %487 : vector<8x32xf32>
    %490 = arith.addf %450, %489 : vector<8x32xf32>
    %491 = vector.extract_strided_slice %14 {offsets = [48, 0], sizes = [1, 32], strides = [1, 1]} : vector<64x32xf32> to vector<1x32xf32>
    %492 = arith.mulf %103, %209 : vector<8x32xf32>
    %493 = vector.broadcast %491 : vector<1x32xf32> to vector<8x32xf32>
    %494 = arith.mulf %493, %492 : vector<8x32xf32>
    %495 = arith.addf %455, %494 : vector<8x32xf32>
    %496 = vector.extract_strided_slice %14 {offsets = [49, 0], sizes = [1, 32], strides = [1, 1]} : vector<64x32xf32> to vector<1x32xf32>
    %497 = arith.mulf %103, %232 : vector<8x32xf32>
    %498 = vector.broadcast %496 : vector<1x32xf32> to vector<8x32xf32>
    %499 = arith.mulf %498, %497 : vector<8x32xf32>
    %500 = arith.addf %460, %499 : vector<8x32xf32>
    %501 = vector.extract_strided_slice %14 {offsets = [50, 0], sizes = [1, 32], strides = [1, 1]} : vector<64x32xf32> to vector<1x32xf32>
    %502 = arith.mulf %103, %180 : vector<8x32xf32>
    %503 = vector.broadcast %501 : vector<1x32xf32> to vector<8x32xf32>
    %504 = arith.mulf %503, %502 : vector<8x32xf32>
    %505 = arith.addf %465, %504 : vector<8x32xf32>
    %506 = vector.extract_strided_slice %14 {offsets = [51, 0], sizes = [1, 32], strides = [1, 1]} : vector<64x32xf32> to vector<1x32xf32>
    %507 = arith.mulf %103, %179 : vector<8x32xf32>
    %508 = vector.broadcast %506 : vector<1x32xf32> to vector<8x32xf32>
    %509 = arith.mulf %508, %507 : vector<8x32xf32>
    %510 = arith.addf %470, %509 : vector<8x32xf32>
    %511 = vector.extract_strided_slice %14 {offsets = [52, 0], sizes = [1, 32], strides = [1, 1]} : vector<64x32xf32> to vector<1x32xf32>
    %512 = arith.mulf %103, %208 : vector<8x32xf32>
    %513 = vector.broadcast %511 : vector<1x32xf32> to vector<8x32xf32>
    %514 = arith.mulf %513, %512 : vector<8x32xf32>
    %515 = arith.addf %475, %514 : vector<8x32xf32>
    %516 = vector.extract_strided_slice %14 {offsets = [53, 0], sizes = [1, 32], strides = [1, 1]} : vector<64x32xf32> to vector<1x32xf32>
    %517 = arith.mulf %103, %207 : vector<8x32xf32>
    %518 = vector.broadcast %516 : vector<1x32xf32> to vector<8x32xf32>
    %519 = arith.mulf %518, %517 : vector<8x32xf32>
    %520 = arith.addf %480, %519 : vector<8x32xf32>
    %521 = vector.extract_strided_slice %14 {offsets = [54, 0], sizes = [1, 32], strides = [1, 1]} : vector<64x32xf32> to vector<1x32xf32>
    %522 = arith.mulf %103, %151 : vector<8x32xf32>
    %523 = vector.broadcast %521 : vector<1x32xf32> to vector<8x32xf32>
    %524 = arith.mulf %523, %522 : vector<8x32xf32>
    %525 = arith.addf %485, %524 : vector<8x32xf32>
    %526 = vector.extract_strided_slice %14 {offsets = [55, 0], sizes = [1, 32], strides = [1, 1]} : vector<64x32xf32> to vector<1x32xf32>
    %527 = arith.mulf %103, %178 : vector<8x32xf32>
    %528 = vector.broadcast %526 : vector<1x32xf32> to vector<8x32xf32>
    %529 = arith.mulf %528, %527 : vector<8x32xf32>
    %530 = arith.addf %490, %529 : vector<8x32xf32>
    %531 = vector.extract_strided_slice %14 {offsets = [56, 0], sizes = [1, 32], strides = [1, 1]} : vector<64x32xf32> to vector<1x32xf32>
    %532 = arith.mulf %104, %232 : vector<8x32xf32>
    %533 = vector.broadcast %531 : vector<1x32xf32> to vector<8x32xf32>
    %534 = arith.mulf %533, %532 : vector<8x32xf32>
    %535 = arith.addf %495, %534 : vector<8x32xf32>
    %536 = vector.extract_strided_slice %14 {offsets = [57, 0], sizes = [1, 32], strides = [1, 1]} : vector<64x32xf32> to vector<1x32xf32>
    %537 = arith.mulf %104, %209 : vector<8x32xf32>
    %538 = vector.broadcast %536 : vector<1x32xf32> to vector<8x32xf32>
    %539 = arith.mulf %538, %537 : vector<8x32xf32>
    %540 = arith.addf %500, %539 : vector<8x32xf32>
    %541 = vector.extract_strided_slice %14 {offsets = [58, 0], sizes = [1, 32], strides = [1, 1]} : vector<64x32xf32> to vector<1x32xf32>
    %542 = arith.mulf %104, %208 : vector<8x32xf32>
    %543 = vector.broadcast %541 : vector<1x32xf32> to vector<8x32xf32>
    %544 = arith.mulf %543, %542 : vector<8x32xf32>
    %545 = arith.addf %505, %544 : vector<8x32xf32>
    %546 = vector.extract_strided_slice %14 {offsets = [59, 0], sizes = [1, 32], strides = [1, 1]} : vector<64x32xf32> to vector<1x32xf32>
    %547 = arith.mulf %104, %207 : vector<8x32xf32>
    %548 = vector.broadcast %546 : vector<1x32xf32> to vector<8x32xf32>
    %549 = arith.mulf %548, %547 : vector<8x32xf32>
    %550 = arith.addf %510, %549 : vector<8x32xf32>
    %551 = vector.extract_strided_slice %14 {offsets = [60, 0], sizes = [1, 32], strides = [1, 1]} : vector<64x32xf32> to vector<1x32xf32>
    %552 = arith.mulf %104, %180 : vector<8x32xf32>
    %553 = vector.broadcast %551 : vector<1x32xf32> to vector<8x32xf32>
    %554 = arith.mulf %553, %552 : vector<8x32xf32>
    %555 = arith.addf %515, %554 : vector<8x32xf32>
    %556 = vector.extract_strided_slice %14 {offsets = [61, 0], sizes = [1, 32], strides = [1, 1]} : vector<64x32xf32> to vector<1x32xf32>
    %557 = arith.mulf %104, %179 : vector<8x32xf32>
    %558 = vector.broadcast %556 : vector<1x32xf32> to vector<8x32xf32>
    %559 = arith.mulf %558, %557 : vector<8x32xf32>
    %560 = arith.addf %520, %559 : vector<8x32xf32>
    %561 = vector.extract_strided_slice %14 {offsets = [62, 0], sizes = [1, 32], strides = [1, 1]} : vector<64x32xf32> to vector<1x32xf32>
    %562 = arith.mulf %104, %178 : vector<8x32xf32>
    %563 = vector.broadcast %561 : vector<1x32xf32> to vector<8x32xf32>
    %564 = arith.mulf %563, %562 : vector<8x32xf32>
    %565 = arith.addf %525, %564 : vector<8x32xf32>
    %566 = vector.extract_strided_slice %14 {offsets = [63, 0], sizes = [1, 32], strides = [1, 1]} : vector<64x32xf32> to vector<1x32xf32>
    %567 = arith.mulf %104, %151 : vector<8x32xf32>
    %568 = vector.broadcast %566 : vector<1x32xf32> to vector<8x32xf32>
    %569 = arith.mulf %568, %567 : vector<8x32xf32>
    %570 = arith.addf %530, %569 : vector<8x32xf32>
    %571 = arith.addf %258, %535 : vector<8x32xf32>
    %cst_131 = arith.constant 0.707106769 : f32
    %572 = vector.broadcast %cst_131 : f32 to vector<8x32xf32>
    %573 = arith.mulf %571, %572 : vector<8x32xf32>
    %574 = arith.addf %238, %540 : vector<8x32xf32>
    %cst_132 = arith.constant 0.707106769 : f32
    %575 = vector.broadcast %cst_132 : f32 to vector<8x32xf32>
    %576 = arith.mulf %574, %575 : vector<8x32xf32>
    %577 = arith.addf %241, %545 : vector<8x32xf32>
    %cst_133 = arith.constant 0.707106769 : f32
    %578 = vector.broadcast %cst_133 : f32 to vector<8x32xf32>
    %579 = arith.mulf %577, %578 : vector<8x32xf32>
    %580 = arith.addf %244, %550 : vector<8x32xf32>
    %cst_134 = arith.constant 0.707106769 : f32
    %581 = vector.broadcast %cst_134 : f32 to vector<8x32xf32>
    %582 = arith.mulf %580, %581 : vector<8x32xf32>
    %583 = arith.addf %247, %555 : vector<8x32xf32>
    %cst_135 = arith.constant 0.707106769 : f32
    %584 = vector.broadcast %cst_135 : f32 to vector<8x32xf32>
    %585 = arith.mulf %583, %584 : vector<8x32xf32>
    %586 = arith.addf %250, %560 : vector<8x32xf32>
    %cst_136 = arith.constant 0.707106769 : f32
    %587 = vector.broadcast %cst_136 : f32 to vector<8x32xf32>
    %588 = arith.mulf %586, %587 : vector<8x32xf32>
    %589 = arith.addf %253, %565 : vector<8x32xf32>
    %cst_137 = arith.constant 0.707106769 : f32
    %590 = vector.broadcast %cst_137 : f32 to vector<8x32xf32>
    %591 = arith.mulf %589, %590 : vector<8x32xf32>
    %592 = arith.addf %256, %570 : vector<8x32xf32>
    %cst_138 = arith.constant 0.707106769 : f32
    %593 = vector.broadcast %cst_138 : f32 to vector<8x32xf32>
    %594 = arith.mulf %592, %593 : vector<8x32xf32>
    %595 = arith.mulf %573, %573 : vector<8x32xf32>
    %596 = arith.mulf %576, %576 : vector<8x32xf32>
    %597 = arith.addf %595, %596 : vector<8x32xf32>
    %598 = arith.mulf %579, %579 : vector<8x32xf32>
    %599 = arith.addf %597, %598 : vector<8x32xf32>
    %600 = arith.mulf %582, %582 : vector<8x32xf32>
    %601 = arith.addf %599, %600 : vector<8x32xf32>
    %602 = arith.mulf %585, %585 : vector<8x32xf32>
    %603 = arith.addf %601, %602 : vector<8x32xf32>
    %604 = arith.mulf %588, %588 : vector<8x32xf32>
    %605 = arith.addf %603, %604 : vector<8x32xf32>
    %606 = arith.mulf %591, %591 : vector<8x32xf32>
    %607 = arith.addf %605, %606 : vector<8x32xf32>
    %608 = arith.mulf %594, %594 : vector<8x32xf32>
    %609 = arith.addf %607, %608 : vector<8x32xf32>
    %610 = arith.mulf %609, %609 : vector<8x32xf32>
    %cst_139 = arith.constant 1.000000e-16 : f32
    %611 = vector.broadcast %cst_139 : f32 to vector<8x32xf32>
    %612 = arith.addf %610, %611 : vector<8x32xf32>
    %613 = math.sqrt %612 : vector<8x32xf32>
    %614 = math.sqrt %613 : vector<8x32xf32>
    %cst_140 = arith.constant dense<0.000000e+00> : vector<8xf32>
    %615 = vector.multi_reduction <add>, %614, %cst_140 [1] : vector<8x32xf32> to vector<8xf32>
    %616 = vector.shape_cast %615 : vector<8xf32> to vector<8x1xf32>
    %cst_141 = arith.constant 3.200000e+01 : f32
    %617 = vector.broadcast %cst_141 : f32 to vector<8x1xf32>
    %618 = arith.divf %616, %617 : vector<8x1xf32>
    %cst_142 = arith.constant 9.99999997E-7 : f32
    %619 = vector.broadcast %cst_142 : f32 to vector<8x1xf32>
    %620 = arith.addf %618, %619 : vector<8x1xf32>
    %621 = vector.broadcast %15 : vector<1x32xf32> to vector<8x32xf32>
    %622 = vector.broadcast %620 : vector<8x1xf32> to vector<8x32xf32>
    %623 = arith.divf %621, %622 : vector<8x32xf32>
    %624 = arith.mulf %573, %623 : vector<8x32xf32>
    %625 = arith.mulf %576, %623 : vector<8x32xf32>
    %626 = arith.mulf %579, %623 : vector<8x32xf32>
    %627 = arith.mulf %582, %623 : vector<8x32xf32>
    %628 = arith.mulf %585, %623 : vector<8x32xf32>
    %629 = arith.mulf %588, %623 : vector<8x32xf32>
    %630 = arith.mulf %591, %623 : vector<8x32xf32>
    %631 = arith.mulf %594, %623 : vector<8x32xf32>
    %c0_143 = arith.constant 0 : index
    %c0_144 = arith.constant 0 : index
    %632 = vector.load %arg13[%c0_143, %c0_144] : memref<1x8xf32, #tpu.memory_space<vmem>>, vector<1x8xf32>
    %c0_145 = arith.constant 0 : index
    %c0_146 = arith.constant 0 : index
    %633 = vector.load %arg14[%c0_145, %c0_146] : memref<4x8xf32, #tpu.memory_space<vmem>>, vector<4x8xf32>
    %c0_147 = arith.constant 0 : index
    %c0_148 = arith.constant 0 : index
    %634 = vector.load %arg15[%c0_147, %c0_148] : memref<4x8xf32, #tpu.memory_space<vmem>>, vector<4x8xf32>
    %c0_149 = arith.constant 0 : index
    %c0_150 = arith.constant 0 : index
    %635 = vector.load %arg17[%c0_149, %c0_150] : memref<4x8xf32, #tpu.memory_space<vmem>>, vector<4x8xf32>
    %c0_151 = arith.constant 0 : index
    %c0_152 = arith.constant 0 : index
    %636 = vector.load %arg19[%c0_151, %c0_152] : memref<1x8xf32, #tpu.memory_space<vmem>>, vector<1x8xf32>
    %c0_153 = arith.constant 0 : index
    %c0_154 = arith.constant 0 : index
    %637 = vector.load %arg20[%c0_153, %c0_154] : memref<64x8xf32, #tpu.memory_space<vmem>>, vector<64x8xf32>
    %c0_155 = arith.constant 0 : index
    %c0_156 = arith.constant 0 : index
    %638 = vector.load %arg21[%c0_155, %c0_156] : memref<1x8xf32, #tpu.memory_space<vmem>>, vector<1x8xf32>
    %c0_157 = arith.constant 0 : index
    %c0_158 = arith.constant 0 : index
    %c0_159 = arith.constant 0 : index
    %639 = vector.load %arg12[%c0_157, %c0_158, %c0_159] : memref<8x32x8xf32, #tpu.memory_space<vmem>>, vector<1x32x8xf32>
    %640 = vector.shape_cast %639 : vector<1x32x8xf32> to vector<32x8xf32>
    %cst_160 = arith.constant dense<0.000000e+00> : vector<8x8xf32>
    %641 = tpu.matmul %624, %640, %cst_160 {dimension_numbers = #tpu.dot_dimension_numbers<[1], [0], [0], [1], [0, 0, 1, 1], [], []>} : vector<8x32xf32>, vector<32x8xf32>, vector<8x8xf32> -> vector<8x8xf32>
    %c1_161 = arith.constant 1 : index
    %c0_162 = arith.constant 0 : index
    %c0_163 = arith.constant 0 : index
    %642 = vector.load %arg12[%c1_161, %c0_162, %c0_163] : memref<8x32x8xf32, #tpu.memory_space<vmem>>, vector<1x32x8xf32>
    %643 = vector.shape_cast %642 : vector<1x32x8xf32> to vector<32x8xf32>
    %cst_164 = arith.constant dense<0.000000e+00> : vector<8x8xf32>
    %644 = tpu.matmul %625, %643, %cst_164 {dimension_numbers = #tpu.dot_dimension_numbers<[1], [0], [0], [1], [0, 0, 1, 1], [], []>} : vector<8x32xf32>, vector<32x8xf32>, vector<8x8xf32> -> vector<8x8xf32>
    %c2_165 = arith.constant 2 : index
    %c0_166 = arith.constant 0 : index
    %c0_167 = arith.constant 0 : index
    %645 = vector.load %arg12[%c2_165, %c0_166, %c0_167] : memref<8x32x8xf32, #tpu.memory_space<vmem>>, vector<1x32x8xf32>
    %646 = vector.shape_cast %645 : vector<1x32x8xf32> to vector<32x8xf32>
    %cst_168 = arith.constant dense<0.000000e+00> : vector<8x8xf32>
    %647 = tpu.matmul %626, %646, %cst_168 {dimension_numbers = #tpu.dot_dimension_numbers<[1], [0], [0], [1], [0, 0, 1, 1], [], []>} : vector<8x32xf32>, vector<32x8xf32>, vector<8x8xf32> -> vector<8x8xf32>
    %c3_169 = arith.constant 3 : index
    %c0_170 = arith.constant 0 : index
    %c0_171 = arith.constant 0 : index
    %648 = vector.load %arg12[%c3_169, %c0_170, %c0_171] : memref<8x32x8xf32, #tpu.memory_space<vmem>>, vector<1x32x8xf32>
    %649 = vector.shape_cast %648 : vector<1x32x8xf32> to vector<32x8xf32>
    %cst_172 = arith.constant dense<0.000000e+00> : vector<8x8xf32>
    %650 = tpu.matmul %627, %649, %cst_172 {dimension_numbers = #tpu.dot_dimension_numbers<[1], [0], [0], [1], [0, 0, 1, 1], [], []>} : vector<8x32xf32>, vector<32x8xf32>, vector<8x8xf32> -> vector<8x8xf32>
    %c4_173 = arith.constant 4 : index
    %c0_174 = arith.constant 0 : index
    %c0_175 = arith.constant 0 : index
    %651 = vector.load %arg12[%c4_173, %c0_174, %c0_175] : memref<8x32x8xf32, #tpu.memory_space<vmem>>, vector<1x32x8xf32>
    %652 = vector.shape_cast %651 : vector<1x32x8xf32> to vector<32x8xf32>
    %cst_176 = arith.constant dense<0.000000e+00> : vector<8x8xf32>
    %653 = tpu.matmul %628, %652, %cst_176 {dimension_numbers = #tpu.dot_dimension_numbers<[1], [0], [0], [1], [0, 0, 1, 1], [], []>} : vector<8x32xf32>, vector<32x8xf32>, vector<8x8xf32> -> vector<8x8xf32>
    %c5_177 = arith.constant 5 : index
    %c0_178 = arith.constant 0 : index
    %c0_179 = arith.constant 0 : index
    %654 = vector.load %arg12[%c5_177, %c0_178, %c0_179] : memref<8x32x8xf32, #tpu.memory_space<vmem>>, vector<1x32x8xf32>
    %655 = vector.shape_cast %654 : vector<1x32x8xf32> to vector<32x8xf32>
    %cst_180 = arith.constant dense<0.000000e+00> : vector<8x8xf32>
    %656 = tpu.matmul %629, %655, %cst_180 {dimension_numbers = #tpu.dot_dimension_numbers<[1], [0], [0], [1], [0, 0, 1, 1], [], []>} : vector<8x32xf32>, vector<32x8xf32>, vector<8x8xf32> -> vector<8x8xf32>
    %c6_181 = arith.constant 6 : index
    %c0_182 = arith.constant 0 : index
    %c0_183 = arith.constant 0 : index
    %657 = vector.load %arg12[%c6_181, %c0_182, %c0_183] : memref<8x32x8xf32, #tpu.memory_space<vmem>>, vector<1x32x8xf32>
    %658 = vector.shape_cast %657 : vector<1x32x8xf32> to vector<32x8xf32>
    %cst_184 = arith.constant dense<0.000000e+00> : vector<8x8xf32>
    %659 = tpu.matmul %630, %658, %cst_184 {dimension_numbers = #tpu.dot_dimension_numbers<[1], [0], [0], [1], [0, 0, 1, 1], [], []>} : vector<8x32xf32>, vector<32x8xf32>, vector<8x8xf32> -> vector<8x8xf32>
    %c7_185 = arith.constant 7 : index
    %c0_186 = arith.constant 0 : index
    %c0_187 = arith.constant 0 : index
    %660 = vector.load %arg12[%c7_185, %c0_186, %c0_187] : memref<8x32x8xf32, #tpu.memory_space<vmem>>, vector<1x32x8xf32>
    %661 = vector.shape_cast %660 : vector<1x32x8xf32> to vector<32x8xf32>
    %cst_188 = arith.constant dense<0.000000e+00> : vector<8x8xf32>
    %662 = tpu.matmul %631, %661, %cst_188 {dimension_numbers = #tpu.dot_dimension_numbers<[1], [0], [0], [1], [0, 0, 1, 1], [], []>} : vector<8x32xf32>, vector<32x8xf32>, vector<8x8xf32> -> vector<8x8xf32>
    %663 = vector.broadcast %632 : vector<1x8xf32> to vector<8x8xf32>
    %664 = arith.addf %641, %663 : vector<8x8xf32>
    %665 = vector.extract_strided_slice %633 {offsets = [0, 0], sizes = [1, 8], strides = [1, 1]} : vector<4x8xf32> to vector<1x8xf32>
    %666 = vector.broadcast %665 : vector<1x8xf32> to vector<8x8xf32>
    %667 = arith.mulf %666, %664 : vector<8x8xf32>
    %668 = vector.extract_strided_slice %634 {offsets = [0, 0], sizes = [1, 8], strides = [1, 1]} : vector<4x8xf32> to vector<1x8xf32>
    %669 = vector.broadcast %668 : vector<1x8xf32> to vector<8x8xf32>
    %670 = arith.addf %667, %669 : vector<8x8xf32>
    %671 = arith.negf %670 : vector<8x8xf32>
    %672 = math.exp %671 : vector<8x8xf32>
    %cst_189 = arith.constant 1.000000e+00 : f32
    %673 = vector.broadcast %cst_189 : f32 to vector<8x8xf32>
    %674 = arith.addf %673, %672 : vector<8x8xf32>
    %675 = arith.divf %673, %674 : vector<8x8xf32>
    %676 = arith.mulf %644, %644 : vector<8x8xf32>
    %677 = arith.mulf %647, %647 : vector<8x8xf32>
    %678 = arith.addf %676, %677 : vector<8x8xf32>
    %679 = arith.mulf %650, %650 : vector<8x8xf32>
    %680 = arith.addf %678, %679 : vector<8x8xf32>
    %681 = vector.extract_strided_slice %633 {offsets = [1, 0], sizes = [1, 8], strides = [1, 1]} : vector<4x8xf32> to vector<1x8xf32>
    %682 = vector.broadcast %681 : vector<1x8xf32> to vector<8x8xf32>
    %683 = arith.mulf %682, %680 : vector<8x8xf32>
    %684 = vector.extract_strided_slice %634 {offsets = [1, 0], sizes = [1, 8], strides = [1, 1]} : vector<4x8xf32> to vector<1x8xf32>
    %685 = vector.broadcast %684 : vector<1x8xf32> to vector<8x8xf32>
    %686 = arith.addf %683, %685 : vector<8x8xf32>
    %687 = arith.negf %686 : vector<8x8xf32>
    %688 = math.exp %687 : vector<8x8xf32>
    %cst_190 = arith.constant 1.000000e+00 : f32
    %689 = vector.broadcast %cst_190 : f32 to vector<8x8xf32>
    %690 = arith.addf %689, %688 : vector<8x8xf32>
    %691 = arith.divf %689, %690 : vector<8x8xf32>
    %692 = arith.mulf %653, %653 : vector<8x8xf32>
    %693 = arith.mulf %656, %656 : vector<8x8xf32>
    %694 = arith.addf %692, %693 : vector<8x8xf32>
    %695 = arith.mulf %659, %659 : vector<8x8xf32>
    %696 = arith.addf %694, %695 : vector<8x8xf32>
    %697 = vector.extract_strided_slice %633 {offsets = [2, 0], sizes = [1, 8], strides = [1, 1]} : vector<4x8xf32> to vector<1x8xf32>
    %698 = vector.broadcast %697 : vector<1x8xf32> to vector<8x8xf32>
    %699 = arith.mulf %698, %696 : vector<8x8xf32>
    %700 = vector.extract_strided_slice %634 {offsets = [2, 0], sizes = [1, 8], strides = [1, 1]} : vector<4x8xf32> to vector<1x8xf32>
    %701 = vector.broadcast %700 : vector<1x8xf32> to vector<8x8xf32>
    %702 = arith.addf %699, %701 : vector<8x8xf32>
    %703 = arith.negf %702 : vector<8x8xf32>
    %704 = math.exp %703 : vector<8x8xf32>
    %cst_191 = arith.constant 1.000000e+00 : f32
    %705 = vector.broadcast %cst_191 : f32 to vector<8x8xf32>
    %706 = arith.addf %705, %704 : vector<8x8xf32>
    %707 = arith.divf %705, %706 : vector<8x8xf32>
    %708 = arith.mulf %662, %662 : vector<8x8xf32>
    %709 = vector.extract_strided_slice %633 {offsets = [3, 0], sizes = [1, 8], strides = [1, 1]} : vector<4x8xf32> to vector<1x8xf32>
    %710 = vector.broadcast %709 : vector<1x8xf32> to vector<8x8xf32>
    %711 = arith.mulf %710, %708 : vector<8x8xf32>
    %712 = vector.extract_strided_slice %634 {offsets = [3, 0], sizes = [1, 8], strides = [1, 1]} : vector<4x8xf32> to vector<1x8xf32>
    %713 = vector.broadcast %712 : vector<1x8xf32> to vector<8x8xf32>
    %714 = arith.addf %711, %713 : vector<8x8xf32>
    %715 = arith.negf %714 : vector<8x8xf32>
    %716 = math.exp %715 : vector<8x8xf32>
    %cst_192 = arith.constant 1.000000e+00 : f32
    %717 = vector.broadcast %cst_192 : f32 to vector<8x8xf32>
    %718 = arith.addf %717, %716 : vector<8x8xf32>
    %719 = arith.divf %717, %718 : vector<8x8xf32>
    %720 = arith.mulf %675, %664 : vector<8x8xf32>
    %721 = arith.mulf %691, %644 : vector<8x8xf32>
    %722 = arith.mulf %691, %647 : vector<8x8xf32>
    %723 = arith.mulf %691, %650 : vector<8x8xf32>
    %724 = arith.mulf %707, %653 : vector<8x8xf32>
    %725 = arith.mulf %707, %656 : vector<8x8xf32>
    %726 = arith.mulf %707, %659 : vector<8x8xf32>
    %727 = arith.mulf %719, %662 : vector<8x8xf32>
    %c0_193 = arith.constant 0 : index
    %c0_194 = arith.constant 0 : index
    %c0_195 = arith.constant 0 : index
    %728 = vector.load %arg16[%c0_193, %c0_194, %c0_195] : memref<8x8x8xf32, #tpu.memory_space<vmem>>, vector<1x8x8xf32>
    %729 = vector.shape_cast %728 : vector<1x8x8xf32> to vector<8x8xf32>
    %cst_196 = arith.constant dense<0.000000e+00> : vector<8x8xf32>
    %730 = tpu.matmul %720, %729, %cst_196 {dimension_numbers = #tpu.dot_dimension_numbers<[1], [0], [0], [1], [0, 0, 1, 1], [], []>} : vector<8x8xf32>, vector<8x8xf32>, vector<8x8xf32> -> vector<8x8xf32>
    %c1_197 = arith.constant 1 : index
    %c0_198 = arith.constant 0 : index
    %c0_199 = arith.constant 0 : index
    %731 = vector.load %arg16[%c1_197, %c0_198, %c0_199] : memref<8x8x8xf32, #tpu.memory_space<vmem>>, vector<1x8x8xf32>
    %732 = vector.shape_cast %731 : vector<1x8x8xf32> to vector<8x8xf32>
    %cst_200 = arith.constant dense<0.000000e+00> : vector<8x8xf32>
    %733 = tpu.matmul %721, %732, %cst_200 {dimension_numbers = #tpu.dot_dimension_numbers<[1], [0], [0], [1], [0, 0, 1, 1], [], []>} : vector<8x8xf32>, vector<8x8xf32>, vector<8x8xf32> -> vector<8x8xf32>
    %c2_201 = arith.constant 2 : index
    %c0_202 = arith.constant 0 : index
    %c0_203 = arith.constant 0 : index
    %734 = vector.load %arg16[%c2_201, %c0_202, %c0_203] : memref<8x8x8xf32, #tpu.memory_space<vmem>>, vector<1x8x8xf32>
    %735 = vector.shape_cast %734 : vector<1x8x8xf32> to vector<8x8xf32>
    %cst_204 = arith.constant dense<0.000000e+00> : vector<8x8xf32>
    %736 = tpu.matmul %722, %735, %cst_204 {dimension_numbers = #tpu.dot_dimension_numbers<[1], [0], [0], [1], [0, 0, 1, 1], [], []>} : vector<8x8xf32>, vector<8x8xf32>, vector<8x8xf32> -> vector<8x8xf32>
    %c3_205 = arith.constant 3 : index
    %c0_206 = arith.constant 0 : index
    %c0_207 = arith.constant 0 : index
    %737 = vector.load %arg16[%c3_205, %c0_206, %c0_207] : memref<8x8x8xf32, #tpu.memory_space<vmem>>, vector<1x8x8xf32>
    %738 = vector.shape_cast %737 : vector<1x8x8xf32> to vector<8x8xf32>
    %cst_208 = arith.constant dense<0.000000e+00> : vector<8x8xf32>
    %739 = tpu.matmul %723, %738, %cst_208 {dimension_numbers = #tpu.dot_dimension_numbers<[1], [0], [0], [1], [0, 0, 1, 1], [], []>} : vector<8x8xf32>, vector<8x8xf32>, vector<8x8xf32> -> vector<8x8xf32>
    %c4_209 = arith.constant 4 : index
    %c0_210 = arith.constant 0 : index
    %c0_211 = arith.constant 0 : index
    %740 = vector.load %arg16[%c4_209, %c0_210, %c0_211] : memref<8x8x8xf32, #tpu.memory_space<vmem>>, vector<1x8x8xf32>
    %741 = vector.shape_cast %740 : vector<1x8x8xf32> to vector<8x8xf32>
    %cst_212 = arith.constant dense<0.000000e+00> : vector<8x8xf32>
    %742 = tpu.matmul %724, %741, %cst_212 {dimension_numbers = #tpu.dot_dimension_numbers<[1], [0], [0], [1], [0, 0, 1, 1], [], []>} : vector<8x8xf32>, vector<8x8xf32>, vector<8x8xf32> -> vector<8x8xf32>
    %c5_213 = arith.constant 5 : index
    %c0_214 = arith.constant 0 : index
    %c0_215 = arith.constant 0 : index
    %743 = vector.load %arg16[%c5_213, %c0_214, %c0_215] : memref<8x8x8xf32, #tpu.memory_space<vmem>>, vector<1x8x8xf32>
    %744 = vector.shape_cast %743 : vector<1x8x8xf32> to vector<8x8xf32>
    %cst_216 = arith.constant dense<0.000000e+00> : vector<8x8xf32>
    %745 = tpu.matmul %725, %744, %cst_216 {dimension_numbers = #tpu.dot_dimension_numbers<[1], [0], [0], [1], [0, 0, 1, 1], [], []>} : vector<8x8xf32>, vector<8x8xf32>, vector<8x8xf32> -> vector<8x8xf32>
    %c6_217 = arith.constant 6 : index
    %c0_218 = arith.constant 0 : index
    %c0_219 = arith.constant 0 : index
    %746 = vector.load %arg16[%c6_217, %c0_218, %c0_219] : memref<8x8x8xf32, #tpu.memory_space<vmem>>, vector<1x8x8xf32>
    %747 = vector.shape_cast %746 : vector<1x8x8xf32> to vector<8x8xf32>
    %cst_220 = arith.constant dense<0.000000e+00> : vector<8x8xf32>
    %748 = tpu.matmul %726, %747, %cst_220 {dimension_numbers = #tpu.dot_dimension_numbers<[1], [0], [0], [1], [0, 0, 1, 1], [], []>} : vector<8x8xf32>, vector<8x8xf32>, vector<8x8xf32> -> vector<8x8xf32>
    %c7_221 = arith.constant 7 : index
    %c0_222 = arith.constant 0 : index
    %c0_223 = arith.constant 0 : index
    %749 = vector.load %arg16[%c7_221, %c0_222, %c0_223] : memref<8x8x8xf32, #tpu.memory_space<vmem>>, vector<1x8x8xf32>
    %750 = vector.shape_cast %749 : vector<1x8x8xf32> to vector<8x8xf32>
    %cst_224 = arith.constant dense<0.000000e+00> : vector<8x8xf32>
    %751 = tpu.matmul %727, %750, %cst_224 {dimension_numbers = #tpu.dot_dimension_numbers<[1], [0], [0], [1], [0, 0, 1, 1], [], []>} : vector<8x8xf32>, vector<8x8xf32>, vector<8x8xf32> -> vector<8x8xf32>
    %752 = arith.mulf %730, %730 : vector<8x8xf32>
    %753 = arith.mulf %752, %752 : vector<8x8xf32>
    %cst_225 = arith.constant 1.000000e-16 : f32
    %754 = vector.broadcast %cst_225 : f32 to vector<8x8xf32>
    %755 = arith.addf %753, %754 : vector<8x8xf32>
    %756 = math.sqrt %755 : vector<8x8xf32>
    %757 = math.sqrt %756 : vector<8x8xf32>
    %758 = vector.extract_strided_slice %635 {offsets = [0, 0], sizes = [1, 8], strides = [1, 1]} : vector<4x8xf32> to vector<1x8xf32>
    %759 = arith.negf %758 : vector<1x8xf32>
    %760 = math.exp %759 : vector<1x8xf32>
    %cst_226 = arith.constant 1.000000e+00 : f32
    %761 = vector.broadcast %cst_226 : f32 to vector<1x8xf32>
    %762 = arith.addf %761, %760 : vector<1x8xf32>
    %763 = arith.divf %761, %762 : vector<1x8xf32>
    %cst_227 = arith.constant 1.000000e+00 : f32
    %764 = vector.broadcast %cst_227 : f32 to vector<8x8xf32>
    %765 = arith.subf %757, %764 : vector<8x8xf32>
    %766 = vector.broadcast %763 : vector<1x8xf32> to vector<8x8xf32>
    %767 = arith.mulf %766, %765 : vector<8x8xf32>
    %cst_228 = arith.constant 1.000000e+00 : f32
    %768 = vector.broadcast %cst_228 : f32 to vector<8x8xf32>
    %769 = arith.addf %767, %768 : vector<8x8xf32>
    %cst_229 = arith.constant 9.99999997E-7 : f32
    %770 = vector.broadcast %cst_229 : f32 to vector<8x8xf32>
    %771 = arith.addf %769, %770 : vector<8x8xf32>
    %cst_230 = arith.constant 1.000000e+00 : f32
    %772 = vector.broadcast %cst_230 : f32 to vector<8x8xf32>
    %773 = arith.divf %772, %771 : vector<8x8xf32>
    %774 = arith.mulf %730, %773 : vector<8x8xf32>
    %775 = arith.mulf %733, %733 : vector<8x8xf32>
    %776 = arith.mulf %736, %736 : vector<8x8xf32>
    %777 = arith.addf %775, %776 : vector<8x8xf32>
    %778 = arith.mulf %739, %739 : vector<8x8xf32>
    %779 = arith.addf %777, %778 : vector<8x8xf32>
    %780 = arith.mulf %779, %779 : vector<8x8xf32>
    %cst_231 = arith.constant 1.000000e-16 : f32
    %781 = vector.broadcast %cst_231 : f32 to vector<8x8xf32>
    %782 = arith.addf %780, %781 : vector<8x8xf32>
    %783 = math.sqrt %782 : vector<8x8xf32>
    %784 = math.sqrt %783 : vector<8x8xf32>
    %785 = vector.extract_strided_slice %635 {offsets = [1, 0], sizes = [1, 8], strides = [1, 1]} : vector<4x8xf32> to vector<1x8xf32>
    %786 = arith.negf %785 : vector<1x8xf32>
    %787 = math.exp %786 : vector<1x8xf32>
    %cst_232 = arith.constant 1.000000e+00 : f32
    %788 = vector.broadcast %cst_232 : f32 to vector<1x8xf32>
    %789 = arith.addf %788, %787 : vector<1x8xf32>
    %790 = arith.divf %788, %789 : vector<1x8xf32>
    %cst_233 = arith.constant 1.000000e+00 : f32
    %791 = vector.broadcast %cst_233 : f32 to vector<8x8xf32>
    %792 = arith.subf %784, %791 : vector<8x8xf32>
    %793 = vector.broadcast %790 : vector<1x8xf32> to vector<8x8xf32>
    %794 = arith.mulf %793, %792 : vector<8x8xf32>
    %cst_234 = arith.constant 1.000000e+00 : f32
    %795 = vector.broadcast %cst_234 : f32 to vector<8x8xf32>
    %796 = arith.addf %794, %795 : vector<8x8xf32>
    %cst_235 = arith.constant 9.99999997E-7 : f32
    %797 = vector.broadcast %cst_235 : f32 to vector<8x8xf32>
    %798 = arith.addf %796, %797 : vector<8x8xf32>
    %cst_236 = arith.constant 1.000000e+00 : f32
    %799 = vector.broadcast %cst_236 : f32 to vector<8x8xf32>
    %800 = arith.divf %799, %798 : vector<8x8xf32>
    %801 = arith.mulf %733, %800 : vector<8x8xf32>
    %802 = arith.mulf %736, %800 : vector<8x8xf32>
    %803 = arith.mulf %739, %800 : vector<8x8xf32>
    %804 = arith.mulf %742, %742 : vector<8x8xf32>
    %805 = arith.mulf %745, %745 : vector<8x8xf32>
    %806 = arith.addf %804, %805 : vector<8x8xf32>
    %807 = arith.mulf %748, %748 : vector<8x8xf32>
    %808 = arith.addf %806, %807 : vector<8x8xf32>
    %809 = arith.mulf %808, %808 : vector<8x8xf32>
    %cst_237 = arith.constant 1.000000e-16 : f32
    %810 = vector.broadcast %cst_237 : f32 to vector<8x8xf32>
    %811 = arith.addf %809, %810 : vector<8x8xf32>
    %812 = math.sqrt %811 : vector<8x8xf32>
    %813 = math.sqrt %812 : vector<8x8xf32>
    %814 = vector.extract_strided_slice %635 {offsets = [2, 0], sizes = [1, 8], strides = [1, 1]} : vector<4x8xf32> to vector<1x8xf32>
    %815 = arith.negf %814 : vector<1x8xf32>
    %816 = math.exp %815 : vector<1x8xf32>
    %cst_238 = arith.constant 1.000000e+00 : f32
    %817 = vector.broadcast %cst_238 : f32 to vector<1x8xf32>
    %818 = arith.addf %817, %816 : vector<1x8xf32>
    %819 = arith.divf %817, %818 : vector<1x8xf32>
    %cst_239 = arith.constant 1.000000e+00 : f32
    %820 = vector.broadcast %cst_239 : f32 to vector<8x8xf32>
    %821 = arith.subf %813, %820 : vector<8x8xf32>
    %822 = vector.broadcast %819 : vector<1x8xf32> to vector<8x8xf32>
    %823 = arith.mulf %822, %821 : vector<8x8xf32>
    %cst_240 = arith.constant 1.000000e+00 : f32
    %824 = vector.broadcast %cst_240 : f32 to vector<8x8xf32>
    %825 = arith.addf %823, %824 : vector<8x8xf32>
    %cst_241 = arith.constant 9.99999997E-7 : f32
    %826 = vector.broadcast %cst_241 : f32 to vector<8x8xf32>
    %827 = arith.addf %825, %826 : vector<8x8xf32>
    %cst_242 = arith.constant 1.000000e+00 : f32
    %828 = vector.broadcast %cst_242 : f32 to vector<8x8xf32>
    %829 = arith.divf %828, %827 : vector<8x8xf32>
    %830 = arith.mulf %742, %829 : vector<8x8xf32>
    %831 = arith.mulf %745, %829 : vector<8x8xf32>
    %832 = arith.mulf %748, %829 : vector<8x8xf32>
    %833 = arith.mulf %751, %751 : vector<8x8xf32>
    %834 = arith.mulf %833, %833 : vector<8x8xf32>
    %cst_243 = arith.constant 1.000000e-16 : f32
    %835 = vector.broadcast %cst_243 : f32 to vector<8x8xf32>
    %836 = arith.addf %834, %835 : vector<8x8xf32>
    %837 = math.sqrt %836 : vector<8x8xf32>
    %838 = math.sqrt %837 : vector<8x8xf32>
    %839 = vector.extract_strided_slice %635 {offsets = [3, 0], sizes = [1, 8], strides = [1, 1]} : vector<4x8xf32> to vector<1x8xf32>
    %840 = arith.negf %839 : vector<1x8xf32>
    %841 = math.exp %840 : vector<1x8xf32>
    %cst_244 = arith.constant 1.000000e+00 : f32
    %842 = vector.broadcast %cst_244 : f32 to vector<1x8xf32>
    %843 = arith.addf %842, %841 : vector<1x8xf32>
    %844 = arith.divf %842, %843 : vector<1x8xf32>
    %cst_245 = arith.constant 1.000000e+00 : f32
    %845 = vector.broadcast %cst_245 : f32 to vector<8x8xf32>
    %846 = arith.subf %838, %845 : vector<8x8xf32>
    %847 = vector.broadcast %844 : vector<1x8xf32> to vector<8x8xf32>
    %848 = arith.mulf %847, %846 : vector<8x8xf32>
    %cst_246 = arith.constant 1.000000e+00 : f32
    %849 = vector.broadcast %cst_246 : f32 to vector<8x8xf32>
    %850 = arith.addf %848, %849 : vector<8x8xf32>
    %cst_247 = arith.constant 9.99999997E-7 : f32
    %851 = vector.broadcast %cst_247 : f32 to vector<8x8xf32>
    %852 = arith.addf %850, %851 : vector<8x8xf32>
    %cst_248 = arith.constant 1.000000e+00 : f32
    %853 = vector.broadcast %cst_248 : f32 to vector<8x8xf32>
    %854 = arith.divf %853, %852 : vector<8x8xf32>
    %855 = arith.mulf %751, %854 : vector<8x8xf32>
    %c0_249 = arith.constant 0 : index
    %c0_250 = arith.constant 0 : index
    %c0_251 = arith.constant 0 : index
    %856 = vector.load %arg18[%c0_249, %c0_250, %c0_251] : memref<8x8x8xf32, #tpu.memory_space<vmem>>, vector<1x8x8xf32>
    %857 = vector.shape_cast %856 : vector<1x8x8xf32> to vector<8x8xf32>
    %cst_252 = arith.constant dense<0.000000e+00> : vector<8x8xf32>
    %858 = tpu.matmul %720, %857, %cst_252 {dimension_numbers = #tpu.dot_dimension_numbers<[1], [0], [0], [1], [0, 0, 1, 1], [], []>} : vector<8x8xf32>, vector<8x8xf32>, vector<8x8xf32> -> vector<8x8xf32>
    %c1_253 = arith.constant 1 : index
    %c0_254 = arith.constant 0 : index
    %c0_255 = arith.constant 0 : index
    %859 = vector.load %arg18[%c1_253, %c0_254, %c0_255] : memref<8x8x8xf32, #tpu.memory_space<vmem>>, vector<1x8x8xf32>
    %860 = vector.shape_cast %859 : vector<1x8x8xf32> to vector<8x8xf32>
    %cst_256 = arith.constant dense<0.000000e+00> : vector<8x8xf32>
    %861 = tpu.matmul %721, %860, %cst_256 {dimension_numbers = #tpu.dot_dimension_numbers<[1], [0], [0], [1], [0, 0, 1, 1], [], []>} : vector<8x8xf32>, vector<8x8xf32>, vector<8x8xf32> -> vector<8x8xf32>
    %c2_257 = arith.constant 2 : index
    %c0_258 = arith.constant 0 : index
    %c0_259 = arith.constant 0 : index
    %862 = vector.load %arg18[%c2_257, %c0_258, %c0_259] : memref<8x8x8xf32, #tpu.memory_space<vmem>>, vector<1x8x8xf32>
    %863 = vector.shape_cast %862 : vector<1x8x8xf32> to vector<8x8xf32>
    %cst_260 = arith.constant dense<0.000000e+00> : vector<8x8xf32>
    %864 = tpu.matmul %722, %863, %cst_260 {dimension_numbers = #tpu.dot_dimension_numbers<[1], [0], [0], [1], [0, 0, 1, 1], [], []>} : vector<8x8xf32>, vector<8x8xf32>, vector<8x8xf32> -> vector<8x8xf32>
    %c3_261 = arith.constant 3 : index
    %c0_262 = arith.constant 0 : index
    %c0_263 = arith.constant 0 : index
    %865 = vector.load %arg18[%c3_261, %c0_262, %c0_263] : memref<8x8x8xf32, #tpu.memory_space<vmem>>, vector<1x8x8xf32>
    %866 = vector.shape_cast %865 : vector<1x8x8xf32> to vector<8x8xf32>
    %cst_264 = arith.constant dense<0.000000e+00> : vector<8x8xf32>
    %867 = tpu.matmul %723, %866, %cst_264 {dimension_numbers = #tpu.dot_dimension_numbers<[1], [0], [0], [1], [0, 0, 1, 1], [], []>} : vector<8x8xf32>, vector<8x8xf32>, vector<8x8xf32> -> vector<8x8xf32>
    %c4_265 = arith.constant 4 : index
    %c0_266 = arith.constant 0 : index
    %c0_267 = arith.constant 0 : index
    %868 = vector.load %arg18[%c4_265, %c0_266, %c0_267] : memref<8x8x8xf32, #tpu.memory_space<vmem>>, vector<1x8x8xf32>
    %869 = vector.shape_cast %868 : vector<1x8x8xf32> to vector<8x8xf32>
    %cst_268 = arith.constant dense<0.000000e+00> : vector<8x8xf32>
    %870 = tpu.matmul %724, %869, %cst_268 {dimension_numbers = #tpu.dot_dimension_numbers<[1], [0], [0], [1], [0, 0, 1, 1], [], []>} : vector<8x8xf32>, vector<8x8xf32>, vector<8x8xf32> -> vector<8x8xf32>
    %c5_269 = arith.constant 5 : index
    %c0_270 = arith.constant 0 : index
    %c0_271 = arith.constant 0 : index
    %871 = vector.load %arg18[%c5_269, %c0_270, %c0_271] : memref<8x8x8xf32, #tpu.memory_space<vmem>>, vector<1x8x8xf32>
    %872 = vector.shape_cast %871 : vector<1x8x8xf32> to vector<8x8xf32>
    %cst_272 = arith.constant dense<0.000000e+00> : vector<8x8xf32>
    %873 = tpu.matmul %725, %872, %cst_272 {dimension_numbers = #tpu.dot_dimension_numbers<[1], [0], [0], [1], [0, 0, 1, 1], [], []>} : vector<8x8xf32>, vector<8x8xf32>, vector<8x8xf32> -> vector<8x8xf32>
    %c6_273 = arith.constant 6 : index
    %c0_274 = arith.constant 0 : index
    %c0_275 = arith.constant 0 : index
    %874 = vector.load %arg18[%c6_273, %c0_274, %c0_275] : memref<8x8x8xf32, #tpu.memory_space<vmem>>, vector<1x8x8xf32>
    %875 = vector.shape_cast %874 : vector<1x8x8xf32> to vector<8x8xf32>
    %cst_276 = arith.constant dense<0.000000e+00> : vector<8x8xf32>
    %876 = tpu.matmul %726, %875, %cst_276 {dimension_numbers = #tpu.dot_dimension_numbers<[1], [0], [0], [1], [0, 0, 1, 1], [], []>} : vector<8x8xf32>, vector<8x8xf32>, vector<8x8xf32> -> vector<8x8xf32>
    %c7_277 = arith.constant 7 : index
    %c0_278 = arith.constant 0 : index
    %c0_279 = arith.constant 0 : index
    %877 = vector.load %arg18[%c7_277, %c0_278, %c0_279] : memref<8x8x8xf32, #tpu.memory_space<vmem>>, vector<1x8x8xf32>
    %878 = vector.shape_cast %877 : vector<1x8x8xf32> to vector<8x8xf32>
    %cst_280 = arith.constant dense<0.000000e+00> : vector<8x8xf32>
    %879 = tpu.matmul %727, %878, %cst_280 {dimension_numbers = #tpu.dot_dimension_numbers<[1], [0], [0], [1], [0, 0, 1, 1], [], []>} : vector<8x8xf32>, vector<8x8xf32>, vector<8x8xf32> -> vector<8x8xf32>
    %880 = vector.broadcast %636 : vector<1x8xf32> to vector<8x8xf32>
    %881 = arith.addf %858, %880 : vector<8x8xf32>
    %882 = vector.extract_strided_slice %637 {offsets = [0, 0], sizes = [1, 8], strides = [1, 1]} : vector<64x8xf32> to vector<1x8xf32>
    %883 = arith.mulf %720, %774 : vector<8x8xf32>
    %884 = vector.broadcast %882 : vector<1x8xf32> to vector<8x8xf32>
    %885 = arith.mulf %884, %883 : vector<8x8xf32>
    %886 = vector.extract_strided_slice %637 {offsets = [1, 0], sizes = [1, 8], strides = [1, 1]} : vector<64x8xf32> to vector<1x8xf32>
    %887 = arith.mulf %720, %801 : vector<8x8xf32>
    %888 = vector.broadcast %886 : vector<1x8xf32> to vector<8x8xf32>
    %889 = arith.mulf %888, %887 : vector<8x8xf32>
    %890 = vector.extract_strided_slice %637 {offsets = [2, 0], sizes = [1, 8], strides = [1, 1]} : vector<64x8xf32> to vector<1x8xf32>
    %891 = arith.mulf %720, %802 : vector<8x8xf32>
    %892 = vector.broadcast %890 : vector<1x8xf32> to vector<8x8xf32>
    %893 = arith.mulf %892, %891 : vector<8x8xf32>
    %894 = vector.extract_strided_slice %637 {offsets = [3, 0], sizes = [1, 8], strides = [1, 1]} : vector<64x8xf32> to vector<1x8xf32>
    %895 = arith.mulf %720, %803 : vector<8x8xf32>
    %896 = vector.broadcast %894 : vector<1x8xf32> to vector<8x8xf32>
    %897 = arith.mulf %896, %895 : vector<8x8xf32>
    %898 = vector.extract_strided_slice %637 {offsets = [4, 0], sizes = [1, 8], strides = [1, 1]} : vector<64x8xf32> to vector<1x8xf32>
    %899 = arith.mulf %720, %830 : vector<8x8xf32>
    %900 = vector.broadcast %898 : vector<1x8xf32> to vector<8x8xf32>
    %901 = arith.mulf %900, %899 : vector<8x8xf32>
    %902 = vector.extract_strided_slice %637 {offsets = [5, 0], sizes = [1, 8], strides = [1, 1]} : vector<64x8xf32> to vector<1x8xf32>
    %903 = arith.mulf %720, %831 : vector<8x8xf32>
    %904 = vector.broadcast %902 : vector<1x8xf32> to vector<8x8xf32>
    %905 = arith.mulf %904, %903 : vector<8x8xf32>
    %906 = vector.extract_strided_slice %637 {offsets = [6, 0], sizes = [1, 8], strides = [1, 1]} : vector<64x8xf32> to vector<1x8xf32>
    %907 = arith.mulf %720, %832 : vector<8x8xf32>
    %908 = vector.broadcast %906 : vector<1x8xf32> to vector<8x8xf32>
    %909 = arith.mulf %908, %907 : vector<8x8xf32>
    %910 = vector.extract_strided_slice %637 {offsets = [7, 0], sizes = [1, 8], strides = [1, 1]} : vector<64x8xf32> to vector<1x8xf32>
    %911 = arith.mulf %720, %855 : vector<8x8xf32>
    %912 = vector.broadcast %910 : vector<1x8xf32> to vector<8x8xf32>
    %913 = arith.mulf %912, %911 : vector<8x8xf32>
    %914 = vector.extract_strided_slice %637 {offsets = [8, 0], sizes = [1, 8], strides = [1, 1]} : vector<64x8xf32> to vector<1x8xf32>
    %915 = arith.mulf %721, %801 : vector<8x8xf32>
    %916 = vector.broadcast %914 : vector<1x8xf32> to vector<8x8xf32>
    %917 = arith.mulf %916, %915 : vector<8x8xf32>
    %918 = arith.addf %885, %917 : vector<8x8xf32>
    %919 = vector.extract_strided_slice %637 {offsets = [9, 0], sizes = [1, 8], strides = [1, 1]} : vector<64x8xf32> to vector<1x8xf32>
    %920 = arith.mulf %721, %774 : vector<8x8xf32>
    %921 = vector.broadcast %919 : vector<1x8xf32> to vector<8x8xf32>
    %922 = arith.mulf %921, %920 : vector<8x8xf32>
    %923 = arith.addf %889, %922 : vector<8x8xf32>
    %924 = vector.extract_strided_slice %637 {offsets = [10, 0], sizes = [1, 8], strides = [1, 1]} : vector<64x8xf32> to vector<1x8xf32>
    %925 = arith.mulf %721, %830 : vector<8x8xf32>
    %926 = vector.broadcast %924 : vector<1x8xf32> to vector<8x8xf32>
    %927 = arith.mulf %926, %925 : vector<8x8xf32>
    %928 = arith.addf %893, %927 : vector<8x8xf32>
    %929 = vector.extract_strided_slice %637 {offsets = [11, 0], sizes = [1, 8], strides = [1, 1]} : vector<64x8xf32> to vector<1x8xf32>
    %930 = arith.mulf %721, %831 : vector<8x8xf32>
    %931 = vector.broadcast %929 : vector<1x8xf32> to vector<8x8xf32>
    %932 = arith.mulf %931, %930 : vector<8x8xf32>
    %933 = arith.addf %897, %932 : vector<8x8xf32>
    %934 = vector.extract_strided_slice %637 {offsets = [12, 0], sizes = [1, 8], strides = [1, 1]} : vector<64x8xf32> to vector<1x8xf32>
    %935 = arith.mulf %721, %802 : vector<8x8xf32>
    %936 = vector.broadcast %934 : vector<1x8xf32> to vector<8x8xf32>
    %937 = arith.mulf %936, %935 : vector<8x8xf32>
    %938 = arith.addf %901, %937 : vector<8x8xf32>
    %939 = vector.extract_strided_slice %637 {offsets = [13, 0], sizes = [1, 8], strides = [1, 1]} : vector<64x8xf32> to vector<1x8xf32>
    %940 = arith.mulf %721, %803 : vector<8x8xf32>
    %941 = vector.broadcast %939 : vector<1x8xf32> to vector<8x8xf32>
    %942 = arith.mulf %941, %940 : vector<8x8xf32>
    %943 = arith.addf %905, %942 : vector<8x8xf32>
    %944 = vector.extract_strided_slice %637 {offsets = [14, 0], sizes = [1, 8], strides = [1, 1]} : vector<64x8xf32> to vector<1x8xf32>
    %945 = arith.mulf %721, %855 : vector<8x8xf32>
    %946 = vector.broadcast %944 : vector<1x8xf32> to vector<8x8xf32>
    %947 = arith.mulf %946, %945 : vector<8x8xf32>
    %948 = arith.addf %909, %947 : vector<8x8xf32>
    %949 = vector.extract_strided_slice %637 {offsets = [15, 0], sizes = [1, 8], strides = [1, 1]} : vector<64x8xf32> to vector<1x8xf32>
    %950 = arith.mulf %721, %832 : vector<8x8xf32>
    %951 = vector.broadcast %949 : vector<1x8xf32> to vector<8x8xf32>
    %952 = arith.mulf %951, %950 : vector<8x8xf32>
    %953 = arith.addf %913, %952 : vector<8x8xf32>
    %954 = vector.extract_strided_slice %637 {offsets = [16, 0], sizes = [1, 8], strides = [1, 1]} : vector<64x8xf32> to vector<1x8xf32>
    %955 = arith.mulf %722, %802 : vector<8x8xf32>
    %956 = vector.broadcast %954 : vector<1x8xf32> to vector<8x8xf32>
    %957 = arith.mulf %956, %955 : vector<8x8xf32>
    %958 = arith.addf %918, %957 : vector<8x8xf32>
    %959 = vector.extract_strided_slice %637 {offsets = [17, 0], sizes = [1, 8], strides = [1, 1]} : vector<64x8xf32> to vector<1x8xf32>
    %960 = arith.mulf %722, %830 : vector<8x8xf32>
    %961 = vector.broadcast %959 : vector<1x8xf32> to vector<8x8xf32>
    %962 = arith.mulf %961, %960 : vector<8x8xf32>
    %963 = arith.addf %923, %962 : vector<8x8xf32>
    %964 = vector.extract_strided_slice %637 {offsets = [18, 0], sizes = [1, 8], strides = [1, 1]} : vector<64x8xf32> to vector<1x8xf32>
    %965 = arith.mulf %722, %774 : vector<8x8xf32>
    %966 = vector.broadcast %964 : vector<1x8xf32> to vector<8x8xf32>
    %967 = arith.mulf %966, %965 : vector<8x8xf32>
    %968 = arith.addf %928, %967 : vector<8x8xf32>
    %969 = vector.extract_strided_slice %637 {offsets = [19, 0], sizes = [1, 8], strides = [1, 1]} : vector<64x8xf32> to vector<1x8xf32>
    %970 = arith.mulf %722, %832 : vector<8x8xf32>
    %971 = vector.broadcast %969 : vector<1x8xf32> to vector<8x8xf32>
    %972 = arith.mulf %971, %970 : vector<8x8xf32>
    %973 = arith.addf %933, %972 : vector<8x8xf32>
    %974 = vector.extract_strided_slice %637 {offsets = [20, 0], sizes = [1, 8], strides = [1, 1]} : vector<64x8xf32> to vector<1x8xf32>
    %975 = arith.mulf %722, %801 : vector<8x8xf32>
    %976 = vector.broadcast %974 : vector<1x8xf32> to vector<8x8xf32>
    %977 = arith.mulf %976, %975 : vector<8x8xf32>
    %978 = arith.addf %938, %977 : vector<8x8xf32>
    %979 = vector.extract_strided_slice %637 {offsets = [21, 0], sizes = [1, 8], strides = [1, 1]} : vector<64x8xf32> to vector<1x8xf32>
    %980 = arith.mulf %722, %855 : vector<8x8xf32>
    %981 = vector.broadcast %979 : vector<1x8xf32> to vector<8x8xf32>
    %982 = arith.mulf %981, %980 : vector<8x8xf32>
    %983 = arith.addf %943, %982 : vector<8x8xf32>
    %984 = vector.extract_strided_slice %637 {offsets = [22, 0], sizes = [1, 8], strides = [1, 1]} : vector<64x8xf32> to vector<1x8xf32>
    %985 = arith.mulf %722, %803 : vector<8x8xf32>
    %986 = vector.broadcast %984 : vector<1x8xf32> to vector<8x8xf32>
    %987 = arith.mulf %986, %985 : vector<8x8xf32>
    %988 = arith.addf %948, %987 : vector<8x8xf32>
    %989 = vector.extract_strided_slice %637 {offsets = [23, 0], sizes = [1, 8], strides = [1, 1]} : vector<64x8xf32> to vector<1x8xf32>
    %990 = arith.mulf %722, %831 : vector<8x8xf32>
    %991 = vector.broadcast %989 : vector<1x8xf32> to vector<8x8xf32>
    %992 = arith.mulf %991, %990 : vector<8x8xf32>
    %993 = arith.addf %953, %992 : vector<8x8xf32>
    %994 = vector.extract_strided_slice %637 {offsets = [24, 0], sizes = [1, 8], strides = [1, 1]} : vector<64x8xf32> to vector<1x8xf32>
    %995 = arith.mulf %723, %803 : vector<8x8xf32>
    %996 = vector.broadcast %994 : vector<1x8xf32> to vector<8x8xf32>
    %997 = arith.mulf %996, %995 : vector<8x8xf32>
    %998 = arith.addf %958, %997 : vector<8x8xf32>
    %999 = vector.extract_strided_slice %637 {offsets = [25, 0], sizes = [1, 8], strides = [1, 1]} : vector<64x8xf32> to vector<1x8xf32>
    %1000 = arith.mulf %723, %831 : vector<8x8xf32>
    %1001 = vector.broadcast %999 : vector<1x8xf32> to vector<8x8xf32>
    %1002 = arith.mulf %1001, %1000 : vector<8x8xf32>
    %1003 = arith.addf %963, %1002 : vector<8x8xf32>
    %1004 = vector.extract_strided_slice %637 {offsets = [26, 0], sizes = [1, 8], strides = [1, 1]} : vector<64x8xf32> to vector<1x8xf32>
    %1005 = arith.mulf %723, %832 : vector<8x8xf32>
    %1006 = vector.broadcast %1004 : vector<1x8xf32> to vector<8x8xf32>
    %1007 = arith.mulf %1006, %1005 : vector<8x8xf32>
    %1008 = arith.addf %968, %1007 : vector<8x8xf32>
    %1009 = vector.extract_strided_slice %637 {offsets = [27, 0], sizes = [1, 8], strides = [1, 1]} : vector<64x8xf32> to vector<1x8xf32>
    %1010 = arith.mulf %723, %774 : vector<8x8xf32>
    %1011 = vector.broadcast %1009 : vector<1x8xf32> to vector<8x8xf32>
    %1012 = arith.mulf %1011, %1010 : vector<8x8xf32>
    %1013 = arith.addf %973, %1012 : vector<8x8xf32>
    %1014 = vector.extract_strided_slice %637 {offsets = [28, 0], sizes = [1, 8], strides = [1, 1]} : vector<64x8xf32> to vector<1x8xf32>
    %1015 = arith.mulf %723, %855 : vector<8x8xf32>
    %1016 = vector.broadcast %1014 : vector<1x8xf32> to vector<8x8xf32>
    %1017 = arith.mulf %1016, %1015 : vector<8x8xf32>
    %1018 = arith.addf %978, %1017 : vector<8x8xf32>
    %1019 = vector.extract_strided_slice %637 {offsets = [29, 0], sizes = [1, 8], strides = [1, 1]} : vector<64x8xf32> to vector<1x8xf32>
    %1020 = arith.mulf %723, %801 : vector<8x8xf32>
    %1021 = vector.broadcast %1019 : vector<1x8xf32> to vector<8x8xf32>
    %1022 = arith.mulf %1021, %1020 : vector<8x8xf32>
    %1023 = arith.addf %983, %1022 : vector<8x8xf32>
    %1024 = vector.extract_strided_slice %637 {offsets = [30, 0], sizes = [1, 8], strides = [1, 1]} : vector<64x8xf32> to vector<1x8xf32>
    %1025 = arith.mulf %723, %802 : vector<8x8xf32>
    %1026 = vector.broadcast %1024 : vector<1x8xf32> to vector<8x8xf32>
    %1027 = arith.mulf %1026, %1025 : vector<8x8xf32>
    %1028 = arith.addf %988, %1027 : vector<8x8xf32>
    %1029 = vector.extract_strided_slice %637 {offsets = [31, 0], sizes = [1, 8], strides = [1, 1]} : vector<64x8xf32> to vector<1x8xf32>
    %1030 = arith.mulf %723, %830 : vector<8x8xf32>
    %1031 = vector.broadcast %1029 : vector<1x8xf32> to vector<8x8xf32>
    %1032 = arith.mulf %1031, %1030 : vector<8x8xf32>
    %1033 = arith.addf %993, %1032 : vector<8x8xf32>
    %1034 = vector.extract_strided_slice %637 {offsets = [32, 0], sizes = [1, 8], strides = [1, 1]} : vector<64x8xf32> to vector<1x8xf32>
    %1035 = arith.mulf %724, %830 : vector<8x8xf32>
    %1036 = vector.broadcast %1034 : vector<1x8xf32> to vector<8x8xf32>
    %1037 = arith.mulf %1036, %1035 : vector<8x8xf32>
    %1038 = arith.addf %998, %1037 : vector<8x8xf32>
    %1039 = vector.extract_strided_slice %637 {offsets = [33, 0], sizes = [1, 8], strides = [1, 1]} : vector<64x8xf32> to vector<1x8xf32>
    %1040 = arith.mulf %724, %802 : vector<8x8xf32>
    %1041 = vector.broadcast %1039 : vector<1x8xf32> to vector<8x8xf32>
    %1042 = arith.mulf %1041, %1040 : vector<8x8xf32>
    %1043 = arith.addf %1003, %1042 : vector<8x8xf32>
    %1044 = vector.extract_strided_slice %637 {offsets = [34, 0], sizes = [1, 8], strides = [1, 1]} : vector<64x8xf32> to vector<1x8xf32>
    %1045 = arith.mulf %724, %801 : vector<8x8xf32>
    %1046 = vector.broadcast %1044 : vector<1x8xf32> to vector<8x8xf32>
    %1047 = arith.mulf %1046, %1045 : vector<8x8xf32>
    %1048 = arith.addf %1008, %1047 : vector<8x8xf32>
    %1049 = vector.extract_strided_slice %637 {offsets = [35, 0], sizes = [1, 8], strides = [1, 1]} : vector<64x8xf32> to vector<1x8xf32>
    %1050 = arith.mulf %724, %855 : vector<8x8xf32>
    %1051 = vector.broadcast %1049 : vector<1x8xf32> to vector<8x8xf32>
    %1052 = arith.mulf %1051, %1050 : vector<8x8xf32>
    %1053 = arith.addf %1013, %1052 : vector<8x8xf32>
    %1054 = vector.extract_strided_slice %637 {offsets = [36, 0], sizes = [1, 8], strides = [1, 1]} : vector<64x8xf32> to vector<1x8xf32>
    %1055 = arith.mulf %724, %774 : vector<8x8xf32>
    %1056 = vector.broadcast %1054 : vector<1x8xf32> to vector<8x8xf32>
    %1057 = arith.mulf %1056, %1055 : vector<8x8xf32>
    %1058 = arith.addf %1018, %1057 : vector<8x8xf32>
    %1059 = vector.extract_strided_slice %637 {offsets = [37, 0], sizes = [1, 8], strides = [1, 1]} : vector<64x8xf32> to vector<1x8xf32>
    %1060 = arith.mulf %724, %832 : vector<8x8xf32>
    %1061 = vector.broadcast %1059 : vector<1x8xf32> to vector<8x8xf32>
    %1062 = arith.mulf %1061, %1060 : vector<8x8xf32>
    %1063 = arith.addf %1023, %1062 : vector<8x8xf32>
    %1064 = vector.extract_strided_slice %637 {offsets = [38, 0], sizes = [1, 8], strides = [1, 1]} : vector<64x8xf32> to vector<1x8xf32>
    %1065 = arith.mulf %724, %831 : vector<8x8xf32>
    %1066 = vector.broadcast %1064 : vector<1x8xf32> to vector<8x8xf32>
    %1067 = arith.mulf %1066, %1065 : vector<8x8xf32>
    %1068 = arith.addf %1028, %1067 : vector<8x8xf32>
    %1069 = vector.extract_strided_slice %637 {offsets = [39, 0], sizes = [1, 8], strides = [1, 1]} : vector<64x8xf32> to vector<1x8xf32>
    %1070 = arith.mulf %724, %803 : vector<8x8xf32>
    %1071 = vector.broadcast %1069 : vector<1x8xf32> to vector<8x8xf32>
    %1072 = arith.mulf %1071, %1070 : vector<8x8xf32>
    %1073 = arith.addf %1033, %1072 : vector<8x8xf32>
    %1074 = vector.extract_strided_slice %637 {offsets = [40, 0], sizes = [1, 8], strides = [1, 1]} : vector<64x8xf32> to vector<1x8xf32>
    %1075 = arith.mulf %725, %831 : vector<8x8xf32>
    %1076 = vector.broadcast %1074 : vector<1x8xf32> to vector<8x8xf32>
    %1077 = arith.mulf %1076, %1075 : vector<8x8xf32>
    %1078 = arith.addf %1038, %1077 : vector<8x8xf32>
    %1079 = vector.extract_strided_slice %637 {offsets = [41, 0], sizes = [1, 8], strides = [1, 1]} : vector<64x8xf32> to vector<1x8xf32>
    %1080 = arith.mulf %725, %803 : vector<8x8xf32>
    %1081 = vector.broadcast %1079 : vector<1x8xf32> to vector<8x8xf32>
    %1082 = arith.mulf %1081, %1080 : vector<8x8xf32>
    %1083 = arith.addf %1043, %1082 : vector<8x8xf32>
    %1084 = vector.extract_strided_slice %637 {offsets = [42, 0], sizes = [1, 8], strides = [1, 1]} : vector<64x8xf32> to vector<1x8xf32>
    %1085 = arith.mulf %725, %855 : vector<8x8xf32>
    %1086 = vector.broadcast %1084 : vector<1x8xf32> to vector<8x8xf32>
    %1087 = arith.mulf %1086, %1085 : vector<8x8xf32>
    %1088 = arith.addf %1048, %1087 : vector<8x8xf32>
    %1089 = vector.extract_strided_slice %637 {offsets = [43, 0], sizes = [1, 8], strides = [1, 1]} : vector<64x8xf32> to vector<1x8xf32>
    %1090 = arith.mulf %725, %801 : vector<8x8xf32>
    %1091 = vector.broadcast %1089 : vector<1x8xf32> to vector<8x8xf32>
    %1092 = arith.mulf %1091, %1090 : vector<8x8xf32>
    %1093 = arith.addf %1053, %1092 : vector<8x8xf32>
    %1094 = vector.extract_strided_slice %637 {offsets = [44, 0], sizes = [1, 8], strides = [1, 1]} : vector<64x8xf32> to vector<1x8xf32>
    %1095 = arith.mulf %725, %832 : vector<8x8xf32>
    %1096 = vector.broadcast %1094 : vector<1x8xf32> to vector<8x8xf32>
    %1097 = arith.mulf %1096, %1095 : vector<8x8xf32>
    %1098 = arith.addf %1058, %1097 : vector<8x8xf32>
    %1099 = vector.extract_strided_slice %637 {offsets = [45, 0], sizes = [1, 8], strides = [1, 1]} : vector<64x8xf32> to vector<1x8xf32>
    %1100 = arith.mulf %725, %774 : vector<8x8xf32>
    %1101 = vector.broadcast %1099 : vector<1x8xf32> to vector<8x8xf32>
    %1102 = arith.mulf %1101, %1100 : vector<8x8xf32>
    %1103 = arith.addf %1063, %1102 : vector<8x8xf32>
    %1104 = vector.extract_strided_slice %637 {offsets = [46, 0], sizes = [1, 8], strides = [1, 1]} : vector<64x8xf32> to vector<1x8xf32>
    %1105 = arith.mulf %725, %830 : vector<8x8xf32>
    %1106 = vector.broadcast %1104 : vector<1x8xf32> to vector<8x8xf32>
    %1107 = arith.mulf %1106, %1105 : vector<8x8xf32>
    %1108 = arith.addf %1068, %1107 : vector<8x8xf32>
    %1109 = vector.extract_strided_slice %637 {offsets = [47, 0], sizes = [1, 8], strides = [1, 1]} : vector<64x8xf32> to vector<1x8xf32>
    %1110 = arith.mulf %725, %802 : vector<8x8xf32>
    %1111 = vector.broadcast %1109 : vector<1x8xf32> to vector<8x8xf32>
    %1112 = arith.mulf %1111, %1110 : vector<8x8xf32>
    %1113 = arith.addf %1073, %1112 : vector<8x8xf32>
    %1114 = vector.extract_strided_slice %637 {offsets = [48, 0], sizes = [1, 8], strides = [1, 1]} : vector<64x8xf32> to vector<1x8xf32>
    %1115 = arith.mulf %726, %832 : vector<8x8xf32>
    %1116 = vector.broadcast %1114 : vector<1x8xf32> to vector<8x8xf32>
    %1117 = arith.mulf %1116, %1115 : vector<8x8xf32>
    %1118 = arith.addf %1078, %1117 : vector<8x8xf32>
    %1119 = vector.extract_strided_slice %637 {offsets = [49, 0], sizes = [1, 8], strides = [1, 1]} : vector<64x8xf32> to vector<1x8xf32>
    %1120 = arith.mulf %726, %855 : vector<8x8xf32>
    %1121 = vector.broadcast %1119 : vector<1x8xf32> to vector<8x8xf32>
    %1122 = arith.mulf %1121, %1120 : vector<8x8xf32>
    %1123 = arith.addf %1083, %1122 : vector<8x8xf32>
    %1124 = vector.extract_strided_slice %637 {offsets = [50, 0], sizes = [1, 8], strides = [1, 1]} : vector<64x8xf32> to vector<1x8xf32>
    %1125 = arith.mulf %726, %803 : vector<8x8xf32>
    %1126 = vector.broadcast %1124 : vector<1x8xf32> to vector<8x8xf32>
    %1127 = arith.mulf %1126, %1125 : vector<8x8xf32>
    %1128 = arith.addf %1088, %1127 : vector<8x8xf32>
    %1129 = vector.extract_strided_slice %637 {offsets = [51, 0], sizes = [1, 8], strides = [1, 1]} : vector<64x8xf32> to vector<1x8xf32>
    %1130 = arith.mulf %726, %802 : vector<8x8xf32>
    %1131 = vector.broadcast %1129 : vector<1x8xf32> to vector<8x8xf32>
    %1132 = arith.mulf %1131, %1130 : vector<8x8xf32>
    %1133 = arith.addf %1093, %1132 : vector<8x8xf32>
    %1134 = vector.extract_strided_slice %637 {offsets = [52, 0], sizes = [1, 8], strides = [1, 1]} : vector<64x8xf32> to vector<1x8xf32>
    %1135 = arith.mulf %726, %831 : vector<8x8xf32>
    %1136 = vector.broadcast %1134 : vector<1x8xf32> to vector<8x8xf32>
    %1137 = arith.mulf %1136, %1135 : vector<8x8xf32>
    %1138 = arith.addf %1098, %1137 : vector<8x8xf32>
    %1139 = vector.extract_strided_slice %637 {offsets = [53, 0], sizes = [1, 8], strides = [1, 1]} : vector<64x8xf32> to vector<1x8xf32>
    %1140 = arith.mulf %726, %830 : vector<8x8xf32>
    %1141 = vector.broadcast %1139 : vector<1x8xf32> to vector<8x8xf32>
    %1142 = arith.mulf %1141, %1140 : vector<8x8xf32>
    %1143 = arith.addf %1103, %1142 : vector<8x8xf32>
    %1144 = vector.extract_strided_slice %637 {offsets = [54, 0], sizes = [1, 8], strides = [1, 1]} : vector<64x8xf32> to vector<1x8xf32>
    %1145 = arith.mulf %726, %774 : vector<8x8xf32>
    %1146 = vector.broadcast %1144 : vector<1x8xf32> to vector<8x8xf32>
    %1147 = arith.mulf %1146, %1145 : vector<8x8xf32>
    %1148 = arith.addf %1108, %1147 : vector<8x8xf32>
    %1149 = vector.extract_strided_slice %637 {offsets = [55, 0], sizes = [1, 8], strides = [1, 1]} : vector<64x8xf32> to vector<1x8xf32>
    %1150 = arith.mulf %726, %801 : vector<8x8xf32>
    %1151 = vector.broadcast %1149 : vector<1x8xf32> to vector<8x8xf32>
    %1152 = arith.mulf %1151, %1150 : vector<8x8xf32>
    %1153 = arith.addf %1113, %1152 : vector<8x8xf32>
    %1154 = vector.extract_strided_slice %637 {offsets = [56, 0], sizes = [1, 8], strides = [1, 1]} : vector<64x8xf32> to vector<1x8xf32>
    %1155 = arith.mulf %727, %855 : vector<8x8xf32>
    %1156 = vector.broadcast %1154 : vector<1x8xf32> to vector<8x8xf32>
    %1157 = arith.mulf %1156, %1155 : vector<8x8xf32>
    %1158 = arith.addf %1118, %1157 : vector<8x8xf32>
    %1159 = vector.extract_strided_slice %637 {offsets = [57, 0], sizes = [1, 8], strides = [1, 1]} : vector<64x8xf32> to vector<1x8xf32>
    %1160 = arith.mulf %727, %832 : vector<8x8xf32>
    %1161 = vector.broadcast %1159 : vector<1x8xf32> to vector<8x8xf32>
    %1162 = arith.mulf %1161, %1160 : vector<8x8xf32>
    %1163 = arith.addf %1123, %1162 : vector<8x8xf32>
    %1164 = vector.extract_strided_slice %637 {offsets = [58, 0], sizes = [1, 8], strides = [1, 1]} : vector<64x8xf32> to vector<1x8xf32>
    %1165 = arith.mulf %727, %831 : vector<8x8xf32>
    %1166 = vector.broadcast %1164 : vector<1x8xf32> to vector<8x8xf32>
    %1167 = arith.mulf %1166, %1165 : vector<8x8xf32>
    %1168 = arith.addf %1128, %1167 : vector<8x8xf32>
    %1169 = vector.extract_strided_slice %637 {offsets = [59, 0], sizes = [1, 8], strides = [1, 1]} : vector<64x8xf32> to vector<1x8xf32>
    %1170 = arith.mulf %727, %830 : vector<8x8xf32>
    %1171 = vector.broadcast %1169 : vector<1x8xf32> to vector<8x8xf32>
    %1172 = arith.mulf %1171, %1170 : vector<8x8xf32>
    %1173 = arith.addf %1133, %1172 : vector<8x8xf32>
    %1174 = vector.extract_strided_slice %637 {offsets = [60, 0], sizes = [1, 8], strides = [1, 1]} : vector<64x8xf32> to vector<1x8xf32>
    %1175 = arith.mulf %727, %803 : vector<8x8xf32>
    %1176 = vector.broadcast %1174 : vector<1x8xf32> to vector<8x8xf32>
    %1177 = arith.mulf %1176, %1175 : vector<8x8xf32>
    %1178 = arith.addf %1138, %1177 : vector<8x8xf32>
    %1179 = vector.extract_strided_slice %637 {offsets = [61, 0], sizes = [1, 8], strides = [1, 1]} : vector<64x8xf32> to vector<1x8xf32>
    %1180 = arith.mulf %727, %802 : vector<8x8xf32>
    %1181 = vector.broadcast %1179 : vector<1x8xf32> to vector<8x8xf32>
    %1182 = arith.mulf %1181, %1180 : vector<8x8xf32>
    %1183 = arith.addf %1143, %1182 : vector<8x8xf32>
    %1184 = vector.extract_strided_slice %637 {offsets = [62, 0], sizes = [1, 8], strides = [1, 1]} : vector<64x8xf32> to vector<1x8xf32>
    %1185 = arith.mulf %727, %801 : vector<8x8xf32>
    %1186 = vector.broadcast %1184 : vector<1x8xf32> to vector<8x8xf32>
    %1187 = arith.mulf %1186, %1185 : vector<8x8xf32>
    %1188 = arith.addf %1148, %1187 : vector<8x8xf32>
    %1189 = vector.extract_strided_slice %637 {offsets = [63, 0], sizes = [1, 8], strides = [1, 1]} : vector<64x8xf32> to vector<1x8xf32>
    %1190 = arith.mulf %727, %774 : vector<8x8xf32>
    %1191 = vector.broadcast %1189 : vector<1x8xf32> to vector<8x8xf32>
    %1192 = arith.mulf %1191, %1190 : vector<8x8xf32>
    %1193 = arith.addf %1153, %1192 : vector<8x8xf32>
    %1194 = arith.addf %881, %1158 : vector<8x8xf32>
    %cst_281 = arith.constant 0.707106769 : f32
    %1195 = vector.broadcast %cst_281 : f32 to vector<8x8xf32>
    %1196 = arith.mulf %1194, %1195 : vector<8x8xf32>
    %1197 = arith.addf %861, %1163 : vector<8x8xf32>
    %cst_282 = arith.constant 0.707106769 : f32
    %1198 = vector.broadcast %cst_282 : f32 to vector<8x8xf32>
    %1199 = arith.mulf %1197, %1198 : vector<8x8xf32>
    %1200 = arith.addf %864, %1168 : vector<8x8xf32>
    %cst_283 = arith.constant 0.707106769 : f32
    %1201 = vector.broadcast %cst_283 : f32 to vector<8x8xf32>
    %1202 = arith.mulf %1200, %1201 : vector<8x8xf32>
    %1203 = arith.addf %867, %1173 : vector<8x8xf32>
    %cst_284 = arith.constant 0.707106769 : f32
    %1204 = vector.broadcast %cst_284 : f32 to vector<8x8xf32>
    %1205 = arith.mulf %1203, %1204 : vector<8x8xf32>
    %1206 = arith.addf %870, %1178 : vector<8x8xf32>
    %cst_285 = arith.constant 0.707106769 : f32
    %1207 = vector.broadcast %cst_285 : f32 to vector<8x8xf32>
    %1208 = arith.mulf %1206, %1207 : vector<8x8xf32>
    %1209 = arith.addf %873, %1183 : vector<8x8xf32>
    %cst_286 = arith.constant 0.707106769 : f32
    %1210 = vector.broadcast %cst_286 : f32 to vector<8x8xf32>
    %1211 = arith.mulf %1209, %1210 : vector<8x8xf32>
    %1212 = arith.addf %876, %1188 : vector<8x8xf32>
    %cst_287 = arith.constant 0.707106769 : f32
    %1213 = vector.broadcast %cst_287 : f32 to vector<8x8xf32>
    %1214 = arith.mulf %1212, %1213 : vector<8x8xf32>
    %1215 = arith.addf %879, %1193 : vector<8x8xf32>
    %cst_288 = arith.constant 0.707106769 : f32
    %1216 = vector.broadcast %cst_288 : f32 to vector<8x8xf32>
    %1217 = arith.mulf %1215, %1216 : vector<8x8xf32>
    %1218 = arith.mulf %1196, %1196 : vector<8x8xf32>
    %1219 = arith.mulf %1199, %1199 : vector<8x8xf32>
    %1220 = arith.addf %1218, %1219 : vector<8x8xf32>
    %1221 = arith.mulf %1202, %1202 : vector<8x8xf32>
    %1222 = arith.addf %1220, %1221 : vector<8x8xf32>
    %1223 = arith.mulf %1205, %1205 : vector<8x8xf32>
    %1224 = arith.addf %1222, %1223 : vector<8x8xf32>
    %1225 = arith.mulf %1208, %1208 : vector<8x8xf32>
    %1226 = arith.addf %1224, %1225 : vector<8x8xf32>
    %1227 = arith.mulf %1211, %1211 : vector<8x8xf32>
    %1228 = arith.addf %1226, %1227 : vector<8x8xf32>
    %1229 = arith.mulf %1214, %1214 : vector<8x8xf32>
    %1230 = arith.addf %1228, %1229 : vector<8x8xf32>
    %1231 = arith.mulf %1217, %1217 : vector<8x8xf32>
    %1232 = arith.addf %1230, %1231 : vector<8x8xf32>
    %1233 = arith.mulf %1232, %1232 : vector<8x8xf32>
    %cst_289 = arith.constant 1.000000e-16 : f32
    %1234 = vector.broadcast %cst_289 : f32 to vector<8x8xf32>
    %1235 = arith.addf %1233, %1234 : vector<8x8xf32>
    %1236 = math.sqrt %1235 : vector<8x8xf32>
    %1237 = math.sqrt %1236 : vector<8x8xf32>
    %cst_290 = arith.constant dense<0.000000e+00> : vector<8xf32>
    %1238 = vector.multi_reduction <add>, %1237, %cst_290 [1] : vector<8x8xf32> to vector<8xf32>
    %1239 = vector.shape_cast %1238 : vector<8xf32> to vector<8x1xf32>
    %cst_291 = arith.constant 8.000000e+00 : f32
    %1240 = vector.broadcast %cst_291 : f32 to vector<8x1xf32>
    %1241 = arith.divf %1239, %1240 : vector<8x1xf32>
    %cst_292 = arith.constant 9.99999997E-7 : f32
    %1242 = vector.broadcast %cst_292 : f32 to vector<8x1xf32>
    %1243 = arith.addf %1241, %1242 : vector<8x1xf32>
    %1244 = vector.broadcast %638 : vector<1x8xf32> to vector<8x8xf32>
    %1245 = vector.broadcast %1243 : vector<8x1xf32> to vector<8x8xf32>
    %1246 = arith.divf %1244, %1245 : vector<8x8xf32>
    %1247 = arith.mulf %1196, %1246 : vector<8x8xf32>
    %1248 = arith.mulf %1199, %1246 : vector<8x8xf32>
    %1249 = arith.mulf %1202, %1246 : vector<8x8xf32>
    %1250 = arith.mulf %1205, %1246 : vector<8x8xf32>
    %1251 = arith.mulf %1208, %1246 : vector<8x8xf32>
    %1252 = arith.mulf %1211, %1246 : vector<8x8xf32>
    %1253 = arith.mulf %1214, %1246 : vector<8x8xf32>
    %1254 = arith.mulf %1217, %1246 : vector<8x8xf32>
    %c0_293 = arith.constant 0 : index
    %c0_294 = arith.constant 0 : index
    %1255 = vector.load %arg22[%c0_293, %c0_294] : memref<8x64xf32, #tpu.memory_space<vmem>>, vector<8x8xf32>
    tpu.vector_store %arg22[%c0_293, %c0_294], %1247 {strides = array<i32>} : memref<8x64xf32, #tpu.memory_space<vmem>>, vector<8x8xf32>,
    %c0_295 = arith.constant 0 : index
    %c8 = arith.constant 8 : index
    %1256 = vector.load %arg22[%c0_295, %c8] : memref<8x64xf32, #tpu.memory_space<vmem>>, vector<8x8xf32>
    tpu.vector_store %arg22[%c0_295, %c8], %1248 {strides = array<i32>} : memref<8x64xf32, #tpu.memory_space<vmem>>, vector<8x8xf32>,
    %c0_296 = arith.constant 0 : index
    %c16 = arith.constant 16 : index
    %1257 = vector.load %arg22[%c0_296, %c16] : memref<8x64xf32, #tpu.memory_space<vmem>>, vector<8x8xf32>
    tpu.vector_store %arg22[%c0_296, %c16], %1249 {strides = array<i32>} : memref<8x64xf32, #tpu.memory_space<vmem>>, vector<8x8xf32>,
    %c0_297 = arith.constant 0 : index
    %c24 = arith.constant 24 : index
    %1258 = vector.load %arg22[%c0_297, %c24] : memref<8x64xf32, #tpu.memory_space<vmem>>, vector<8x8xf32>
    tpu.vector_store %arg22[%c0_297, %c24], %1250 {strides = array<i32>} : memref<8x64xf32, #tpu.memory_space<vmem>>, vector<8x8xf32>,
    %c0_298 = arith.constant 0 : index
    %c32 = arith.constant 32 : index
    %1259 = vector.load %arg22[%c0_298, %c32] : memref<8x64xf32, #tpu.memory_space<vmem>>, vector<8x8xf32>
    tpu.vector_store %arg22[%c0_298, %c32], %1251 {strides = array<i32>} : memref<8x64xf32, #tpu.memory_space<vmem>>, vector<8x8xf32>,
    %c0_299 = arith.constant 0 : index
    %c40 = arith.constant 40 : index
    %1260 = vector.load %arg22[%c0_299, %c40] : memref<8x64xf32, #tpu.memory_space<vmem>>, vector<8x8xf32>
    tpu.vector_store %arg22[%c0_299, %c40], %1252 {strides = array<i32>} : memref<8x64xf32, #tpu.memory_space<vmem>>, vector<8x8xf32>,
    %c0_300 = arith.constant 0 : index
    %c48 = arith.constant 48 : index
    %1261 = vector.load %arg22[%c0_300, %c48] : memref<8x64xf32, #tpu.memory_space<vmem>>, vector<8x8xf32>
    tpu.vector_store %arg22[%c0_300, %c48], %1253 {strides = array<i32>} : memref<8x64xf32, #tpu.memory_space<vmem>>, vector<8x8xf32>,
    %c0_301 = arith.constant 0 : index
    %c56 = arith.constant 56 : index
    %1262 = vector.load %arg22[%c0_301, %c56] : memref<8x64xf32, #tpu.memory_space<vmem>>, vector<8x8xf32>
    tpu.vector_store %arg22[%c0_301, %c56], %1254 {strides = array<i32>} : memref<8x64xf32, #tpu.memory_space<vmem>>, vector<8x8xf32>,
    return
  }
  func.func @transform_0(%arg0: i32) -> (i32, i32) {
    %c0_i32 = arith.constant 0 : i32
    %c0_i32_0 = arith.constant 0 : i32
    return %arg0, %c0_i32 : i32, i32
  }
  func.func @transform_1(%arg0: i32) -> (i32, i32, i32) {
    %c0_i32 = arith.constant 0 : i32
    %c0_i32_0 = arith.constant 0 : i32
    %c0_i32_1 = arith.constant 0 : i32
    %c0_i32_2 = arith.constant 0 : i32
    return %c0_i32, %c0_i32_0, %c0_i32_1 : i32, i32, i32
  }
  func.func @transform_2(%arg0: i32) -> (i32, i32) {
    %c0_i32 = arith.constant 0 : i32
    %c0_i32_0 = arith.constant 0 : i32
    %c0_i32_1 = arith.constant 0 : i32
    return %c0_i32, %c0_i32_0 : i32, i32
  }
  func.func @transform_3(%arg0: i32) -> (i32, i32) {
    %c0_i32 = arith.constant 0 : i32
    %c0_i32_0 = arith.constant 0 : i32
    %c0_i32_1 = arith.constant 0 : i32
    return %c0_i32, %c0_i32_0 : i32, i32
  }
  func.func @transform_4(%arg0: i32) -> (i32, i32) {
    %c0_i32 = arith.constant 0 : i32
    %c0_i32_0 = arith.constant 0 : i32
    %c0_i32_1 = arith.constant 0 : i32
    return %c0_i32, %c0_i32_0 : i32, i32
  }
  func.func @transform_5(%arg0: i32) -> (i32, i32, i32) {
    %c0_i32 = arith.constant 0 : i32
    %c0_i32_0 = arith.constant 0 : i32
    %c0_i32_1 = arith.constant 0 : i32
    %c0_i32_2 = arith.constant 0 : i32
    return %c0_i32, %c0_i32_0, %c0_i32_1 : i32, i32, i32
  }
  func.func @transform_6(%arg0: i32) -> (i32, i32) {
    %c0_i32 = arith.constant 0 : i32
    %c0_i32_0 = arith.constant 0 : i32
    %c0_i32_1 = arith.constant 0 : i32
    return %c0_i32, %c0_i32_0 : i32, i32
  }
  func.func @transform_7(%arg0: i32) -> (i32, i32, i32) {
    %c0_i32 = arith.constant 0 : i32
    %c0_i32_0 = arith.constant 0 : i32
    %c0_i32_1 = arith.constant 0 : i32
    %c0_i32_2 = arith.constant 0 : i32
    return %c0_i32, %c0_i32_0, %c0_i32_1 : i32, i32, i32
  }
  func.func @transform_8(%arg0: i32) -> (i32, i32) {
    %c0_i32 = arith.constant 0 : i32
    %c0_i32_0 = arith.constant 0 : i32
    %c0_i32_1 = arith.constant 0 : i32
    return %c0_i32, %c0_i32_0 : i32, i32
  }
  func.func @transform_9(%arg0: i32) -> (i32, i32) {
    %c0_i32 = arith.constant 0 : i32
    %c0_i32_0 = arith.constant 0 : i32
    %c0_i32_1 = arith.constant 0 : i32
    return %c0_i32, %c0_i32_0 : i32, i32
  }
  func.func @transform_10(%arg0: i32) -> (i32, i32) {
    %c0_i32 = arith.constant 0 : i32
    %c0_i32_0 = arith.constant 0 : i32
    %c0_i32_1 = arith.constant 0 : i32
    return %c0_i32, %c0_i32_0 : i32, i32
  }
  func.func @transform_11(%arg0: i32) -> (i32, i32, i32) {
    %c0_i32 = arith.constant 0 : i32
    %c0_i32_0 = arith.constant 0 : i32
    %c0_i32_1 = arith.constant 0 : i32
    %c0_i32_2 = arith.constant 0 : i32
    return %c0_i32, %c0_i32_0, %c0_i32_1 : i32, i32, i32
  }
  func.func @transform_12(%arg0: i32) -> (i32, i32) {
    %c0_i32 = arith.constant 0 : i32
    %c0_i32_0 = arith.constant 0 : i32
    %c0_i32_1 = arith.constant 0 : i32
    return %c0_i32, %c0_i32_0 : i32, i32
  }
  func.func @transform_13(%arg0: i32) -> (i32, i32) {
    %c0_i32 = arith.constant 0 : i32
    %c0_i32_0 = arith.constant 0 : i32
    %c0_i32_1 = arith.constant 0 : i32
    return %c0_i32, %c0_i32_0 : i32, i32
  }
  func.func @transform_14(%arg0: i32) -> (i32, i32) {
    %c0_i32 = arith.constant 0 : i32
    %c0_i32_0 = arith.constant 0 : i32
    %c0_i32_1 = arith.constant 0 : i32
    return %c0_i32, %c0_i32_0 : i32, i32
  }
  func.func @transform_15(%arg0: i32) -> (i32, i32, i32) {
    %c0_i32 = arith.constant 0 : i32
    %c0_i32_0 = arith.constant 0 : i32
    %c0_i32_1 = arith.constant 0 : i32
    %c0_i32_2 = arith.constant 0 : i32
    return %c0_i32, %c0_i32_0, %c0_i32_1 : i32, i32, i32
  }
  func.func @transform_16(%arg0: i32) -> (i32, i32) {
    %c0_i32 = arith.constant 0 : i32
    %c0_i32_0 = arith.constant 0 : i32
    %c0_i32_1 = arith.constant 0 : i32
    return %c0_i32, %c0_i32_0 : i32, i32
  }
  func.func @transform_17(%arg0: i32) -> (i32, i32, i32) {
    %c0_i32 = arith.constant 0 : i32
    %c0_i32_0 = arith.constant 0 : i32
    %c0_i32_1 = arith.constant 0 : i32
    %c0_i32_2 = arith.constant 0 : i32
    return %c0_i32, %c0_i32_0, %c0_i32_1 : i32, i32, i32
  }
  func.func @transform_18(%arg0: i32) -> (i32, i32) {
    %c0_i32 = arith.constant 0 : i32
    %c0_i32_0 = arith.constant 0 : i32
    %c0_i32_1 = arith.constant 0 : i32
    return %c0_i32, %c0_i32_0 : i32, i32
  }
  func.func @transform_19(%arg0: i32) -> (i32, i32) {
    %c0_i32 = arith.constant 0 : i32
    %c0_i32_0 = arith.constant 0 : i32
    %c0_i32_1 = arith.constant 0 : i32
    return %c0_i32, %c0_i32_0 : i32, i32
  }
  func.func @transform_20(%arg0: i32) -> (i32, i32) {
    %c0_i32 = arith.constant 0 : i32
    %c0_i32_0 = arith.constant 0 : i32
    %c0_i32_1 = arith.constant 0 : i32
    return %c0_i32, %c0_i32_0 : i32, i32
  }
  func.func @transform_21(%arg0: i32) -> (i32, i32) {
    %c0_i32 = arith.constant 0 : i32
    %c0_i32_0 = arith.constant 0 : i32
    return %arg0, %c0_i32 : i32, i32
  }
}

</mosaic_0001>

<llo_original>
// kernel: cemlp_forward.1
$region0: #{cemlp_forward.1}
  #allocation0 [shape = 'u32[]', space=smem, size = 0x4, offset = 0x4, fixed_abs, tag = 'smem constant byte address 0x4 - core index']
  #allocation1 [shape = 'u32[72,128]{1,0:T(1,128)}', space=vmem, size = 0x9000, scoped, tag = 'internal scratch']
  %s0 = inlined_call_operand.vmem [shape: f32[16,32], index: 0, kind: input, shape index: {}]
  %s1 = inlined_call_operand.vmem [shape: f32[8,4,32], index: 1, kind: input, shape index: {}]
  %s2 = inlined_call_operand.vmem [shape: f32[1,32], index: 2, kind: input, shape index: {}]
  %s3 = inlined_call_operand.vmem [shape: f32[4,32], index: 3, kind: input, shape index: {}]
  %s4 = inlined_call_operand.vmem [shape: f32[4,32], index: 4, kind: input, shape index: {}]
  %s5 = inlined_call_operand.vmem [shape: f32[8,32,32], index: 5, kind: input, shape index: {}]
  %s6 = inlined_call_operand.vmem [shape: f32[4,32], index: 6, kind: input, shape index: {}]
  %s7 = inlined_call_operand.hbm [shape: f32[8,32,32], index: 7, kind: input, shape index: {}]
  %s8 = inlined_call_operand.vmem [shape: f32[1,32], index: 8, kind: input, shape index: {}]
  %s9 = inlined_call_operand.vmem [shape: f32[64,32], index: 9, kind: input, shape index: {}]
  %s10 = inlined_call_operand.vmem [shape: f32[1,32], index: 10, kind: input, shape index: {}]
  %s11 = inlined_call_operand.vmem [shape: f32[8,32,8], index: 11, kind: input, shape index: {}]
  %s12 = inlined_call_operand.vmem [shape: f32[1,8], index: 12, kind: input, shape index: {}]
  %s13 = inlined_call_operand.vmem [shape: f32[4,8], index: 13, kind: input, shape index: {}]
  %s14 = inlined_call_operand.vmem [shape: f32[4,8], index: 14, kind: input, shape index: {}]
  %s15 = inlined_call_operand.vmem [shape: f32[8,8,8], index: 15, kind: input, shape index: {}]
  %s16 = inlined_call_operand.vmem [shape: f32[4,8], index: 16, kind: input, shape index: {}]
  %s17 = inlined_call_operand.vmem [shape: f32[8,8,8], index: 17, kind: input, shape index: {}]
  %s18 = inlined_call_operand.vmem [shape: f32[1,8], index: 18, kind: input, shape index: {}]
  %s19 = inlined_call_operand.vmem [shape: f32[64,8], index: 19, kind: input, shape index: {}]
  %s20 = inlined_call_operand.vmem [shape: f32[1,8], index: 20, kind: input, shape index: {}]
  %s21 = inlined_call_operand.vmem [shape: f32[16,64], index: 21, kind: output, shape index: {}]
  %s22 = sld [smem:[#allocation0]]
  $region121: #{cemlp_forward.1} parent=0
    _
  %s24 = ssub.s32 1, %s22
  %s25 = scalar_select 0, %s24, %s22
  $region1: #{cemlp_forward.1} parent=0
    #allocation2 [shape = 'u8[131072]{0}', space=vmem, size = 0x20000, scoped, tag = 'input window, operand 7, single buffered']
    #allocation3 [shape = 's32[2]{0}', space=sflag, size = 0x8, scoped, tag = 'scoped memory for cemlp_forward.1']
    %26 = vsyncpa [#allocation3], 0
    loop: start=0, step=1, limit=4
    $region2: #{cemlp_forward.1} parent=1 // loop_pre_header
      _
    $region3: #{cemlp_forward.1} parent=1 // loop_header
      %s28 = sphi 0, %s32
      %p29 = scmp.ge.s32.totalorder %s28, 4
      %s38 = sphi 0, %s40
      %s41 = sphi 0, %s38
      %s42 = sphi 0, %s41
      %s58 = sphi 0, %s42
      %s62 = sphi 0, %s62
      %s64 = sphi 0, %s62
      %s65 = sphi 0, %s64
      %s79 = sphi 0, %s65
      %s83 = sphi 0, %s83
      %s85 = sphi 0, %s83
      %s86 = sphi 0, %s85
      %s100 = sphi 0, %s86
      %s104 = sphi 0, %s104
      %s106 = sphi 0, %s104
      %s107 = sphi 0, %s106
      %s121 = sphi 0, %s107
      %s125 = sphi 0, %s125
      %s127 = sphi 0, %s125
      %s128 = sphi 0, %s127
      %s142 = sphi 0, %s128
      %s146 = sphi 0, %s146
      %s148 = sphi 0, %s146
      %s149 = sphi 0, %s148
      %s163 = sphi 0, %s149
      %s167 = sphi 0, %s167
      %s169 = sphi 0, %s167
      %s170 = sphi 0, %s169
      %s184 = sphi 0, %s170
      %s188 = sphi 0, %s188
      %s190 = sphi 0, %s188
      %s191 = sphi 0, %s190
      %s205 = sphi 0, %s191
      %s209 = sphi 0, %s209
      %s211 = sphi 0, %s209
      %s212 = sphi 0, %s211
      %s226 = sphi 0, %s212
      %s230 = sphi 0, %s230
      %s232 = sphi 0, %s230
      %s233 = sphi 0, %s232
      %s247 = sphi 0, %s233
      %s251 = sphi 0, %s251
      %s253 = sphi 0, %s251
      %s254 = sphi 0, %s253
      %s268 = sphi 0, %s254
      %s272 = sphi 0, %s272
      %s274 = sphi 0, %s272
      %s275 = sphi 0, %s274
      %s289 = sphi 0, %s275
      %s293 = sphi 0, %s293
      %s295 = sphi 0, %s293
      %s296 = sphi 0, %s295
      %s310 = sphi 0, %s296
      %s314 = sphi 0, %s314
      %s316 = sphi 0, %s314
      %s317 = sphi 0, %s316
      %s331 = sphi 0, %s317
      %s335 = sphi 0, %s335
      %s337 = sphi 0, %s335
      %s338 = sphi 0, %s337
      %s352 = sphi 0, %s338
      %s356 = sphi 0, %s356
      %s358 = sphi 0, %s356
      %s359 = sphi 0, %s358
      %s373 = sphi 0, %s359
      %s377 = sphi 0, %s377
      %s379 = sphi 0, %s377
      %s380 = sphi 0, %s379
      %s394 = sphi 0, %s380
      %s398 = sphi 0, %s398
      %s400 = sphi 0, %s398
      %s401 = sphi 0, %s400
      %s415 = sphi 0, %s401
      %s419 = sphi 0, %s419
      %s421 = sphi 0, %s419
      %s422 = sphi 0, %s421
      %s436 = sphi 0, %s422
      %s440 = sphi 0, %s440
      %s442 = sphi 0, %s440
      %s443 = sphi 0, %s442
      %s457 = sphi 0, %s443
      %s461 = sphi 0, %s461
      %s463 = sphi 0, %s461
      %s464 = sphi 0, %s463
      %s478 = sphi 0, %s464
      %s484 = sphi 0, %s486
      %s487 = sphi 0, %s484
      %s488 = sphi 0, %s487
      %s504 = sphi 0, %s488
    $region4: #{cemlp_forward.1} parent=1 // loop_header_branch
      %31 = sbr.rel (%p29) target = $region8
    $region5: #{cemlp_forward.1} parent=1 // loop_body
      %s33 = ssub.s32 %s28, 1
      %s34 = ssub.s32 %s28, 2
      %s35 = sadd.s32 %s28, 1
      %s36 = ssub.s32 %s28, %s35
      %p37 = scmp.eq.s32.totalorder %s36, 0
      %s39 = sadd.s32 %s38, 1
      %s40 = scalar_select %p37, %s38, %s39
      %p43 = pneg %p37
      %p44 = scmp.eq.s32.totalorder %s28, 1
      %p45 = por %p43, %p44
      %p46 = scmp.ne.s32.totalorder %s38, %s41
      %p47 = scmp.eq.s32.totalorder %s28, 0
      %p48 = por %p46, %p47
      %p49 = scmp.ne.s32.totalorder %s38, %s41
      %p50 = scmp.eq.s32.totalorder %s33, 1
      %p51 = por %p49, %p50
      %p52 = scmp.ne.s32.totalorder %s41, %s42
      %p53 = scmp.eq.s32.totalorder %s33, 0
      %p54 = por %p52, %p53
      %p55 = scmp.ne.s32.totalorder %s41, %s42
      %p56 = scmp.eq.s32.totalorder %s34, 1
      %p57 = por %p55, %p56
      %p59 = scmp.ne.s32.totalorder %s42, %s58
      %p60 = scmp.eq.s32.totalorder %s34, 0
      %p61 = por %p59, %p60
      %s63 = sadd.s32 %s62, 1
      %p66 = scmp.eq.s32.totalorder %s28, 1
      %p67 = scmp.ne.s32.totalorder %s62, %s64
      %p68 = scmp.eq.s32.totalorder %s28, 0
      %p69 = por %p67, %p68
      %p70 = scmp.ne.s32.totalorder %s62, %s64
      %p71 = scmp.eq.s32.totalorder %s33, 1
      %p72 = por %p70, %p71
      %p73 = scmp.ne.s32.totalorder %s64, %s65
      %p74 = scmp.eq.s32.totalorder %s33, 0
      %p75 = por %p73, %p74
      %p76 = scmp.ne.s32.totalorder %s64, %s65
      %p77 = scmp.eq.s32.totalorder %s34, 1
      %p78 = por %p76, %p77
      %p80 = scmp.ne.s32.totalorder %s65, %s79
      %p81 = scmp.eq.s32.totalorder %s34, 0
      %p82 = por %p80, %p81
      %s84 = sadd.s32 %s83, 1
      %p87 = scmp.eq.s32.totalorder %s28, 1
      %p88 = scmp.ne.s32.totalorder %s83, %s85
      %p89 = scmp.eq.s32.totalorder %s28, 0
      %p90 = por %p88, %p89
      %p91 = scmp.ne.s32.totalorder %s83, %s85
      %p92 = scmp.eq.s32.totalorder %s33, 1
      %p93 = por %p91, %p92
      %p94 = scmp.ne.s32.totalorder %s85, %s86
      %p95 = scmp.eq.s32.totalorder %s33, 0
      %p96 = por %p94, %p95
      %p97 = scmp.ne.s32.totalorder %s85, %s86
      %p98 = scmp.eq.s32.totalorder %s34, 1
      %p99 = por %p97, %p98
      %p101 = scmp.ne.s32.totalorder %s86, %s100
      %p102 = scmp.eq.s32.totalorder %s34, 0
      %p103 = por %p101, %p102
      %s105 = sadd.s32 %s104, 1
      %p108 = scmp.eq.s32.totalorder %s28, 1
      %p109 = scmp.ne.s32.totalorder %s104, %s106
      %p110 = scmp.eq.s32.totalorder %s28, 0
      %p111 = por %p109, %p110
      %p112 = scmp.ne.s32.totalorder %s104, %s106
      %p113 = scmp.eq.s32.totalorder %s33, 1
      %p114 = por %p112, %p113
      %p115 = scmp.ne.s32.totalorder %s106, %s107
      %p116 = scmp.eq.s32.totalorder %s33, 0
      %p117 = por %p115, %p116
      %p118 = scmp.ne.s32.totalorder %s106, %s107
      %p119 = scmp.eq.s32.totalorder %s34, 1
      %p120 = por %p118, %p119
      %p122 = scmp.ne.s32.totalorder %s107, %s121
      %p123 = scmp.eq.s32.totalorder %s34, 0
      %p124 = por %p122, %p123
      %s126 = sadd.s32 %s125, 1
      %p129 = scmp.eq.s32.totalorder %s28, 1
      %p130 = scmp.ne.s32.totalorder %s125, %s127
      %p131 = scmp.eq.s32.totalorder %s28, 0
      %p132 = por %p130, %p131
      %p133 = scmp.ne.s32.totalorder %s125, %s127
      %p134 = scmp.eq.s32.totalorder %s33, 1
      %p135 = por %p133, %p134
      %p136 = scmp.ne.s32.totalorder %s127, %s128
      %p137 = scmp.eq.s32.totalorder %s33, 0
      %p138 = por %p136, %p137
      %p139 = scmp.ne.s32.totalorder %s127, %s128
      %p140 = scmp.eq.s32.totalorder %s34, 1
      %p141 = por %p139, %p140
      %p143 = scmp.ne.s32.totalorder %s128, %s142
      %p144 = scmp.eq.s32.totalorder %s34, 0
      %p145 = por %p143, %p144
      %s147 = sadd.s32 %s146, 1
      %p150 = scmp.eq.s32.totalorder %s28, 1
      %p151 = scmp.ne.s32.totalorder %s146, %s148
      %p152 = scmp.eq.s32.totalorder %s28, 0
      %p153 = por %p151, %p152
      %p154 = scmp.ne.s32.totalorder %s146, %s148
      %p155 = scmp.eq.s32.totalorder %s33, 1
      %p156 = por %p154, %p155
      %p157 = scmp.ne.s32.totalorder %s148, %s149
      %p158 = scmp.eq.s32.totalorder %s33, 0
      %p159 = por %p157, %p158
      %p160 = scmp.ne.s32.totalorder %s148, %s149
      %p161 = scmp.eq.s32.totalorder %s34, 1
      %p162 = por %p160, %p161
      %p164 = scmp.ne.s32.totalorder %s149, %s163
      %p165 = scmp.eq.s32.totalorder %s34, 0
      %p166 = por %p164, %p165
      %s168 = sadd.s32 %s167, 1
      %p171 = scmp.eq.s32.totalorder %s28, 1
      %p172 = scmp.ne.s32.totalorder %s167, %s169
      %p173 = scmp.eq.s32.totalorder %s28, 0
      %p174 = por %p172, %p173
      %p175 = scmp.ne.s32.totalorder %s167, %s169
      %p176 = scmp.eq.s32.totalorder %s33, 1
      %p177 = por %p175, %p176
      %p178 = scmp.ne.s32.totalorder %s169, %s170
      %p179 = scmp.eq.s32.totalorder %s33, 0
      %p180 = por %p178, %p179
      %p181 = scmp.ne.s32.totalorder %s169, %s170
      %p182 = scmp.eq.s32.totalorder %s34, 1
      %p183 = por %p181, %p182
      %p185 = scmp.ne.s32.totalorder %s170, %s184
      %p186 = scmp.eq.s32.totalorder %s34, 0
      %p187 = por %p185, %p186
      %s189 = sadd.s32 %s188, 1
      %p192 = scmp.eq.s32.totalorder %s28, 1
      %p193 = scmp.ne.s32.totalorder %s188, %s190
      %p194 = scmp.eq.s32.totalorder %s28, 0
      %p195 = por %p193, %p194
      %p196 = scmp.ne.s32.totalorder %s188, %s190
      %p197 = scmp.eq.s32.totalorder %s33, 1
      %p198 = por %p196, %p197
      %p199 = scmp.ne.s32.totalorder %s190, %s191
      %p200 = scmp.eq.s32.totalorder %s33, 0
      %p201 = por %p199, %p200
      %p202 = scmp.ne.s32.totalorder %s190, %s191
      %p203 = scmp.eq.s32.totalorder %s34, 1
      %p204 = por %p202, %p203
      %p206 = scmp.ne.s32.totalorder %s191, %s205
      %p207 = scmp.eq.s32.totalorder %s34, 0
      %p208 = por %p206, %p207
      %s210 = sadd.s32 %s209, 1
      %p213 = scmp.eq.s32.totalorder %s28, 1
      %p214 = scmp.ne.s32.totalorder %s209, %s211
      %p215 = scmp.eq.s32.totalorder %s28, 0
      %p216 = por %p214, %p215
      %p217 = scmp.ne.s32.totalorder %s209, %s211
      %p218 = scmp.eq.s32.totalorder %s33, 1
      %p219 = por %p217, %p218
      %p220 = scmp.ne.s32.totalorder %s211, %s212
      %p221 = scmp.eq.s32.totalorder %s33, 0
      %p222 = por %p220, %p221
      %p223 = scmp.ne.s32.totalorder %s211, %s212
      %p224 = scmp.eq.s32.totalorder %s34, 1
      %p225 = por %p223, %p224
      %p227 = scmp.ne.s32.totalorder %s212, %s226
      %p228 = scmp.eq.s32.totalorder %s34, 0
      %p229 = por %p227, %p228
      %s231 = sadd.s32 %s230, 1
      %p234 = scmp.eq.s32.totalorder %s28, 1
      %p235 = scmp.ne.s32.totalorder %s230, %s232
      %p236 = scmp.eq.s32.totalorder %s28, 0
      %p237 = por %p235, %p236
      %p238 = scmp.ne.s32.totalorder %s230, %s232
      %p239 = scmp.eq.s32.totalorder %s33, 1
      %p240 = por %p238, %p239
      %p241 = scmp.ne.s32.totalorder %s232, %s233
      %p242 = scmp.eq.s32.totalorder %s33, 0
      %p243 = por %p241, %p242
      %p244 = scmp.ne.s32.totalorder %s232, %s233
      %p245 = scmp.eq.s32.totalorder %s34, 1
      %p246 = por %p244, %p245
      %p248 = scmp.ne.s32.totalorder %s233, %s247
      %p249 = scmp.eq.s32.totalorder %s34, 0
      %p250 = por %p248, %p249
      %s252 = sadd.s32 %s251, 1
      %p255 = scmp.eq.s32.totalorder %s28, 1
      %p256 = scmp.ne.s32.totalorder %s251, %s253
      %p257 = scmp.eq.s32.totalorder %s28, 0
      %p258 = por %p256, %p257
      %p259 = scmp.ne.s32.totalorder %s251, %s253
      %p260 = scmp.eq.s32.totalorder %s33, 1
      %p261 = por %p259, %p260
      %p262 = scmp.ne.s32.totalorder %s253, %s254
      %p263 = scmp.eq.s32.totalorder %s33, 0
      %p264 = por %p262, %p263
      %p265 = scmp.ne.s32.totalorder %s253, %s254
      %p266 = scmp.eq.s32.totalorder %s34, 1
      %p267 = por %p265, %p266
      %p269 = scmp.ne.s32.totalorder %s254, %s268
      %p270 = scmp.eq.s32.totalorder %s34, 0
      %p271 = por %p269, %p270
      %s273 = sadd.s32 %s272, 1
      %p276 = scmp.eq.s32.totalorder %s28, 1
      %p277 = scmp.ne.s32.totalorder %s272, %s274
      %p278 = scmp.eq.s32.totalorder %s28, 0
      %p279 = por %p277, %p278
      %p280 = scmp.ne.s32.totalorder %s272, %s274
      %p281 = scmp.eq.s32.totalorder %s33, 1
      %p282 = por %p280, %p281
      %p283 = scmp.ne.s32.totalorder %s274, %s275
      %p284 = scmp.eq.s32.totalorder %s33, 0
      %p285 = por %p283, %p284
      %p286 = scmp.ne.s32.totalorder %s274, %s275
      %p287 = scmp.eq.s32.totalorder %s34, 1
      %p288 = por %p286, %p287
      %p290 = scmp.ne.s32.totalorder %s275, %s289
      %p291 = scmp.eq.s32.totalorder %s34, 0
      %p292 = por %p290, %p291
      %s294 = sadd.s32 %s293, 1
      %p297 = scmp.eq.s32.totalorder %s28, 1
      %p298 = scmp.ne.s32.totalorder %s293, %s295
      %p299 = scmp.eq.s32.totalorder %s28, 0
      %p300 = por %p298, %p299
      %p301 = scmp.ne.s32.totalorder %s293, %s295
      %p302 = scmp.eq.s32.totalorder %s33, 1
      %p303 = por %p301, %p302
      %p304 = scmp.ne.s32.totalorder %s295, %s296
      %p305 = scmp.eq.s32.totalorder %s33, 0
      %p306 = por %p304, %p305
      %p307 = scmp.ne.s32.totalorder %s295, %s296
      %p308 = scmp.eq.s32.totalorder %s34, 1
      %p309 = por %p307, %p308
      %p311 = scmp.ne.s32.totalorder %s296, %s310
      %p312 = scmp.eq.s32.totalorder %s34, 0
      %p313 = por %p311, %p312
      %s315 = sadd.s32 %s314, 1
      %p318 = scmp.eq.s32.totalorder %s28, 1
      %p319 = scmp.ne.s32.totalorder %s314, %s316
      %p320 = scmp.eq.s32.totalorder %s28, 0
      %p321 = por %p319, %p320
      %p322 = scmp.ne.s32.totalorder %s314, %s316
      %p323 = scmp.eq.s32.totalorder %s33, 1
      %p324 = por %p322, %p323
      %p325 = scmp.ne.s32.totalorder %s316, %s317
      %p326 = scmp.eq.s32.totalorder %s33, 0
      %p327 = por %p325, %p326
      %p328 = scmp.ne.s32.totalorder %s316, %s317
      %p329 = scmp.eq.s32.totalorder %s34, 1
      %p330 = por %p328, %p329
      %p332 = scmp.ne.s32.totalorder %s317, %s331
      %p333 = scmp.eq.s32.totalorder %s34, 0
      %p334 = por %p332, %p333
      %s336 = sadd.s32 %s335, 1
      %p339 = scmp.eq.s32.totalorder %s28, 1
      %p340 = scmp.ne.s32.totalorder %s335, %s337
      %p341 = scmp.eq.s32.totalorder %s28, 0
      %p342 = por %p340, %p341
      %p343 = scmp.ne.s32.totalorder %s335, %s337
      %p344 = scmp.eq.s32.totalorder %s33, 1
      %p345 = por %p343, %p344
      %p346 = scmp.ne.s32.totalorder %s337, %s338
      %p347 = scmp.eq.s32.totalorder %s33, 0
      %p348 = por %p346, %p347
      %p349 = scmp.ne.s32.totalorder %s337, %s338
      %p350 = scmp.eq.s32.totalorder %s34, 1
      %p351 = por %p349, %p350
      %p353 = scmp.ne.s32.totalorder %s338, %s352
      %p354 = scmp.eq.s32.totalorder %s34, 0
      %p355 = por %p353, %p354
      %s357 = sadd.s32 %s356, 1
      %p360 = scmp.eq.s32.totalorder %s28, 1
      %p361 = scmp.ne.s32.totalorder %s356, %s358
      %p362 = scmp.eq.s32.totalorder %s28, 0
      %p363 = por %p361, %p362
      %p364 = scmp.ne.s32.totalorder %s356, %s358
      %p365 = scmp.eq.s32.totalorder %s33, 1
      %p366 = por %p364, %p365
      %p367 = scmp.ne.s32.totalorder %s358, %s359
      %p368 = scmp.eq.s32.totalorder %s33, 0
      %p369 = por %p367, %p368
      %p370 = scmp.ne.s32.totalorder %s358, %s359
      %p371 = scmp.eq.s32.totalorder %s34, 1
      %p372 = por %p370, %p371
      %p374 = scmp.ne.s32.totalorder %s359, %s373
      %p375 = scmp.eq.s32.totalorder %s34, 0
      %p376 = por %p374, %p375
      %s378 = sadd.s32 %s377, 1
      %p381 = scmp.eq.s32.totalorder %s28, 1
      %p382 = scmp.ne.s32.totalorder %s377, %s379
      %p383 = scmp.eq.s32.totalorder %s28, 0
      %p384 = por %p382, %p383
      %p385 = scmp.ne.s32.totalorder %s377, %s379
      %p386 = scmp.eq.s32.totalorder %s33, 1
      %p387 = por %p385, %p386
      %p388 = scmp.ne.s32.totalorder %s379, %s380
      %p389 = scmp.eq.s32.totalorder %s33, 0
      %p390 = por %p388, %p389
      %p391 = scmp.ne.s32.totalorder %s379, %s380
      %p392 = scmp.eq.s32.totalorder %s34, 1
      %p393 = por %p391, %p392
      %p395 = scmp.ne.s32.totalorder %s380, %s394
      %p396 = scmp.eq.s32.totalorder %s34, 0
      %p397 = por %p395, %p396
      %s399 = sadd.s32 %s398, 1
      %p402 = scmp.eq.s32.totalorder %s28, 1
      %p403 = scmp.ne.s32.totalorder %s398, %s400
      %p404 = scmp.eq.s32.totalorder %s28, 0
      %p405 = por %p403, %p404
      %p406 = scmp.ne.s32.totalorder %s398, %s400
      %p407 = scmp.eq.s32.totalorder %s33, 1
      %p408 = por %p406, %p407
      %p409 = scmp.ne.s32.totalorder %s400, %s401
      %p410 = scmp.eq.s32.totalorder %s33, 0
      %p411 = por %p409, %p410
      %p412 = scmp.ne.s32.totalorder %s400, %s401
      %p413 = scmp.eq.s32.totalorder %s34, 1
      %p414 = por %p412, %p413
      %p416 = scmp.ne.s32.totalorder %s401, %s415
      %p417 = scmp.eq.s32.totalorder %s34, 0
      %p418 = por %p416, %p417
      %s420 = sadd.s32 %s419, 1
      %p423 = scmp.eq.s32.totalorder %s28, 1
      %p424 = scmp.ne.s32.totalorder %s419, %s421
      %p425 = scmp.eq.s32.totalorder %s28, 0
      %p426 = por %p424, %p425
      %p427 = scmp.ne.s32.totalorder %s419, %s421
      %p428 = scmp.eq.s32.totalorder %s33, 1
      %p429 = por %p427, %p428
      %p430 = scmp.ne.s32.totalorder %s421, %s422
      %p431 = scmp.eq.s32.totalorder %s33, 0
      %p432 = por %p430, %p431
      %p433 = scmp.ne.s32.totalorder %s421, %s422
      %p434 = scmp.eq.s32.totalorder %s34, 1
      %p435 = por %p433, %p434
      %p437 = scmp.ne.s32.totalorder %s422, %s436
      %p438 = scmp.eq.s32.totalorder %s34, 0
      %p439 = por %p437, %p438
      %s441 = sadd.s32 %s440, 1
      %p444 = scmp.eq.s32.totalorder %s28, 1
      %p445 = scmp.ne.s32.totalorder %s440, %s442
      %p446 = scmp.eq.s32.totalorder %s28, 0
      %p447 = por %p445, %p446
      %p448 = scmp.ne.s32.totalorder %s440, %s442
      %p449 = scmp.eq.s32.totalorder %s33, 1
      %p450 = por %p448, %p449
      %p451 = scmp.ne.s32.totalorder %s442, %s443
      %p452 = scmp.eq.s32.totalorder %s33, 0
      %p453 = por %p451, %p452
      %p454 = scmp.ne.s32.totalorder %s442, %s443
      %p455 = scmp.eq.s32.totalorder %s34, 1
      %p456 = por %p454, %p455
      %p458 = scmp.ne.s32.totalorder %s443, %s457
      %p459 = scmp.eq.s32.totalorder %s34, 0
      %p460 = por %p458, %p459
      %s462 = sadd.s32 %s461, 1
      %p465 = scmp.eq.s32.totalorder %s28, 1
      %p466 = scmp.ne.s32.totalorder %s461, %s463
      %p467 = scmp.eq.s32.totalorder %s28, 0
      %p468 = por %p466, %p467
      %p469 = scmp.ne.s32.totalorder %s461, %s463
      %p470 = scmp.eq.s32.totalorder %s33, 1
      %p471 = por %p469, %p470
      %p472 = scmp.ne.s32.totalorder %s463, %s464
      %p473 = scmp.eq.s32.totalorder %s33, 0
      %p474 = por %p472, %p473
      %p475 = scmp.ne.s32.totalorder %s463, %s464
      %p476 = scmp.eq.s32.totalorder %s34, 1
      %p477 = por %p475, %p476
      %p479 = scmp.ne.s32.totalorder %s464, %s478
      %p480 = scmp.eq.s32.totalorder %s34, 0
      %p481 = por %p479, %p480
      %s482 = ssub.s32 %s28, %s35
      %p483 = scmp.eq.s32.totalorder %s482, 0
      %s485 = sadd.s32 %s484, 1
      %s486 = scalar_select %p483, %s484, %s485
      %p489 = pneg %p483
      %p490 = scmp.eq.s32.totalorder %s28, 1
      %p491 = por %p489, %p490
      %p492 = scmp.ne.s32.totalorder %s484, %s487
      %p493 = scmp.eq.s32.totalorder %s28, 0
      %p494 = por %p492, %p493
      %p495 = scmp.ne.s32.totalorder %s484, %s487
      %p496 = scmp.eq.s32.totalorder %s33, 1
      %p497 = por %p495, %p496
      %p498 = scmp.ne.s32.totalorder %s487, %s488
      %p499 = scmp.eq.s32.totalorder %s33, 0
      %p500 = por %p498, %p499
      %p501 = scmp.ne.s32.totalorder %s487, %s488
      %p502 = scmp.eq.s32.totalorder %s34, 1
      %p503 = por %p501, %p502
      %p505 = scmp.ne.s32.totalorder %s488, %s504
      %p506 = scmp.eq.s32.totalorder %s34, 0
      %p507 = por %p505, %p506
      %p508 = scmp.le.s32.totalorder 1, %s28
      %p509 = scmp.lt.s32.totalorder %s28, 3
      %p510 = pnand %p508, %p509
      %p511 = pneg %p510
      // Predicated region
      $region9: #{cemlp_forward.1} parent=5 // pred_check
        _
      $region10: #{cemlp_forward.1} parent=5 // pred_check_branch
        %513 = sbr.rel (%p510) target = $region12
      $region11: #{cemlp_forward.1} parent=5 // pred_region
        %s514 = ssub.s32 %s28, 1
        // Predicated region
        $region13: #{cemlp_forward.1} parent=11 // pred_check
          %p515 = pneg %p75
        $region14: #{cemlp_forward.1} parent=11 // pred_check_branch
          %517 = sbr.rel (%p515) target = $region16
        $region15: #{cemlp_forward.1} parent=11 // pred_region
          _
        $region16: #{cemlp_forward.1} parent=11 // pred_fallthru
          _
        // Predicated region
        $region17: #{cemlp_forward.1} parent=11 // pred_check
          %p518 = pneg %p96
        $region18: #{cemlp_forward.1} parent=11 // pred_check_branch
          %520 = sbr.rel (%p518) target = $region20
        $region19: #{cemlp_forward.1} parent=11 // pred_region
          _
        $region20: #{cemlp_forward.1} parent=11 // pred_fallthru
          _
        // Predicated region
        $region21: #{cemlp_forward.1} parent=11 // pred_check
          %p521 = pneg %p117
        $region22: #{cemlp_forward.1} parent=11 // pred_check_branch
          %523 = sbr.rel (%p521) target = $region24
        $region23: #{cemlp_forward.1} parent=11 // pred_region
          _
        $region24: #{cemlp_forward.1} parent=11 // pred_fallthru
          _
        // Predicated region
        $region25: #{cemlp_forward.1} parent=11 // pred_check
          %p524 = pneg %p138
        $region26: #{cemlp_forward.1} parent=11 // pred_check_branch
          %526 = sbr.rel (%p524) target = $region28
        $region27: #{cemlp_forward.1} parent=11 // pred_region
          _
        $region28: #{cemlp_forward.1} parent=11 // pred_fallthru
          _
        // Predicated region
        $region29: #{cemlp_forward.1} parent=11 // pred_check
          %p527 = pneg %p159
        $region30: #{cemlp_forward.1} parent=11 // pred_check_branch
          %529 = sbr.rel (%p527) target = $region32
        $region31: #{cemlp_forward.1} parent=11 // pred_region
          _
        $region32: #{cemlp_forward.1} parent=11 // pred_fallthru
          _
        // Predicated region
        $region33: #{cemlp_forward.1} parent=11 // pred_check
          %p530 = pneg %p180
        $region34: #{cemlp_forward.1} parent=11 // pred_check_branch
          %532 = sbr.rel (%p530) target = $region36
        $region35: #{cemlp_forward.1} parent=11 // pred_region
          _
        $region36: #{cemlp_forward.1} parent=11 // pred_fallthru
          _
        // Predicated region
        $region37: #{cemlp_forward.1} parent=11 // pred_check
          %p533 = pneg %p201
        $region38: #{cemlp_forward.1} parent=11 // pred_check_branch
          %535 = sbr.rel (%p533) target = $region40
        $region39: #{cemlp_forward.1} parent=11 // pred_region
          %537 = vsyncadd [#allocation3], 0
          %s538 = sshll.u32 %s7, 4
          %s539 = int_to_ptr.hbm [resolvable:$true] %s538
          %s540 = sshll.u32 [#allocation2], 4
          %s541 = int_to_ptr.vmem [resolvable:$true] %s540
          %546 = dma.hbm_to_vmem [thread:$0]  %s539, 4096, %s541, [#allocation3], 128, 128, 8
        $region40: #{cemlp_forward.1} parent=11 // pred_fallthru
          _
        // Predicated region
        $region41: #{cemlp_forward.1} parent=11 // pred_check
          %p547 = pneg %p222
        $region42: #{cemlp_forward.1} parent=11 // pred_check_branch
          %549 = sbr.rel (%p547) target = $region44
        $region43: #{cemlp_forward.1} parent=11 // pred_region
          _
        $region44: #{cemlp_forward.1} parent=11 // pred_fallthru
          _
        // Predicated region
        $region45: #{cemlp_forward.1} parent=11 // pred_check
          %p550 = pneg %p243
        $region46: #{cemlp_forward.1} parent=11 // pred_check_branch
          %552 = sbr.rel (%p550) target = $region48
        $region47: #{cemlp_forward.1} parent=11 // pred_region
          _
        $region48: #{cemlp_forward.1} parent=11 // pred_fallthru
          _
        // Predicated region
        $region49: #{cemlp_forward.1} parent=11 // pred_check
          %p553 = pneg %p264
        $region50: #{cemlp_forward.1} parent=11 // pred_check_branch
          %555 = sbr.rel (%p553) target = $region52
        $region51: #{cemlp_forward.1} parent=11 // pred_region
          _
        $region52: #{cemlp_forward.1} parent=11 // pred_fallthru
          _
        // Predicated region
        $region53: #{cemlp_forward.1} parent=11 // pred_check
          %p556 = pneg %p285
        $region54: #{cemlp_forward.1} parent=11 // pred_check_branch
          %558 = sbr.rel (%p556) target = $region56
        $region55: #{cemlp_forward.1} parent=11 // pred_region
          _
        $region56: #{cemlp_forward.1} parent=11 // pred_fallthru
          _
        // Predicated region
        $region57: #{cemlp_forward.1} parent=11 // pred_check
          %p559 = pneg %p306
        $region58: #{cemlp_forward.1} parent=11 // pred_check_branch
          %561 = sbr.rel (%p559) target = $region60
        $region59: #{cemlp_forward.1} parent=11 // pred_region
          _
        $region60: #{cemlp_forward.1} parent=11 // pred_fallthru
          _
        // Predicated region
        $region61: #{cemlp_forward.1} parent=11 // pred_check
          %p562 = pneg %p327
        $region62: #{cemlp_forward.1} parent=11 // pred_check_branch
          %564 = sbr.rel (%p562) target = $region64
        $region63: #{cemlp_forward.1} parent=11 // pred_region
          _
        $region64: #{cemlp_forward.1} parent=11 // pred_fallthru
          _
        // Predicated region
        $region65: #{cemlp_forward.1} parent=11 // pred_check
          %p565 = pneg %p348
        $region66: #{cemlp_forward.1} parent=11 // pred_check_branch
          %567 = sbr.rel (%p565) target = $region68
        $region67: #{cemlp_forward.1} parent=11 // pred_region
          _
        $region68: #{cemlp_forward.1} parent=11 // pred_fallthru
          _
        // Predicated region
        $region69: #{cemlp_forward.1} parent=11 // pred_check
          %p568 = pneg %p369
        $region70: #{cemlp_forward.1} parent=11 // pred_check_branch
          %570 = sbr.rel (%p568) target = $region72
        $region71: #{cemlp_forward.1} parent=11 // pred_region
          _
        $region72: #{cemlp_forward.1} parent=11 // pred_fallthru
          _
        // Predicated region
        $region73: #{cemlp_forward.1} parent=11 // pred_check
          %p571 = pneg %p390
        $region74: #{cemlp_forward.1} parent=11 // pred_check_branch
          %573 = sbr.rel (%p571) target = $region76
        $region75: #{cemlp_forward.1} parent=11 // pred_region
          _
        $region76: #{cemlp_forward.1} parent=11 // pred_fallthru
          _
        // Predicated region
        $region77: #{cemlp_forward.1} parent=11 // pred_check
          %p574 = pneg %p411
        $region78: #{cemlp_forward.1} parent=11 // pred_check_branch
          %576 = sbr.rel (%p574) target = $region80
        $region79: #{cemlp_forward.1} parent=11 // pred_region
          _
        $region80: #{cemlp_forward.1} parent=11 // pred_fallthru
          _
        // Predicated region
        $region81: #{cemlp_forward.1} parent=11 // pred_check
          %p577 = pneg %p432
        $region82: #{cemlp_forward.1} parent=11 // pred_check_branch
          %579 = sbr.rel (%p577) target = $region84
        $region83: #{cemlp_forward.1} parent=11 // pred_region
          _
        $region84: #{cemlp_forward.1} parent=11 // pred_fallthru
          _
        // Predicated region
        $region85: #{cemlp_forward.1} parent=11 // pred_check
          %p580 = pneg %p453
        $region86: #{cemlp_forward.1} parent=11 // pred_check_branch
          %582 = sbr.rel (%p580) target = $region88
        $region87: #{cemlp_forward.1} parent=11 // pred_region
          _
        $region88: #{cemlp_forward.1} parent=11 // pred_fallthru
          _
        // Predicated region
        $region89: #{cemlp_forward.1} parent=11 // pred_check
          %p583 = pneg %p474
        $region90: #{cemlp_forward.1} parent=11 // pred_check_branch
          %585 = sbr.rel (%p583) target = $region92
        $region91: #{cemlp_forward.1} parent=11 // pred_region
          _
        $region92: #{cemlp_forward.1} parent=11 // pred_fallthru
          _
      $region12: #{cemlp_forward.1} parent=5 // pred_fallthru
        _
      %p586 = scmp.lt.s32.totalorder %s28, 2
      // Predicated region
      $region93: #{cemlp_forward.1} parent=5 // pred_check
        %p587 = pneg %p586
      $region94: #{cemlp_forward.1} parent=5 // pred_check_branch
        %589 = sbr.rel (%p587) target = $region96
      $region95: #{cemlp_forward.1} parent=5 // pred_region
        // Predicated region
        $region97: #{cemlp_forward.1} parent=95 // pred_check
          %p590 = pneg %p48
        $region98: #{cemlp_forward.1} parent=95 // pred_check_branch
          %592 = sbr.rel (%p590) target = $region100
        $region99: #{cemlp_forward.1} parent=95 // pred_region
          %p593 = scmp.lt.s32.totalorder %s28, 1
          %s594 = scalar_select %p593, %s28, 1
          %s595 = smul.addr %s594, 8
          %s596 = scalar_lea.vmem %s0, %s595
        $region100: #{cemlp_forward.1} parent=95 // pred_fallthru
          _
      $region96: #{cemlp_forward.1} parent=5 // pred_fallthru
        _
      %p597 = scmp.le.s32.totalorder 1, %s28
      %p598 = scmp.lt.s32.totalorder %s28, 3
      %p599 = pnand %p597, %p598
      %p600 = pneg %p599
      // Predicated region
      $region101: #{cemlp_forward.1} parent=5 // pred_check
        _
      $region102: #{cemlp_forward.1} parent=5 // pred_check_branch
        %602 = sbr.rel (%p599) target = $region104
      $region103: #{cemlp_forward.1} parent=5 // pred_region
        %s603 = ssub.s32 %s28, 1
        // Predicated region
        $region105: #{cemlp_forward.1} parent=103 // pred_check
          %p604 = pneg %p201
        $region106: #{cemlp_forward.1} parent=103 // pred_check_branch
          %606 = sbr.rel (%p604) target = $region108
        $region107: #{cemlp_forward.1} parent=103 // pred_region
          %608 = dma.done [#allocation3], 4096
        $region108: #{cemlp_forward.1} parent=103 // pred_fallthru
          _
        %p609 = scmp.lt.s32.totalorder %s33, 1
        %s610 = scalar_select %p609, %s33, 1
        %s611 = smul.addr %s610, 8
        %s612 = scalar_lea.vmem %s0, %s611
        %p613 = pneg %p54
        %p614 = pneg %p51
        %p615 = pneg %p75
        %p616 = pneg %p72
        %p617 = pneg %p96
        %p618 = pneg %p93
        %p619 = pneg %p117
        %p620 = pneg %p114
        %p621 = pneg %p138
        %p622 = pneg %p135
        %p623 = pneg %p159
        %p624 = pneg %p156
        %p625 = pneg %p180
        %p626 = pneg %p177
        %p627 = pneg %p201
        %p628 = pneg %p198
        %p629 = pneg %p222
        %p630 = pneg %p219
        %p631 = pneg %p243
        %p632 = pneg %p240
        %p633 = pneg %p264
        %p634 = pneg %p261
        %p635 = pneg %p285
        %p636 = pneg %p282
        %p637 = pneg %p306
        %p638 = pneg %p303
        %p639 = pneg %p327
        %p640 = pneg %p324
        %p641 = pneg %p348
        %p642 = pneg %p345
        %p643 = pneg %p369
        %p644 = pneg %p366
        %p645 = pneg %p390
        %p646 = pneg %p387
        %p647 = pneg %p411
        %p648 = pneg %p408
        %p649 = pneg %p432
        %p650 = pneg %p429
        %p651 = pneg %p453
        %p652 = pneg %p450
        %p653 = pneg %p474
        %p654 = pneg %p471
        %p655 = pneg %p500
        %p656 = pneg %p497
        %p657 = scmp.lt.s32.totalorder %s33, 1
        %s658 = scalar_select %p657, %s33, 1
        %s659 = smul.addr %s658, 8
        %s660 = scalar_lea.vmem %s21, %s659
        %p661 = scmp.lt.s32.totalorder %s33, 1
        %s662 = scalar_select %p661, %s33, 1
        %s663 = smul.addr %s662, 8
        %s664 = scalar_lea.vmem %s0, %s663
        %p665 = scmp.lt.s32.totalorder %s33, 1
        %s666 = scalar_select %p665, %s33, 1
        %s667 = smul.addr %s666, 8
        %s668 = scalar_lea.vmem %s21, %s667
        %v669 = vld [vmem:[%s664] sm:$0xff]
        %v670 = vld [vmem:[%s2] sm:$0x1]
        %v671 = vld [vmem:[%s3] sm:$0xf]
        %v672 = vld [vmem:[%s4] sm:$0xf]
        %v673 = vld [vmem:[%s6] sm:$0xf]
        %v674 = vld [vmem:[%s8] sm:$0x1]
        %v675 = vld [vmem:[%s9] sm:$0xff]
        %v676 = vld [vmem:[%s9 + $0x8] sm:$0xff]
        %v677 = vld [vmem:[%s9 + $0x10] sm:$0xff]
        %v678 = vld [vmem:[%s9 + $0x18] sm:$0xff]
        %v679 = vld [vmem:[%s9 + $0x20] sm:$0xff]
        %v680 = vld [vmem:[%s9 + $0x28] sm:$0xff]
        %v681 = vld [vmem:[%s9 + $0x30] sm:$0xff]
        %v682 = vld [vmem:[%s9 + $0x38] sm:$0xff]
        %v683 = vld [vmem:[%s10] sm:$0x1]
        %v684 = vld [vmem:[%s1] sm:$0xf]
        %s685 = scalar_lea.vmem %s1, 4
        %v686 = vld [vmem:[%s685] sm:$0xf]
        %688 = vrot.lane.b32.xlu0 %v669, 124
        %v689 = vpop.permute.xlu0 %688
        %vm690 = vcmask 31744
        %v691 = vsel %vm690, %v689, 0
        %vm693 = vcmask 1043456
        %v695 = vsel %vm693, %v686, 0
        %697 = vmatpush.msra.mxu0 0.0
        %698 = vmatpush.msra.mxu0 0.0
        %699 = vmatpush.msra.mxu0 0.0
        %700 = vmatpush.msra.mxu0 0.0
        %701 = vmatpush.msra.mxu0 0.0
        %702 = vmatpush.msra.mxu0 0.0
        %703 = vmatpush.msra.mxu0 0.0
        %704 = vmatpush.msra.mxu0 0.0
        %705 = vmatpush.msra.mxu0 0.0
        %706 = vmatpush.msra.mxu0 0.0
        %707 = vmatpush.msra.mxu0 0.0
        %708 = vmatpush.msra.mxu0 0.0
        %709 = vmatpush.msra.mxu0 0.0
        %710 = vmatpush.msra.mxu0 0.0
        %711 = vmatpush.msra.mxu0 0.0
        %712 = vmatpush.msra.mxu0 %v695
        %713 = vmatmul.f32.gmra.mxu0 %v691
        %v714 = vpop.f32.mrf.mxu0
        %v715 = vadd.f32 0.0, %v714
        %716 = vdwg.mxu0
        %s717 = scalar_lea.vmem %s1, 8
        %v718 = vld [vmem:[%s717] sm:$0xf]
        %719 = vrot.lane.b32.xlu0 %v669, 120
        %v720 = vpop.permute.xlu0 %719
        %v721 = vsel %vm690, %v720, 0
        %v724 = vsel %vm693, %v718, 0
        %726 = vmatpush.msra.mxu0 0.0
        %727 = vmatpush.msra.mxu0 0.0
        %728 = vmatpush.msra.mxu0 0.0
        %729 = vmatpush.msra.mxu0 0.0
        %730 = vmatpush.msra.mxu0 0.0
        %731 = vmatpush.msra.mxu0 0.0
        %732 = vmatpush.msra.mxu0 0.0
        %733 = vmatpush.msra.mxu0 0.0
        %734 = vmatpush.msra.mxu0 0.0
        %735 = vmatpush.msra.mxu0 0.0
        %736 = vmatpush.msra.mxu0 0.0
        %737 = vmatpush.msra.mxu0 0.0
        %738 = vmatpush.msra.mxu0 0.0
        %739 = vmatpush.msra.mxu0 0.0
        %740 = vmatpush.msra.mxu0 0.0
        %741 = vmatpush.msra.mxu0 %v724
        %742 = vmatmul.f32.gmra.mxu0 %v721
        %v743 = vpop.f32.mrf.mxu0
        %v744 = vadd.f32 0.0, %v743
        %745 = vdwg.mxu0
        %s746 = scalar_lea.vmem %s1, 12
        %v747 = vld [vmem:[%s746] sm:$0xf]
        %748 = vrot.lane.b32.xlu0 %v669, 116
        %v749 = vpop.permute.xlu0 %748
        %v750 = vsel %vm690, %v749, 0
        %v753 = vsel %vm693, %v747, 0
        %755 = vmatpush.msra.mxu0 0.0
        %756 = vmatpush.msra.mxu0 0.0
        %757 = vmatpush.msra.mxu0 0.0
        %758 = vmatpush.msra.mxu0 0.0
        %759 = vmatpush.msra.mxu0 0.0
        %760 = vmatpush.msra.mxu0 0.0
        %761 = vmatpush.msra.mxu0 0.0
        %762 = vmatpush.msra.mxu0 0.0
        %763 = vmatpush.msra.mxu0 0.0
        %764 = vmatpush.msra.mxu0 0.0
        %765 = vmatpush.msra.mxu0 0.0
        %766 = vmatpush.msra.mxu0 0.0
        %767 = vmatpush.msra.mxu0 0.0
        %768 = vmatpush.msra.mxu0 0.0
        %769 = vmatpush.msra.mxu0 0.0
        %770 = vmatpush.msra.mxu0 %v753
        %771 = vmatmul.f32.gmra.mxu0 %v750
        %v772 = vpop.f32.mrf.mxu0
        %v773 = vadd.f32 0.0, %v772
        %774 = vdwg.mxu0
        %s775 = scalar_lea.vmem %s1, 16
        %v776 = vld [vmem:[%s775] sm:$0xf]
        %777 = vrot.lane.b32.xlu0 %v669, 112
        %v778 = vpop.permute.xlu0 %777
        %v779 = vsel %vm690, %v778, 0
        %v782 = vsel %vm693, %v776, 0
        %784 = vmatpush.msra.mxu0 0.0
        %785 = vmatpush.msra.mxu0 0.0
        %786 = vmatpush.msra.mxu0 0.0
        %787 = vmatpush.msra.mxu0 0.0
        %788 = vmatpush.msra.mxu0 0.0
        %789 = vmatpush.msra.mxu0 0.0
        %790 = vmatpush.msra.mxu0 0.0
        %791 = vmatpush.msra.mxu0 0.0
        %792 = vmatpush.msra.mxu0 0.0
        %793 = vmatpush.msra.mxu0 0.0
        %794 = vmatpush.msra.mxu0 0.0
        %795 = vmatpush.msra.mxu0 0.0
        %796 = vmatpush.msra.mxu0 0.0
        %797 = vmatpush.msra.mxu0 0.0
        %798 = vmatpush.msra.mxu0 0.0
        %799 = vmatpush.msra.mxu0 %v782
        %800 = vmatmul.f32.gmra.mxu0 %v779
        %v801 = vpop.f32.mrf.mxu0
        %v802 = vadd.f32 0.0, %v801
        %803 = vdwg.mxu0
        %s804 = scalar_lea.vmem %s1, 20
        %v805 = vld [vmem:[%s804] sm:$0xf]
        %806 = vrot.lane.b32.xlu0 %v669, 108
        %v807 = vpop.permute.xlu0 %806
        %v808 = vsel %vm690, %v807, 0
        %v811 = vsel %vm693, %v805, 0
        %813 = vmatpush.msra.mxu0 0.0
        %814 = vmatpush.msra.mxu0 0.0
        %815 = vmatpush.msra.mxu0 0.0
        %816 = vmatpush.msra.mxu0 0.0
        %817 = vmatpush.msra.mxu0 0.0
        %818 = vmatpush.msra.mxu0 0.0
        %819 = vmatpush.msra.mxu0 0.0
        %820 = vmatpush.msra.mxu0 0.0
        %821 = vmatpush.msra.mxu0 0.0
        %822 = vmatpush.msra.mxu0 0.0
        %823 = vmatpush.msra.mxu0 0.0
        %824 = vmatpush.msra.mxu0 0.0
        %825 = vmatpush.msra.mxu0 0.0
        %826 = vmatpush.msra.mxu0 0.0
        %827 = vmatpush.msra.mxu0 0.0
        %828 = vmatpush.msra.mxu0 %v811
        %829 = vmatmul.f32.gmra.mxu0 %v808
        %v830 = vpop.f32.mrf.mxu0
        %v831 = vadd.f32 0.0, %v830
        %832 = vdwg.mxu0
        %s833 = scalar_lea.vmem %s1, 24
        %v834 = vld [vmem:[%s833] sm:$0xf]
        %835 = vrot.lane.b32.xlu0 %v669, 104
        %v836 = vpop.permute.xlu0 %835
        %v837 = vsel %vm690, %v836, 0
        %v840 = vsel %vm693, %v834, 0
        %842 = vmatpush.msra.mxu0 0.0
        %843 = vmatpush.msra.mxu0 0.0
        %844 = vmatpush.msra.mxu0 0.0
        %845 = vmatpush.msra.mxu0 0.0
        %846 = vmatpush.msra.mxu0 0.0
        %847 = vmatpush.msra.mxu0 0.0
        %848 = vmatpush.msra.mxu0 0.0
        %849 = vmatpush.msra.mxu0 0.0
        %850 = vmatpush.msra.mxu0 0.0
        %851 = vmatpush.msra.mxu0 0.0
        %852 = vmatpush.msra.mxu0 0.0
        %853 = vmatpush.msra.mxu0 0.0
        %854 = vmatpush.msra.mxu0 0.0
        %855 = vmatpush.msra.mxu0 0.0
        %856 = vmatpush.msra.mxu0 0.0
        %857 = vmatpush.msra.mxu0 %v840
        %858 = vmatmul.f32.gmra.mxu0 %v837
        %v859 = vpop.f32.mrf.mxu0
        %v860 = vadd.f32 0.0, %v859
        %861 = vdwg.mxu0
        %s862 = scalar_lea.vmem %s1, 28
        %v863 = vld [vmem:[%s862] sm:$0xf]
        %864 = vrot.lane.b32.xlu0 %v669, 100
        %v865 = vpop.permute.xlu0 %864
        %v866 = vsel %vm690, %v865, 0
        %v869 = vsel %vm693, %v863, 0
        %871 = vmatpush.msra.mxu0 0.0
        %872 = vmatpush.msra.mxu0 0.0
        %873 = vmatpush.msra.mxu0 0.0
        %874 = vmatpush.msra.mxu0 0.0
        %875 = vmatpush.msra.mxu0 0.0
        %876 = vmatpush.msra.mxu0 0.0
        %877 = vmatpush.msra.mxu0 0.0
        %878 = vmatpush.msra.mxu0 0.0
        %879 = vmatpush.msra.mxu0 0.0
        %880 = vmatpush.msra.mxu0 0.0
        %881 = vmatpush.msra.mxu0 0.0
        %882 = vmatpush.msra.mxu0 0.0
        %883 = vmatpush.msra.mxu0 0.0
        %884 = vmatpush.msra.mxu0 0.0
        %885 = vmatpush.msra.mxu0 0.0
        %886 = vmatpush.msra.mxu0 %v869
        %887 = vmatmul.f32.gmra.mxu0 %v866
        %v888 = vpop.f32.mrf.mxu0
        %v889 = vadd.f32 0.0, %v888
        %890 = vdwg.mxu0
        %v892 = vperm.slane %v670, 0
        %v894 = vsel %vm690, %v669, 0
        %v897 = vsel %vm693, %v684, 0
        %899 = vmatpush.msra.mxu0 0.0
        %900 = vmatpush.msra.mxu0 0.0
        %901 = vmatpush.msra.mxu0 0.0
        %902 = vmatpush.msra.mxu0 0.0
        %903 = vmatpush.msra.mxu0 0.0
        %904 = vmatpush.msra.mxu0 0.0
        %905 = vmatpush.msra.mxu0 0.0
        %906 = vmatpush.msra.mxu0 0.0
        %907 = vmatpush.msra.mxu0 0.0
        %908 = vmatpush.msra.mxu0 0.0
        %909 = vmatpush.msra.mxu0 0.0
        %910 = vmatpush.msra.mxu0 0.0
        %911 = vmatpush.msra.mxu0 0.0
        %912 = vmatpush.msra.mxu0 0.0
        %913 = vmatpush.msra.mxu0 0.0
        %914 = vmatpush.msra.mxu0 %v897
        %915 = vmatmul.f32.gmra.mxu0 %v894
        %v916 = vpop.f32.mrf.mxu0
        %v917 = vadd.f32 %v892, %v916
        %918 = vdwg.mxu0
        %v919 = vperm.slane %v671, 0
        %v920 = vmul.f32 %v919, %v917
        %v921 = vperm.slane %v672, 0
        %v922 = vadd.f32 %v920, %v921
        %v923 = vxor.u32 %v922, 2147483648
        %v924 = vmul.f32 %v923, 1.442695
        %v925 = vpow.pop %v924
        %v926 = vadd.f32 %v925, 1.0
        %v927 = vrcp.pop %v926
        %v928 = vmul.f32 %v926, %v927
        %v929 = vsub.f32 1.0, %v928
        %v930 = vmul.f32 %v927, %v929
        %v931 = vadd.f32 %v927, %v930
        %vm932 = vweird.f32 %v926
        %vm933 = vweird.f32 %v927
        %vm934 = vmor %vm932, %vm933
        %v935 = vsel %vm934, %v927, %v931
        %v936 = vand.u32 2147483647, %v926
        %vm937 = vcmp.eq.f32.partialorder %v936, 8.507059e+37
        %v938 = vand.u32 %v926, 2147483648
        %v939 = vor.u32 1.1754944e-38, %v938
        %v940 = vsel %vm937, %v939, %v935
        %v941 = vmul.f32 1.0, %v940
        %v942 = vmul.f32 %v715, %v715
        %v943 = vmul.f32 %v744, %v744
        %v944 = vadd.f32 %v942, %v943
        %v945 = vmul.f32 %v773, %v773
        %v946 = vadd.f32 %v944, %v945
        %v947 = vperm.slane %v671, 1
        %v948 = vmul.f32 %v947, %v946
        %v949 = vperm.slane %v672, 1
        %v950 = vadd.f32 %v948, %v949
        %v951 = vxor.u32 %v950, 2147483648
        %v952 = vmul.f32 %v951, 1.442695
        %v953 = vpow.pop %v952
        %v954 = vadd.f32 %v953, 1.0
        %v955 = vrcp.pop %v954
        %v956 = vmul.f32 %v954, %v955
        %v957 = vsub.f32 1.0, %v956
        %v958 = vmul.f32 %v955, %v957
        %v959 = vadd.f32 %v955, %v958
        %vm960 = vweird.f32 %v954
        %vm961 = vweird.f32 %v955
        %vm962 = vmor %vm960, %vm961
        %v963 = vsel %vm962, %v955, %v959
        %v964 = vand.u32 2147483647, %v954
        %vm965 = vcmp.eq.f32.partialorder %v964, 8.507059e+37
        %v966 = vand.u32 %v954, 2147483648
        %v967 = vor.u32 1.1754944e-38, %v966
        %v968 = vsel %vm965, %v967, %v963
        %v969 = vmul.f32 1.0, %v968
        %v970 = vmul.f32 %v802, %v802
        %v971 = vmul.f32 %v831, %v831
        %v972 = vadd.f32 %v970, %v971
        %v973 = vmul.f32 %v860, %v860
        %v974 = vadd.f32 %v972, %v973
        %v975 = vperm.slane %v671, 2
        %v976 = vmul.f32 %v975, %v974
        %v977 = vperm.slane %v672, 2
        %v978 = vadd.f32 %v976, %v977
        %v979 = vxor.u32 %v978, 2147483648
        %v980 = vmul.f32 %v979, 1.442695
        %v981 = vpow.pop %v980
        %v982 = vadd.f32 %v981, 1.0
        %v983 = vrcp.pop %v982
        %v984 = vmul.f32 %v982, %v983
        %v985 = vsub.f32 1.0, %v984
        %v986 = vmul.f32 %v983, %v985
        %v987 = vadd.f32 %v983, %v986
        %vm988 = vweird.f32 %v982
        %vm989 = vweird.f32 %v983
        %vm990 = vmor %vm988, %vm989
        %v991 = vsel %vm990, %v983, %v987
        %v992 = vand.u32 2147483647, %v982
        %vm993 = vcmp.eq.f32.partialorder %v992, 8.507059e+37
        %v994 = vand.u32 %v982, 2147483648
        %v995 = vor.u32 1.1754944e-38, %v994
        %v996 = vsel %vm993, %v995, %v991
        %v997 = vmul.f32 1.0, %v996
        %v998 = vmul.f32 %v889, %v889
        %v999 = vperm.slane %v671, 3
        %v1000 = vmul.f32 %v999, %v998
        %v1001 = vperm.slane %v672, 3
        %v1002 = vadd.f32 %v1000, %v1001
        %v1003 = vxor.u32 %v1002, 2147483648
        %v1004 = vmul.f32 %v1003, 1.442695
        %v1005 = vpow.pop %v1004
        %v1006 = vadd.f32 %v1005, 1.0
        %v1007 = vrcp.pop %v1006
        %v1008 = vmul.f32 %v1006, %v1007
        %v1009 = vsub.f32 1.0, %v1008
        %v1010 = vmul.f32 %v1007, %v1009
        %v1011 = vadd.f32 %v1007, %v1010
        %vm1012 = vweird.f32 %v1006
        %vm1013 = vweird.f32 %v1007
        %vm1014 = vmor %vm1012, %vm1013
        %v1015 = vsel %vm1014, %v1007, %v1011
        %v1016 = vand.u32 2147483647, %v1006
        %vm1017 = vcmp.eq.f32.partialorder %v1016, 8.507059e+37
        %v1018 = vand.u32 %v1006, 2147483648
        %v1019 = vor.u32 1.1754944e-38, %v1018
        %v1020 = vsel %vm1017, %v1019, %v1015
        %v1021 = vmul.f32 1.0, %v1020
        %v1022 = vmul.f32 %v941, %v917
        %v1023 = vmul.f32 %v969, %v715
        %v1024 = vmul.f32 %v969, %v744
        %v1025 = vmul.f32 %v969, %v773
        %v1026 = vmul.f32 %v997, %v802
        %v1027 = vmul.f32 %v997, %v831
        %v1028 = vmul.f32 %v997, %v860
        %v1029 = vmul.f32 %v1021, %v889
        %v1030 = vld [vmem:[%s5] sm:$0xff]
        %v1031 = vld [vmem:[%s5 + $0x8] sm:$0xff]
        %v1032 = vld [vmem:[%s5 + $0x10] sm:$0xff]
        %v1033 = vld [vmem:[%s5 + $0x18] sm:$0xff]
        %vm1034 = vcmask 261120
        %v1036 = vsel %vm1034, %v1022, 0
        %1038 = vmatpush.msra.mxu0 0.0
        %1039 = vmatpush.msra.mxu0 0.0
        %1040 = vmatpush.msra.mxu0 0.0
        %1041 = vmatpush.msra.mxu0 0.0
        %1042 = vmatpush.msra.mxu0 0.0
        %1043 = vmatpush.msra.mxu0 0.0
        %1044 = vmatpush.msra.mxu0 0.0
        %1045 = vmatpush.msra.mxu0 0.0
        %1046 = vmatpush.msra.mxu0 0.0
        %1047 = vmatpush.msra.mxu0 0.0
        %1048 = vmatpush.msra.mxu0 0.0
        %1049 = vmatpush.msra.mxu0 0.0
        %1050 = vmatpush.msra.mxu0 %v1033
        %1051 = vmatpush.msra.mxu0 %v1032
        %1052 = vmatpush.msra.mxu0 %v1031
        %1053 = vmatpush.msra.mxu0 %v1030
        %1054 = vmatmul.f32.gmra.mxu0 %v1036
        %v1055 = vpop.f32.mrf.mxu0
        %v1056 = vadd.f32 0.0, %v1055
        %1057 = vdwg.mxu0
        %s1058 = scalar_lea.vmem %s5, 32
        %v1059 = vld [vmem:[%s1058] sm:$0xff]
        %v1060 = vld [vmem:[%s1058 + $0x8] sm:$0xff]
        %v1061 = vld [vmem:[%s1058 + $0x10] sm:$0xff]
        %v1062 = vld [vmem:[%s1058 + $0x18] sm:$0xff]
        %v1064 = vsel %vm1034, %v1023, 0
        %1066 = vmatpush.msra.mxu0 0.0
        %1067 = vmatpush.msra.mxu0 0.0
        %1068 = vmatpush.msra.mxu0 0.0
        %1069 = vmatpush.msra.mxu0 0.0
        %1070 = vmatpush.msra.mxu0 0.0
        %1071 = vmatpush.msra.mxu0 0.0
        %1072 = vmatpush.msra.mxu0 0.0
        %1073 = vmatpush.msra.mxu0 0.0
        %1074 = vmatpush.msra.mxu0 0.0
        %1075 = vmatpush.msra.mxu0 0.0
        %1076 = vmatpush.msra.mxu0 0.0
        %1077 = vmatpush.msra.mxu0 0.0
        %1078 = vmatpush.msra.mxu0 %v1062
        %1079 = vmatpush.msra.mxu0 %v1061
        %1080 = vmatpush.msra.mxu0 %v1060
        %1081 = vmatpush.msra.mxu0 %v1059
        %1082 = vmatmul.f32.gmra.mxu0 %v1064
        %v1083 = vpop.f32.mrf.mxu0
        %v1084 = vadd.f32 0.0, %v1083
        %1085 = vdwg.mxu0
        %s1086 = scalar_lea.vmem %s5, 64
        %v1087 = vld [vmem:[%s1086] sm:$0xff]
        %v1088 = vld [vmem:[%s1086 + $0x8] sm:$0xff]
        %v1089 = vld [vmem:[%s1086 + $0x10] sm:$0xff]
        %v1090 = vld [vmem:[%s1086 + $0x18] sm:$0xff]
        %v1092 = vsel %vm1034, %v1024, 0
        %1094 = vmatpush.msra.mxu0 0.0
        %1095 = vmatpush.msra.mxu0 0.0
        %1096 = vmatpush.msra.mxu0 0.0
        %1097 = vmatpush.msra.mxu0 0.0
        %1098 = vmatpush.msra.mxu0 0.0
        %1099 = vmatpush.msra.mxu0 0.0
        %1100 = vmatpush.msra.mxu0 0.0
        %1101 = vmatpush.msra.mxu0 0.0
        %1102 = vmatpush.msra.mxu0 0.0
        %1103 = vmatpush.msra.mxu0 0.0
        %1104 = vmatpush.msra.mxu0 0.0
        %1105 = vmatpush.msra.mxu0 0.0
        %1106 = vmatpush.msra.mxu0 %v1090
        %1107 = vmatpush.msra.mxu0 %v1089
        %1108 = vmatpush.msra.mxu0 %v1088
        %1109 = vmatpush.msra.mxu0 %v1087
        %1110 = vmatmul.f32.gmra.mxu0 %v1092
        %v1111 = vpop.f32.mrf.mxu0
        %v1112 = vadd.f32 0.0, %v1111
        %1113 = vdwg.mxu0
        %s1114 = scalar_lea.vmem %s5, 96
        %v1115 = vld [vmem:[%s1114] sm:$0xff]
        %v1116 = vld [vmem:[%s1114 + $0x8] sm:$0xff]
        %v1117 = vld [vmem:[%s1114 + $0x10] sm:$0xff]
        %v1118 = vld [vmem:[%s1114 + $0x18] sm:$0xff]
        %v1120 = vsel %vm1034, %v1025, 0
        %1122 = vmatpush.msra.mxu0 0.0
        %1123 = vmatpush.msra.mxu0 0.0
        %1124 = vmatpush.msra.mxu0 0.0
        %1125 = vmatpush.msra.mxu0 0.0
        %1126 = vmatpush.msra.mxu0 0.0
        %1127 = vmatpush.msra.mxu0 0.0
        %1128 = vmatpush.msra.mxu0 0.0
        %1129 = vmatpush.msra.mxu0 0.0
        %1130 = vmatpush.msra.mxu0 0.0
        %1131 = vmatpush.msra.mxu0 0.0
        %1132 = vmatpush.msra.mxu0 0.0
        %1133 = vmatpush.msra.mxu0 0.0
        %1134 = vmatpush.msra.mxu0 %v1118
        %1135 = vmatpush.msra.mxu0 %v1117
        %1136 = vmatpush.msra.mxu0 %v1116
        %1137 = vmatpush.msra.mxu0 %v1115
        %1138 = vmatmul.f32.gmra.mxu0 %v1120
        %v1139 = vpop.f32.mrf.mxu0
        %v1140 = vadd.f32 0.0, %v1139
        %1141 = vdwg.mxu0
        %s1142 = scalar_lea.vmem %s5, 128
        %v1143 = vld [vmem:[%s1142] sm:$0xff]
        %v1144 = vld [vmem:[%s1142 + $0x8] sm:$0xff]
        %v1145 = vld [vmem:[%s1142 + $0x10] sm:$0xff]
        %v1146 = vld [vmem:[%s1142 + $0x18] sm:$0xff]
        %v1148 = vsel %vm1034, %v1026, 0
        %1150 = vmatpush.msra.mxu0 0.0
        %1151 = vmatpush.msra.mxu0 0.0
        %1152 = vmatpush.msra.mxu0 0.0
        %1153 = vmatpush.msra.mxu0 0.0
        %1154 = vmatpush.msra.mxu0 0.0
        %1155 = vmatpush.msra.mxu0 0.0
        %1156 = vmatpush.msra.mxu0 0.0
        %1157 = vmatpush.msra.mxu0 0.0
        %1158 = vmatpush.msra.mxu0 0.0
        %1159 = vmatpush.msra.mxu0 0.0
        %1160 = vmatpush.msra.mxu0 0.0
        %1161 = vmatpush.msra.mxu0 0.0
        %1162 = vmatpush.msra.mxu0 %v1146
        %1163 = vmatpush.msra.mxu0 %v1145
        %1164 = vmatpush.msra.mxu0 %v1144
        %1165 = vmatpush.msra.mxu0 %v1143
        %1166 = vmatmul.f32.gmra.mxu0 %v1148
        %v1167 = vpop.f32.mrf.mxu0
        %v1168 = vadd.f32 0.0, %v1167
        %1169 = vdwg.mxu0
        %s1170 = scalar_lea.vmem %s5, 160
        %v1171 = vld [vmem:[%s1170] sm:$0xff]
        %v1172 = vld [vmem:[%s1170 + $0x8] sm:$0xff]
        %v1173 = vld [vmem:[%s1170 + $0x10] sm:$0xff]
        %v1174 = vld [vmem:[%s1170 + $0x18] sm:$0xff]
        %v1176 = vsel %vm1034, %v1027, 0
        %1178 = vmatpush.msra.mxu0 0.0
        %1179 = vmatpush.msra.mxu0 0.0
        %1180 = vmatpush.msra.mxu0 0.0
        %1181 = vmatpush.msra.mxu0 0.0
        %1182 = vmatpush.msra.mxu0 0.0
        %1183 = vmatpush.msra.mxu0 0.0
        %1184 = vmatpush.msra.mxu0 0.0
        %1185 = vmatpush.msra.mxu0 0.0
        %1186 = vmatpush.msra.mxu0 0.0
        %1187 = vmatpush.msra.mxu0 0.0
        %1188 = vmatpush.msra.mxu0 0.0
        %1189 = vmatpush.msra.mxu0 0.0
        %1190 = vmatpush.msra.mxu0 %v1174
        %1191 = vmatpush.msra.mxu0 %v1173
        %1192 = vmatpush.msra.mxu0 %v1172
        %1193 = vmatpush.msra.mxu0 %v1171
        %1194 = vmatmul.f32.gmra.mxu0 %v1176
        %v1195 = vpop.f32.mrf.mxu0
        %v1196 = vadd.f32 0.0, %v1195
        %1197 = vdwg.mxu0
        %s1198 = scalar_lea.vmem %s5, 192
        %v1199 = vld [vmem:[%s1198] sm:$0xff]
        %v1200 = vld [vmem:[%s1198 + $0x8] sm:$0xff]
        %v1201 = vld [vmem:[%s1198 + $0x10] sm:$0xff]
        %v1202 = vld [vmem:[%s1198 + $0x18] sm:$0xff]
        %v1204 = vsel %vm1034, %v1028, 0
        %1206 = vmatpush.msra.mxu0 0.0
        %1207 = vmatpush.msra.mxu0 0.0
        %1208 = vmatpush.msra.mxu0 0.0
        %1209 = vmatpush.msra.mxu0 0.0
        %1210 = vmatpush.msra.mxu0 0.0
        %1211 = vmatpush.msra.mxu0 0.0
        %1212 = vmatpush.msra.mxu0 0.0
        %1213 = vmatpush.msra.mxu0 0.0
        %1214 = vmatpush.msra.mxu0 0.0
        %1215 = vmatpush.msra.mxu0 0.0
        %1216 = vmatpush.msra.mxu0 0.0
        %1217 = vmatpush.msra.mxu0 0.0
        %1218 = vmatpush.msra.mxu0 %v1202
        %1219 = vmatpush.msra.mxu0 %v1201
        %1220 = vmatpush.msra.mxu0 %v1200
        %1221 = vmatpush.msra.mxu0 %v1199
        %1222 = vmatmul.f32.gmra.mxu0 %v1204
        %v1223 = vpop.f32.mrf.mxu0
        %v1224 = vadd.f32 0.0, %v1223
        %1225 = vdwg.mxu0
        %s1226 = scalar_lea.vmem %s5, 224
        %v1227 = vld [vmem:[%s1226] sm:$0xff]
        %v1228 = vld [vmem:[%s1226 + $0x8] sm:$0xff]
        %v1229 = vld [vmem:[%s1226 + $0x10] sm:$0xff]
        %v1230 = vld [vmem:[%s1226 + $0x18] sm:$0xff]
        %v1232 = vsel %vm1034, %v1029, 0
        %1234 = vmatpush.msra.mxu0 0.0
        %1235 = vmatpush.msra.mxu0 0.0
        %1236 = vmatpush.msra.mxu0 0.0
        %1237 = vmatpush.msra.mxu0 0.0
        %1238 = vmatpush.msra.mxu0 0.0
        %1239 = vmatpush.msra.mxu0 0.0
        %1240 = vmatpush.msra.mxu0 0.0
        %1241 = vmatpush.msra.mxu0 0.0
        %1242 = vmatpush.msra.mxu0 0.0
        %1243 = vmatpush.msra.mxu0 0.0
        %1244 = vmatpush.msra.mxu0 0.0
        %1245 = vmatpush.msra.mxu0 0.0
        %1246 = vmatpush.msra.mxu0 %v1230
        %1247 = vmatpush.msra.mxu0 %v1229
        %1248 = vmatpush.msra.mxu0 %v1228
        %1249 = vmatpush.msra.mxu0 %v1227
        %1250 = vmatmul.f32.gmra.mxu0 %v1232
        %v1251 = vpop.f32.mrf.mxu0
        %v1252 = vadd.f32 0.0, %v1251
        %1253 = vdwg.mxu0
        %v1254 = vmul.f32 %v1056, %v1056
        %v1255 = vmul.f32 %v1254, %v1254
        %v1256 = vadd.f32 %v1255, 1e-16
        %v1257 = vrsqrt.pop %v1256
        %v1258 = vmul.f32 %v1257, %v1256
        %v1259 = vmul.f32 %v1258, %v1257
        %v1260 = vmul.f32 0.5, %v1259
        %v1261 = vsub.f32 1.5, %v1260
        %v1262 = vmul.f32 %v1257, %v1261
        %v1263 = vmul.f32 %v1256, %v1262
        %vm1264 = vcmp.eq.f32.partialorder %v1256, inf
        %v1265 = vsel %vm1264, %v1256, %v1263
        %vm1266 = vcmp.eq.f32.partialorder %v1256, 0.0
        %v1267 = vand.u32 %v1256, 2147483648
        %v1268 = vsel %vm1266, %v1267, %v1265
        %v1269 = vrsqrt.pop %v1268
        %v1270 = vmul.f32 %v1269, %v1268
        %v1271 = vmul.f32 %v1270, %v1269
        %v1272 = vmul.f32 0.5, %v1271
        %v1273 = vsub.f32 1.5, %v1272
        %v1274 = vmul.f32 %v1269, %v1273
        %v1275 = vmul.f32 %v1268, %v1274
        %vm1276 = vcmp.eq.f32.partialorder %v1268, inf
        %v1277 = vsel %vm1276, %v1268, %v1275
        %vm1278 = vcmp.eq.f32.partialorder %v1268, 0.0
        %v1279 = vand.u32 %v1268, 2147483648
        %v1280 = vsel %vm1278, %v1279, %v1277
        %v1281 = vxor.u32 %v673, 2147483648
        %v1282 = vmul.f32 %v1281, 1.442695
        %v1283 = vpow.pop %v1282
        %v1284 = vadd.f32 %v1283, 1.0
        %v1285 = vrcp.pop %v1284
        %v1286 = vmul.f32 %v1284, %v1285
        %v1287 = vsub.f32 1.0, %v1286
        %v1288 = vmul.f32 %v1285, %v1287
        %v1289 = vadd.f32 %v1285, %v1288
        %vm1290 = vweird.f32 %v1284
        %vm1291 = vweird.f32 %v1285
        %vm1292 = vmor %vm1290, %vm1291
        %v1293 = vsel %vm1292, %v1285, %v1289
        %v1294 = vand.u32 2147483647, %v1284
        %vm1295 = vcmp.eq.f32.partialorder %v1294, 8.507059e+37
        %v1296 = vand.u32 %v1284, 2147483648
        %v1297 = vor.u32 1.1754944e-38, %v1296
        %v1298 = vsel %vm1295, %v1297, %v1293
        %v1299 = vmul.f32 1.0, %v1298
        %v1300 = vsub.f32 %v1280, 1.0
        %v1301 = vperm.slane %v1299, 0
        %v1302 = vmul.f32 %v1301, %v1300
        %v1303 = vadd.f32 %v1302, 1.0
        %v1304 = vadd.f32 %v1303, 1e-06
        %v1305 = vrcp.pop %v1304
        %v1306 = vmul.f32 %v1304, %v1305
        %v1307 = vsub.f32 1.0, %v1306
        %v1308 = vmul.f32 %v1305, %v1307
        %v1309 = vadd.f32 %v1305, %v1308
        %vm1310 = vweird.f32 %v1304
        %vm1311 = vweird.f32 %v1305
        %vm1312 = vmor %vm1310, %vm1311
        %v1313 = vsel %vm1312, %v1305, %v1309
        %v1314 = vand.u32 2147483647, %v1304
        %vm1315 = vcmp.eq.f32.partialorder %v1314, 8.507059e+37
        %v1316 = vand.u32 %v1304, 2147483648
        %v1317 = vor.u32 1.1754944e-38, %v1316
        %v1318 = vsel %vm1315, %v1317, %v1313
        %v1319 = vmul.f32 1.0, %v1318
        %v1320 = vmul.f32 %v1056, %v1319
        %v1321 = vmul.f32 %v1084, %v1084
        %v1322 = vmul.f32 %v1112, %v1112
        %v1323 = vadd.f32 %v1321, %v1322
        %v1324 = vmul.f32 %v1140, %v1140
        %v1325 = vadd.f32 %v1323, %v1324
        %v1326 = vmul.f32 %v1325, %v1325
        %v1327 = vadd.f32 %v1326, 1e-16
        %v1328 = vrsqrt.pop %v1327
        %v1329 = vmul.f32 %v1328, %v1327
        %v1330 = vmul.f32 %v1329, %v1328
        %v1331 = vmul.f32 0.5, %v1330
        %v1332 = vsub.f32 1.5, %v1331
        %v1333 = vmul.f32 %v1328, %v1332
        %v1334 = vmul.f32 %v1327, %v1333
        %vm1335 = vcmp.eq.f32.partialorder %v1327, inf
        %v1336 = vsel %vm1335, %v1327, %v1334
        %vm1337 = vcmp.eq.f32.partialorder %v1327, 0.0
        %v1338 = vand.u32 %v1327, 2147483648
        %v1339 = vsel %vm1337, %v1338, %v1336
        %v1340 = vrsqrt.pop %v1339
        %v1341 = vmul.f32 %v1340, %v1339
        %v1342 = vmul.f32 %v1341, %v1340
        %v1343 = vmul.f32 0.5, %v1342
        %v1344 = vsub.f32 1.5, %v1343
        %v1345 = vmul.f32 %v1340, %v1344
        %v1346 = vmul.f32 %v1339, %v1345
        %vm1347 = vcmp.eq.f32.partialorder %v1339, inf
        %v1348 = vsel %vm1347, %v1339, %v1346
        %vm1349 = vcmp.eq.f32.partialorder %v1339, 0.0
        %v1350 = vand.u32 %v1339, 2147483648
        %v1351 = vsel %vm1349, %v1350, %v1348
        %v1352 = vsub.f32 %v1351, 1.0
        %v1353 = vperm.slane %v1299, 1
        %v1354 = vmul.f32 %v1353, %v1352
        %v1355 = vadd.f32 %v1354, 1.0
        %v1356 = vadd.f32 %v1355, 1e-06
        %v1357 = vrcp.pop %v1356
        %v1358 = vmul.f32 %v1356, %v1357
        %v1359 = vsub.f32 1.0, %v1358
        %v1360 = vmul.f32 %v1357, %v1359
        %v1361 = vadd.f32 %v1357, %v1360
        %vm1362 = vweird.f32 %v1356
        %vm1363 = vweird.f32 %v1357
        %vm1364 = vmor %vm1362, %vm1363
        %v1365 = vsel %vm1364, %v1357, %v1361
        %v1366 = vand.u32 2147483647, %v1356
        %vm1367 = vcmp.eq.f32.partialorder %v1366, 8.507059e+37
        %v1368 = vand.u32 %v1356, 2147483648
        %v1369 = vor.u32 1.1754944e-38, %v1368
        %v1370 = vsel %vm1367, %v1369, %v1365
        %v1371 = vmul.f32 1.0, %v1370
        %v1372 = vmul.f32 %v1084, %v1371
        %v1373 = vmul.f32 %v1112, %v1371
        %v1374 = vmul.f32 %v1140, %v1371
        %v1375 = vmul.f32 %v1168, %v1168
        %v1376 = vmul.f32 %v1196, %v1196
        %v1377 = vadd.f32 %v1375, %v1376
        %v1378 = vmul.f32 %v1224, %v1224
        %v1379 = vadd.f32 %v1377, %v1378
        %v1380 = vmul.f32 %v1379, %v1379
        %v1381 = vadd.f32 %v1380, 1e-16
        %v1382 = vrsqrt.pop %v1381
        %v1383 = vmul.f32 %v1382, %v1381
        %v1384 = vmul.f32 %v1383, %v1382
        %v1385 = vmul.f32 0.5, %v1384
        %v1386 = vsub.f32 1.5, %v1385
        %v1387 = vmul.f32 %v1382, %v1386
        %v1388 = vmul.f32 %v1381, %v1387
        %vm1389 = vcmp.eq.f32.partialorder %v1381, inf
        %v1390 = vsel %vm1389, %v1381, %v1388
        %vm1391 = vcmp.eq.f32.partialorder %v1381, 0.0
        %v1392 = vand.u32 %v1381, 2147483648
        %v1393 = vsel %vm1391, %v1392, %v1390
        %v1394 = vrsqrt.pop %v1393
        %v1395 = vmul.f32 %v1394, %v1393
        %v1396 = vmul.f32 %v1395, %v1394
        %v1397 = vmul.f32 0.5, %v1396
        %v1398 = vsub.f32 1.5, %v1397
        %v1399 = vmul.f32 %v1394, %v1398
        %v1400 = vmul.f32 %v1393, %v1399
        %vm1401 = vcmp.eq.f32.partialorder %v1393, inf
        %v1402 = vsel %vm1401, %v1393, %v1400
        %vm1403 = vcmp.eq.f32.partialorder %v1393, 0.0
        %v1404 = vand.u32 %v1393, 2147483648
        %v1405 = vsel %vm1403, %v1404, %v1402
        %v1406 = vsub.f32 %v1405, 1.0
        %v1407 = vperm.slane %v1299, 2
        %v1408 = vmul.f32 %v1407, %v1406
        %v1409 = vadd.f32 %v1408, 1.0
        %v1410 = vadd.f32 %v1409, 1e-06
        %v1411 = vrcp.pop %v1410
        %v1412 = vmul.f32 %v1410, %v1411
        %v1413 = vsub.f32 1.0, %v1412
        %v1414 = vmul.f32 %v1411, %v1413
        %v1415 = vadd.f32 %v1411, %v1414
        %vm1416 = vweird.f32 %v1410
        %vm1417 = vweird.f32 %v1411
        %vm1418 = vmor %vm1416, %vm1417
        %v1419 = vsel %vm1418, %v1411, %v1415
        %v1420 = vand.u32 2147483647, %v1410
        %vm1421 = vcmp.eq.f32.partialorder %v1420, 8.507059e+37
        %v1422 = vand.u32 %v1410, 2147483648
        %v1423 = vor.u32 1.1754944e-38, %v1422
        %v1424 = vsel %vm1421, %v1423, %v1419
        %v1425 = vmul.f32 1.0, %v1424
        %v1426 = vmul.f32 %v1168, %v1425
        %v1427 = vmul.f32 %v1196, %v1425
        %v1428 = vmul.f32 %v1224, %v1425
        %v1429 = vmul.f32 %v1252, %v1252
        %v1430 = vmul.f32 %v1429, %v1429
        %v1431 = vadd.f32 %v1430, 1e-16
        %v1432 = vrsqrt.pop %v1431
        %v1433 = vmul.f32 %v1432, %v1431
        %v1434 = vmul.f32 %v1433, %v1432
        %v1435 = vmul.f32 0.5, %v1434
        %v1436 = vsub.f32 1.5, %v1435
        %v1437 = vmul.f32 %v1432, %v1436
        %v1438 = vmul.f32 %v1431, %v1437
        %vm1439 = vcmp.eq.f32.partialorder %v1431, inf
        %v1440 = vsel %vm1439, %v1431, %v1438
        %vm1441 = vcmp.eq.f32.partialorder %v1431, 0.0
        %v1442 = vand.u32 %v1431, 2147483648
        %v1443 = vsel %vm1441, %v1442, %v1440
        %v1444 = vrsqrt.pop %v1443
        %v1445 = vmul.f32 %v1444, %v1443
        %v1446 = vmul.f32 %v1445, %v1444
        %v1447 = vmul.f32 0.5, %v1446
        %v1448 = vsub.f32 1.5, %v1447
        %v1449 = vmul.f32 %v1444, %v1448
        %v1450 = vmul.f32 %v1443, %v1449
        %vm1451 = vcmp.eq.f32.partialorder %v1443, inf
        %v1452 = vsel %vm1451, %v1443, %v1450
        %vm1453 = vcmp.eq.f32.partialorder %v1443, 0.0
        %v1454 = vand.u32 %v1443, 2147483648
        %v1455 = vsel %vm1453, %v1454, %v1452
        %v1456 = vsub.f32 %v1455, 1.0
        %v1457 = vperm.slane %v1299, 3
        %v1458 = vmul.f32 %v1457, %v1456
        %v1459 = vadd.f32 %v1458, 1.0
        %v1460 = vadd.f32 %v1459, 1e-06
        %v1461 = vrcp.pop %v1460
        %v1462 = vmul.f32 %v1460, %v1461
        %v1463 = vsub.f32 1.0, %v1462
        %v1464 = vmul.f32 %v1461, %v1463
        %v1465 = vadd.f32 %v1461, %v1464
        %vm1466 = vweird.f32 %v1460
        %vm1467 = vweird.f32 %v1461
        %vm1468 = vmor %vm1466, %vm1467
        %v1469 = vsel %vm1468, %v1461, %v1465
        %v1470 = vand.u32 2147483647, %v1460
        %vm1471 = vcmp.eq.f32.partialorder %v1470, 8.507059e+37
        %v1472 = vand.u32 %v1460, 2147483648
        %v1473 = vor.u32 1.1754944e-38, %v1472
        %v1474 = vsel %vm1471, %v1473, %v1469
        %v1475 = vmul.f32 1.0, %v1474
        %v1476 = vmul.f32 %v1252, %v1475
        %v1477 = vld [vmem:[#allocation2] sm:$0xff]
        %v1478 = vld [vmem:[#allocation2 + $0x8] sm:$0xff]
        %v1479 = vld [vmem:[#allocation2 + $0x10] sm:$0xff]
        %v1480 = vld [vmem:[#allocation2 + $0x18] sm:$0xff]
        %s1481 = scalar_lea.vmem [#allocation2], 32
        %v1482 = vld [vmem:[%s1481] sm:$0xff]
        %v1483 = vld [vmem:[%s1481 + $0x8] sm:$0xff]
        %v1484 = vld [vmem:[%s1481 + $0x10] sm:$0xff]
        %v1485 = vld [vmem:[%s1481 + $0x18] sm:$0xff]
        %s1486 = scalar_lea.vmem [#allocation2], 64
        %v1487 = vld [vmem:[%s1486] sm:$0xff]
        %v1488 = vld [vmem:[%s1486 + $0x8] sm:$0xff]
        %v1489 = vld [vmem:[%s1486 + $0x10] sm:$0xff]
        %v1490 = vld [vmem:[%s1486 + $0x18] sm:$0xff]
        %s1491 = scalar_lea.vmem [#allocation2], 96
        %v1492 = vld [vmem:[%s1491] sm:$0xff]
        %v1493 = vld [vmem:[%s1491 + $0x8] sm:$0xff]
        %v1494 = vld [vmem:[%s1491 + $0x10] sm:$0xff]
        %v1495 = vld [vmem:[%s1491 + $0x18] sm:$0xff]
        %s1496 = scalar_lea.vmem [#allocation2], 128
        %v1497 = vld [vmem:[%s1496] sm:$0xff]
        %v1498 = vld [vmem:[%s1496 + $0x8] sm:$0xff]
        %v1499 = vld [vmem:[%s1496 + $0x10] sm:$0xff]
        %v1500 = vld [vmem:[%s1496 + $0x18] sm:$0xff]
        %s1501 = scalar_lea.vmem [#allocation2], 160
        %v1502 = vld [vmem:[%s1501] sm:$0xff]
        %v1503 = vld [vmem:[%s1501 + $0x8] sm:$0xff]
        %v1504 = vld [vmem:[%s1501 + $0x10] sm:$0xff]
        %v1505 = vld [vmem:[%s1501 + $0x18] sm:$0xff]
        %s1506 = scalar_lea.vmem [#allocation2], 192
        %v1507 = vld [vmem:[%s1506] sm:$0xff]
        %v1508 = vld [vmem:[%s1506 + $0x8] sm:$0xff]
        %v1509 = vld [vmem:[%s1506 + $0x10] sm:$0xff]
        %v1510 = vld [vmem:[%s1506 + $0x18] sm:$0xff]
        %s1511 = scalar_lea.vmem [#allocation2], 224
        %v1512 = vld [vmem:[%s1511] sm:$0xff]
        %v1513 = vld [vmem:[%s1511 + $0x8] sm:$0xff]
        %v1514 = vld [vmem:[%s1511 + $0x10] sm:$0xff]
        %v1515 = vld [vmem:[%s1511 + $0x18] sm:$0xff]
        %v1517 = vperm.slane %v674, 0
        %1519 = vmatpush.msra.mxu0 0.0
        %1520 = vmatpush.msra.mxu0 0.0
        %1521 = vmatpush.msra.mxu0 0.0
        %1522 = vmatpush.msra.mxu0 0.0
        %1523 = vmatpush.msra.mxu0 0.0
        %1524 = vmatpush.msra.mxu0 0.0
        %1525 = vmatpush.msra.mxu0 0.0
        %1526 = vmatpush.msra.mxu0 0.0
        %1527 = vmatpush.msra.mxu0 0.0
        %1528 = vmatpush.msra.mxu0 0.0
        %1529 = vmatpush.msra.mxu0 0.0
        %1530 = vmatpush.msra.mxu0 0.0
        %1531 = vmatpush.msra.mxu0 %v1480
        %1532 = vmatpush.msra.mxu0 %v1479
        %1533 = vmatpush.msra.mxu0 %v1478
        %1534 = vmatpush.msra.mxu0 %v1477
        %1535 = vmatmul.f32.gmra.mxu0 %v1036
        %v1536 = vpop.f32.mrf.mxu0
        %v1537 = vadd.f32 %v1517, %v1536
        %1538 = vdwg.mxu0
        %v1539 = vmul.f32 %v1022, %v1320
        %v1540 = vperm.slane %v675, 0
        %v1541 = vmul.f32 %v1540, %v1539
        %v1542 = vmul.f32 %v1022, %v1372
        %v1543 = vperm.slane %v675, 1
        %v1544 = vmul.f32 %v1543, %v1542
        %v1545 = vmul.f32 %v1022, %v1373
        %v1546 = vperm.slane %v675, 2
        %v1547 = vmul.f32 %v1546, %v1545
        %v1548 = vmul.f32 %v1022, %v1374
        %v1549 = vperm.slane %v675, 3
        %v1550 = vmul.f32 %v1549, %v1548
        %v1551 = vmul.f32 %v1022, %v1426
        %v1552 = vperm.slane %v675, 4
        %v1553 = vmul.f32 %v1552, %v1551
        %v1554 = vmul.f32 %v1022, %v1427
        %v1555 = vperm.slane %v675, 5
        %v1556 = vmul.f32 %v1555, %v1554
        %v1557 = vmul.f32 %v1022, %v1428
        %v1558 = vperm.slane %v675, 6
        %v1559 = vmul.f32 %v1558, %v1557
        %v1560 = vmul.f32 %v1022, %v1476
        %v1561 = vperm.slane %v675, 7
        %v1562 = vmul.f32 %v1561, %v1560
        %v1563 = vmul.f32 %v1023, %v1372
        %v1564 = vperm.slane %v676, 0
        %v1565 = vmul.f32 %v1564, %v1563
        %v1566 = vadd.f32 %v1541, %v1565
        %v1567 = vmul.f32 %v1023, %v1320
        %v1568 = vperm.slane %v676, 1
        %v1569 = vmul.f32 %v1568, %v1567
        %v1570 = vadd.f32 %v1544, %v1569
        %v1571 = vmul.f32 %v1023, %v1426
        %v1572 = vperm.slane %v676, 2
        %v1573 = vmul.f32 %v1572, %v1571
        %v1574 = vadd.f32 %v1547, %v1573
        %v1575 = vmul.f32 %v1023, %v1427
        %v1576 = vperm.slane %v676, 3
        %v1577 = vmul.f32 %v1576, %v1575
        %v1578 = vadd.f32 %v1550, %v1577
        %v1579 = vmul.f32 %v1023, %v1373
        %v1580 = vperm.slane %v676, 4
        %v1581 = vmul.f32 %v1580, %v1579
        %v1582 = vadd.f32 %v1553, %v1581
        %v1583 = vmul.f32 %v1023, %v1374
        %v1584 = vperm.slane %v676, 5
        %v1585 = vmul.f32 %v1584, %v1583
        %v1586 = vadd.f32 %v1556, %v1585
        %v1587 = vmul.f32 %v1023, %v1476
        %v1588 = vperm.slane %v676, 6
        %v1589 = vmul.f32 %v1588, %v1587
        %v1590 = vadd.f32 %v1559, %v1589
        %v1591 = vmul.f32 %v1023, %v1428
        %v1592 = vperm.slane %v676, 7
        %v1593 = vmul.f32 %v1592, %v1591
        %v1594 = vadd.f32 %v1562, %v1593
        %v1595 = vmul.f32 %v1024, %v1373
        %v1596 = vperm.slane %v677, 0
        %v1597 = vmul.f32 %v1596, %v1595
        %v1598 = vadd.f32 %v1566, %v1597
        %v1599 = vmul.f32 %v1024, %v1426
        %v1600 = vperm.slane %v677, 1
        %v1601 = vmul.f32 %v1600, %v1599
        %v1602 = vadd.f32 %v1570, %v1601
        %v1603 = vmul.f32 %v1024, %v1320
        %v1604 = vperm.slane %v677, 2
        %v1605 = vmul.f32 %v1604, %v1603
        %v1606 = vadd.f32 %v1574, %v1605
        %v1607 = vmul.f32 %v1024, %v1428
        %v1608 = vperm.slane %v677, 3
        %v1609 = vmul.f32 %v1608, %v1607
        %v1610 = vadd.f32 %v1578, %v1609
        %v1611 = vmul.f32 %v1024, %v1372
        %v1612 = vperm.slane %v677, 4
        %v1613 = vmul.f32 %v1612, %v1611
        %v1614 = vadd.f32 %v1582, %v1613
        %v1615 = vmul.f32 %v1024, %v1476
        %v1616 = vperm.slane %v677, 5
        %v1617 = vmul.f32 %v1616, %v1615
        %v1618 = vadd.f32 %v1586, %v1617
        %v1619 = vmul.f32 %v1024, %v1374
        %v1620 = vperm.slane %v677, 6
        %v1621 = vmul.f32 %v1620, %v1619
        %v1622 = vadd.f32 %v1590, %v1621
        %v1623 = vmul.f32 %v1024, %v1427
        %v1624 = vperm.slane %v677, 7
        %v1625 = vmul.f32 %v1624, %v1623
        %v1626 = vadd.f32 %v1594, %v1625
        %v1627 = vmul.f32 %v1025, %v1374
        %v1628 = vperm.slane %v678, 0
        %v1629 = vmul.f32 %v1628, %v1627
        %v1630 = vadd.f32 %v1598, %v1629
        %v1631 = vmul.f32 %v1025, %v1427
        %v1632 = vperm.slane %v678, 1
        %v1633 = vmul.f32 %v1632, %v1631
        %v1634 = vadd.f32 %v1602, %v1633
        %v1635 = vmul.f32 %v1025, %v1428
        %v1636 = vperm.slane %v678, 2
        %v1637 = vmul.f32 %v1636, %v1635
        %v1638 = vadd.f32 %v1606, %v1637
        %v1639 = vmul.f32 %v1025, %v1320
        %v1640 = vperm.slane %v678, 3
        %v1641 = vmul.f32 %v1640, %v1639
        %v1642 = vadd.f32 %v1610, %v1641
        %v1643 = vmul.f32 %v1025, %v1476
        %v1644 = vperm.slane %v678, 4
        %v1645 = vmul.f32 %v1644, %v1643
        %v1646 = vadd.f32 %v1614, %v1645
        %v1647 = vmul.f32 %v1025, %v1372
        %v1648 = vperm.slane %v678, 5
        %v1649 = vmul.f32 %v1648, %v1647
        %v1650 = vadd.f32 %v1618, %v1649
        %v1651 = vmul.f32 %v1025, %v1373
        %v1652 = vperm.slane %v678, 6
        %v1653 = vmul.f32 %v1652, %v1651
        %v1654 = vadd.f32 %v1622, %v1653
        %v1655 = vmul.f32 %v1025, %v1426
        %v1656 = vperm.slane %v678, 7
        %v1657 = vmul.f32 %v1656, %v1655
        %v1658 = vadd.f32 %v1626, %v1657
        %v1659 = vmul.f32 %v1026, %v1426
        %v1660 = vperm.slane %v679, 0
        %v1661 = vmul.f32 %v1660, %v1659
        %v1662 = vadd.f32 %v1630, %v1661
        %v1663 = vmul.f32 %v1026, %v1373
        %v1664 = vperm.slane %v679, 1
        %v1665 = vmul.f32 %v1664, %v1663
        %v1666 = vadd.f32 %v1634, %v1665
        %v1667 = vmul.f32 %v1026, %v1372
        %v1668 = vperm.slane %v679, 2
        %v1669 = vmul.f32 %v1668, %v1667
        %v1670 = vadd.f32 %v1638, %v1669
        %v1671 = vmul.f32 %v1026, %v1476
        %v1672 = vperm.slane %v679, 3
        %v1673 = vmul.f32 %v1672, %v1671
        %v1674 = vadd.f32 %v1642, %v1673
        %v1675 = vmul.f32 %v1026, %v1320
        %v1676 = vperm.slane %v679, 4
        %v1677 = vmul.f32 %v1676, %v1675
        %v1678 = vadd.f32 %v1646, %v1677
        %v1679 = vmul.f32 %v1026, %v1428
        %v1680 = vperm.slane %v679, 5
        %v1681 = vmul.f32 %v1680, %v1679
        %v1682 = vadd.f32 %v1650, %v1681
        %v1683 = vmul.f32 %v1026, %v1427
        %v1684 = vperm.slane %v679, 6
        %v1685 = vmul.f32 %v1684, %v1683
        %v1686 = vadd.f32 %v1654, %v1685
        %v1687 = vmul.f32 %v1026, %v1374
        %v1688 = vperm.slane %v679, 7
        %v1689 = vmul.f32 %v1688, %v1687
        %v1690 = vadd.f32 %v1658, %v1689
        %v1691 = vmul.f32 %v1027, %v1427
        %v1692 = vperm.slane %v680, 0
        %v1693 = vmul.f32 %v1692, %v1691
        %v1694 = vadd.f32 %v1662, %v1693
        %v1695 = vmul.f32 %v1027, %v1374
        %v1696 = vperm.slane %v680, 1
        %v1697 = vmul.f32 %v1696, %v1695
        %v1698 = vadd.f32 %v1666, %v1697
        %v1699 = vmul.f32 %v1027, %v1476
        %v1700 = vperm.slane %v680, 2
        %v1701 = vmul.f32 %v1700, %v1699
        %v1702 = vadd.f32 %v1670, %v1701
        %v1703 = vmul.f32 %v1027, %v1372
        %v1704 = vperm.slane %v680, 3
        %v1705 = vmul.f32 %v1704, %v1703
        %v1706 = vadd.f32 %v1674, %v1705
        %v1707 = vmul.f32 %v1027, %v1428
        %v1708 = vperm.slane %v680, 4
        %v1709 = vmul.f32 %v1708, %v1707
        %v1710 = vadd.f32 %v1678, %v1709
        %v1711 = vmul.f32 %v1027, %v1320
        %v1712 = vperm.slane %v680, 5
        %v1713 = vmul.f32 %v1712, %v1711
        %v1714 = vadd.f32 %v1682, %v1713
        %v1715 = vmul.f32 %v1027, %v1426
        %v1716 = vperm.slane %v680, 6
        %v1717 = vmul.f32 %v1716, %v1715
        %v1718 = vadd.f32 %v1686, %v1717
        %v1719 = vmul.f32 %v1027, %v1373
        %v1720 = vperm.slane %v680, 7
        %v1721 = vmul.f32 %v1720, %v1719
        %v1722 = vadd.f32 %v1690, %v1721
        %v1723 = vmul.f32 %v1028, %v1428
        %v1724 = vperm.slane %v681, 0
        %v1725 = vmul.f32 %v1724, %v1723
        %v1726 = vadd.f32 %v1694, %v1725
        %v1727 = vmul.f32 %v1028, %v1476
        %v1728 = vperm.slane %v681, 1
        %v1729 = vmul.f32 %v1728, %v1727
        %v1730 = vadd.f32 %v1698, %v1729
        %v1731 = vmul.f32 %v1028, %v1374
        %v1732 = vperm.slane %v681, 2
        %v1733 = vmul.f32 %v1732, %v1731
        %v1734 = vadd.f32 %v1702, %v1733
        %v1735 = vmul.f32 %v1028, %v1373
        %v1736 = vperm.slane %v681, 3
        %v1737 = vmul.f32 %v1736, %v1735
        %v1738 = vadd.f32 %v1706, %v1737
        %v1739 = vmul.f32 %v1028, %v1427
        %v1740 = vperm.slane %v681, 4
        %v1741 = vmul.f32 %v1740, %v1739
        %v1742 = vadd.f32 %v1710, %v1741
        %v1743 = vmul.f32 %v1028, %v1426
        %v1744 = vperm.slane %v681, 5
        %v1745 = vmul.f32 %v1744, %v1743
        %v1746 = vadd.f32 %v1714, %v1745
        %v1747 = vmul.f32 %v1028, %v1320
        %v1748 = vperm.slane %v681, 6
        %v1749 = vmul.f32 %v1748, %v1747
        %v1750 = vadd.f32 %v1718, %v1749
        %v1751 = vmul.f32 %v1028, %v1372
        %v1752 = vperm.slane %v681, 7
        %v1753 = vmul.f32 %v1752, %v1751
        %v1754 = vadd.f32 %v1722, %v1753
        %v1755 = vmul.f32 %v1029, %v1476
        %v1756 = vperm.slane %v682, 0
        %v1757 = vmul.f32 %v1756, %v1755
        %v1758 = vadd.f32 %v1726, %v1757
        %v1759 = vmul.f32 %v1029, %v1428
        %v1760 = vperm.slane %v682, 1
        %v1761 = vmul.f32 %v1760, %v1759
        %v1762 = vadd.f32 %v1730, %v1761
        %v1763 = vmul.f32 %v1029, %v1427
        %v1764 = vperm.slane %v682, 2
        %v1765 = vmul.f32 %v1764, %v1763
        %v1766 = vadd.f32 %v1734, %v1765
        %v1767 = vmul.f32 %v1029, %v1426
        %v1768 = vperm.slane %v682, 3
        %v1769 = vmul.f32 %v1768, %v1767
        %v1770 = vadd.f32 %v1738, %v1769
        %v1771 = vmul.f32 %v1029, %v1374
        %v1772 = vperm.slane %v682, 4
        %v1773 = vmul.f32 %v1772, %v1771
        %v1774 = vadd.f32 %v1742, %v1773
        %v1775 = vmul.f32 %v1029, %v1373
        %v1776 = vperm.slane %v682, 5
        %v1777 = vmul.f32 %v1776, %v1775
        %v1778 = vadd.f32 %v1746, %v1777
        %v1779 = vmul.f32 %v1029, %v1372
        %v1780 = vperm.slane %v682, 6
        %v1781 = vmul.f32 %v1780, %v1779
        %v1782 = vadd.f32 %v1750, %v1781
        %v1783 = vmul.f32 %v1029, %v1320
        %v1784 = vperm.slane %v682, 7
        %v1785 = vmul.f32 %v1784, %v1783
        %v1786 = vadd.f32 %v1754, %v1785
        %v1787 = vadd.f32 %v1537, %v1758
        %v1788 = vmul.f32 %v1787, 0.70710677
        %1789 = vmatpush.msra.mxu0 0.0
        %1790 = vmatpush.msra.mxu0 0.0
        %1791 = vmatpush.msra.mxu0 0.0
        %1792 = vmatpush.msra.mxu0 0.0
        %1793 = vmatpush.msra.mxu0 0.0
        %1794 = vmatpush.msra.mxu0 0.0
        %1795 = vmatpush.msra.mxu0 0.0
        %1796 = vmatpush.msra.mxu0 0.0
        %1797 = vmatpush.msra.mxu0 0.0
        %1798 = vmatpush.msra.mxu0 0.0
        %1799 = vmatpush.msra.mxu0 0.0
        %1800 = vmatpush.msra.mxu0 0.0
        %1801 = vmatpush.msra.mxu0 %v1485
        %1802 = vmatpush.msra.mxu0 %v1484
        %1803 = vmatpush.msra.mxu0 %v1483
        %1804 = vmatpush.msra.mxu0 %v1482
        %1805 = vmatmul.f32.gmra.mxu0 %v1064
        %v1806 = vpop.f32.mrf.mxu0
        %v1807 = vadd.f32 %v1762, %v1806
        %1808 = vdwg.mxu0
        %v1809 = vmul.f32 %v1807, 0.70710677
        %1810 = vmatpush.msra.mxu0 0.0
        %1811 = vmatpush.msra.mxu0 0.0
        %1812 = vmatpush.msra.mxu0 0.0
        %1813 = vmatpush.msra.mxu0 0.0
        %1814 = vmatpush.msra.mxu0 0.0
        %1815 = vmatpush.msra.mxu0 0.0
        %1816 = vmatpush.msra.mxu0 0.0
        %1817 = vmatpush.msra.mxu0 0.0
        %1818 = vmatpush.msra.mxu0 0.0
        %1819 = vmatpush.msra.mxu0 0.0
        %1820 = vmatpush.msra.mxu0 0.0
        %1821 = vmatpush.msra.mxu0 0.0
        %1822 = vmatpush.msra.mxu0 %v1490
        %1823 = vmatpush.msra.mxu0 %v1489
        %1824 = vmatpush.msra.mxu0 %v1488
        %1825 = vmatpush.msra.mxu0 %v1487
        %1826 = vmatmul.f32.gmra.mxu0 %v1092
        %v1827 = vpop.f32.mrf.mxu0
        %v1828 = vadd.f32 %v1766, %v1827
        %1829 = vdwg.mxu0
        %v1830 = vmul.f32 %v1828, 0.70710677
        %1831 = vmatpush.msra.mxu0 0.0
        %1832 = vmatpush.msra.mxu0 0.0
        %1833 = vmatpush.msra.mxu0 0.0
        %1834 = vmatpush.msra.mxu0 0.0
        %1835 = vmatpush.msra.mxu0 0.0
        %1836 = vmatpush.msra.mxu0 0.0
        %1837 = vmatpush.msra.mxu0 0.0
        %1838 = vmatpush.msra.mxu0 0.0
        %1839 = vmatpush.msra.mxu0 0.0
        %1840 = vmatpush.msra.mxu0 0.0
        %1841 = vmatpush.msra.mxu0 0.0
        %1842 = vmatpush.msra.mxu0 0.0
        %1843 = vmatpush.msra.mxu0 %v1495
        %1844 = vmatpush.msra.mxu0 %v1494
        %1845 = vmatpush.msra.mxu0 %v1493
        %1846 = vmatpush.msra.mxu0 %v1492
        %1847 = vmatmul.f32.gmra.mxu0 %v1120
        %v1848 = vpop.f32.mrf.mxu0
        %v1849 = vadd.f32 %v1770, %v1848
        %1850 = vdwg.mxu0
        %v1851 = vmul.f32 %v1849, 0.70710677
        %1852 = vmatpush.msra.mxu0 0.0
        %1853 = vmatpush.msra.mxu0 0.0
        %1854 = vmatpush.msra.mxu0 0.0
        %1855 = vmatpush.msra.mxu0 0.0
        %1856 = vmatpush.msra.mxu0 0.0
        %1857 = vmatpush.msra.mxu0 0.0
        %1858 = vmatpush.msra.mxu0 0.0
        %1859 = vmatpush.msra.mxu0 0.0
        %1860 = vmatpush.msra.mxu0 0.0
        %1861 = vmatpush.msra.mxu0 0.0
        %1862 = vmatpush.msra.mxu0 0.0
        %1863 = vmatpush.msra.mxu0 0.0
        %1864 = vmatpush.msra.mxu0 %v1500
        %1865 = vmatpush.msra.mxu0 %v1499
        %1866 = vmatpush.msra.mxu0 %v1498
        %1867 = vmatpush.msra.mxu0 %v1497
        %1868 = vmatmul.f32.gmra.mxu0 %v1148
        %v1869 = vpop.f32.mrf.mxu0
        %v1870 = vadd.f32 %v1774, %v1869
        %1871 = vdwg.mxu0
        %v1872 = vmul.f32 %v1870, 0.70710677
        %1873 = vmatpush.msra.mxu0 0.0
        %1874 = vmatpush.msra.mxu0 0.0
        %1875 = vmatpush.msra.mxu0 0.0
        %1876 = vmatpush.msra.mxu0 0.0
        %1877 = vmatpush.msra.mxu0 0.0
        %1878 = vmatpush.msra.mxu0 0.0
        %1879 = vmatpush.msra.mxu0 0.0
        %1880 = vmatpush.msra.mxu0 0.0
        %1881 = vmatpush.msra.mxu0 0.0
        %1882 = vmatpush.msra.mxu0 0.0
        %1883 = vmatpush.msra.mxu0 0.0
        %1884 = vmatpush.msra.mxu0 0.0
        %1885 = vmatpush.msra.mxu0 %v1505
        %1886 = vmatpush.msra.mxu0 %v1504
        %1887 = vmatpush.msra.mxu0 %v1503
        %1888 = vmatpush.msra.mxu0 %v1502
        %1889 = vmatmul.f32.gmra.mxu0 %v1176
        %v1890 = vpop.f32.mrf.mxu0
        %v1891 = vadd.f32 %v1778, %v1890
        %1892 = vdwg.mxu0
        %v1893 = vmul.f32 %v1891, 0.70710677
        %1894 = vmatpush.msra.mxu0 0.0
        %1895 = vmatpush.msra.mxu0 0.0
        %1896 = vmatpush.msra.mxu0 0.0
        %1897 = vmatpush.msra.mxu0 0.0
        %1898 = vmatpush.msra.mxu0 0.0
        %1899 = vmatpush.msra.mxu0 0.0
        %1900 = vmatpush.msra.mxu0 0.0
        %1901 = vmatpush.msra.mxu0 0.0
        %1902 = vmatpush.msra.mxu0 0.0
        %1903 = vmatpush.msra.mxu0 0.0
        %1904 = vmatpush.msra.mxu0 0.0
        %1905 = vmatpush.msra.mxu0 0.0
        %1906 = vmatpush.msra.mxu0 %v1510
        %1907 = vmatpush.msra.mxu0 %v1509
        %1908 = vmatpush.msra.mxu0 %v1508
        %1909 = vmatpush.msra.mxu0 %v1507
        %1910 = vmatmul.f32.gmra.mxu0 %v1204
        %v1911 = vpop.f32.mrf.mxu0
        %v1912 = vadd.f32 %v1782, %v1911
        %1913 = vdwg.mxu0
        %v1914 = vmul.f32 %v1912, 0.70710677
        %1915 = vmatpush.msra.mxu0 0.0
        %1916 = vmatpush.msra.mxu0 0.0
        %1917 = vmatpush.msra.mxu0 0.0
        %1918 = vmatpush.msra.mxu0 0.0
        %1919 = vmatpush.msra.mxu0 0.0
        %1920 = vmatpush.msra.mxu0 0.0
        %1921 = vmatpush.msra.mxu0 0.0
        %1922 = vmatpush.msra.mxu0 0.0
        %1923 = vmatpush.msra.mxu0 0.0
        %1924 = vmatpush.msra.mxu0 0.0
        %1925 = vmatpush.msra.mxu0 0.0
        %1926 = vmatpush.msra.mxu0 0.0
        %1927 = vmatpush.msra.mxu0 %v1515
        %1928 = vmatpush.msra.mxu0 %v1514
        %1929 = vmatpush.msra.mxu0 %v1513
        %1930 = vmatpush.msra.mxu0 %v1512
        %1931 = vmatmul.f32.gmra.mxu0 %v1232
        %v1932 = vpop.f32.mrf.mxu0
        %v1933 = vadd.f32 %v1786, %v1932
        %1934 = vdwg.mxu0
        %v1935 = vmul.f32 %v1933, 0.70710677
        %v1936 = vmul.f32 %v1788, %v1788
        %v1937 = vmul.f32 %v1809, %v1809
        %v1938 = vadd.f32 %v1936, %v1937
        %v1939 = vmul.f32 %v1830, %v1830
        %v1940 = vadd.f32 %v1938, %v1939
        %v1941 = vmul.f32 %v1851, %v1851
        %v1942 = vadd.f32 %v1940, %v1941
        %v1943 = vmul.f32 %v1872, %v1872
        %v1944 = vadd.f32 %v1942, %v1943
        %v1945 = vmul.f32 %v1893, %v1893
        %v1946 = vadd.f32 %v1944, %v1945
        %v1947 = vmul.f32 %v1914, %v1914
        %v1948 = vadd.f32 %v1946, %v1947
        %v1949 = vmul.f32 %v1935, %v1935
        %v1950 = vadd.f32 %v1948, %v1949
        %v1951 = vmul.f32 %v1950, %v1950
        %v1952 = vadd.f32 %v1951, 1e-16
        %v1953 = vrsqrt.pop %v1952
        %v1954 = vmul.f32 %v1953, %v1952
        %v1955 = vmul.f32 %v1954, %v1953
        %v1956 = vmul.f32 0.5, %v1955
        %v1957 = vsub.f32 1.5, %v1956
        %v1958 = vmul.f32 %v1953, %v1957
        %v1959 = vmul.f32 %v1952, %v1958
        %vm1960 = vcmp.eq.f32.partialorder %v1952, inf
        %v1961 = vsel %vm1960, %v1952, %v1959
        %vm1962 = vcmp.eq.f32.partialorder %v1952, 0.0
        %v1963 = vand.u32 %v1952, 2147483648
        %v1964 = vsel %vm1962, %v1963, %v1961
        %v1965 = vrsqrt.pop %v1964
        %v1966 = vmul.f32 %v1965, %v1964
        %v1967 = vmul.f32 %v1966, %v1965
        %v1968 = vmul.f32 0.5, %v1967
        %v1969 = vsub.f32 1.5, %v1968
        %v1970 = vmul.f32 %v1965, %v1969
        %v1971 = vmul.f32 %v1964, %v1970
        %vm1972 = vcmp.eq.f32.partialorder %v1964, inf
        %v1973 = vsel %vm1972, %v1964, %v1971
        %vm1974 = vcmp.eq.f32.partialorder %v1964, 0.0
        %v1975 = vand.u32 %v1964, 2147483648
        %v1976 = vsel %vm1974, %v1975, %v1973
        %v1977 = vsel %vm1034, %v1976, 0.0
        %1978 = vadd.xlane.f32.xlu0 %v1977
        %v1979 = vpop.xlane.xlu0 %1978
        %v1980 = vrcp.pop 32.0
        %v1981 = vmul.f32 32.0, %v1980
        %v1982 = vsub.f32 1.0, %v1981
        %v1983 = vmul.f32 %v1980, %v1982
        %v1984 = vadd.f32 %v1980, %v1983
        %vm1985 = vweird.f32 %v1980
        %v1986 = vsel %vm1985, %v1980, %v1984
        %v1987 = vmul.f32 %v1979, %v1986
        %v1988 = vadd.f32 %v1987, 1e-06
        %v1990 = vperm.slane %v683, 0
        %v1992 = vrcp.pop %v1988
        %v1993 = vmul.f32 %v1988, %v1992
        %v1994 = vsub.f32 1.0, %v1993
        %v1995 = vmul.f32 %v1992, %v1994
        %v1996 = vadd.f32 %v1992, %v1995
        %vm1997 = vweird.f32 %v1988
        %vm1998 = vweird.f32 %v1992
        %vm1999 = vmor %vm1997, %vm1998
        %v2000 = vsel %vm1999, %v1992, %v1996
        %v2001 = vand.u32 2147483647, %v1988
        %vm2002 = vcmp.eq.f32.partialorder %v2001, 8.507059e+37
        %v2003 = vand.u32 %v1988, 2147483648
        %v2004 = vor.u32 1.1754944e-38, %v2003
        %v2005 = vsel %vm2002, %v2004, %v2000
        %v2006 = vmul.f32 %v1990, %v2005
        %v2007 = vmul.f32 %v1788, %v2006
        %v2008 = vmul.f32 %v1809, %v2006
        %v2009 = vmul.f32 %v1830, %v2006
        %v2010 = vmul.f32 %v1851, %v2006
        %v2011 = vmul.f32 %v1872, %v2006
        %v2012 = vmul.f32 %v1893, %v2006
        %v2013 = vmul.f32 %v1914, %v2006
        %v2014 = vmul.f32 %v1935, %v2006
        %v2015 = vld [vmem:[%s12] sm:$0x1]
        %v2016 = vld [vmem:[%s13] sm:$0xf]
        %v2017 = vld [vmem:[%s14] sm:$0xf]
        %v2018 = vld [vmem:[%s16] sm:$0xf]
        %v2019 = vld [vmem:[%s18] sm:$0x1]
        %v2020 = vld [vmem:[%s19] sm:$0xff]
        %v2021 = vld [vmem:[%s19 + $0x8] sm:$0xff]
        %v2022 = vld [vmem:[%s19 + $0x10] sm:$0xff]
        %v2023 = vld [vmem:[%s19 + $0x18] sm:$0xff]
        %v2024 = vld [vmem:[%s19 + $0x20] sm:$0xff]
        %v2025 = vld [vmem:[%s19 + $0x28] sm:$0xff]
        %v2026 = vld [vmem:[%s19 + $0x30] sm:$0xff]
        %v2027 = vld [vmem:[%s19 + $0x38] sm:$0xff]
        %v2028 = vld [vmem:[%s20] sm:$0x1]
        %v2029 = vld [vmem:[%s11] sm:$0xff]
        %v2030 = vld [vmem:[%s11 + $0x8] sm:$0xff]
        %v2031 = vld [vmem:[%s11 + $0x10] sm:$0xff]
        %v2032 = vld [vmem:[%s11 + $0x18] sm:$0xff]
        %s2033 = scalar_lea.vmem %s11, 32
        %v2034 = vld [vmem:[%s2033] sm:$0xff]
        %v2035 = vld [vmem:[%s2033 + $0x8] sm:$0xff]
        %v2036 = vld [vmem:[%s2033 + $0x10] sm:$0xff]
        %v2037 = vld [vmem:[%s2033 + $0x18] sm:$0xff]
        %v2039 = vsel %vm1034, %v2008, 0
        %2041 = vmatpush.msra.mxu0 0.0
        %2042 = vmatpush.msra.mxu0 0.0
        %2043 = vmatpush.msra.mxu0 0.0
        %2044 = vmatpush.msra.mxu0 0.0
        %2045 = vmatpush.msra.mxu0 0.0
        %2046 = vmatpush.msra.mxu0 0.0
        %2047 = vmatpush.msra.mxu0 0.0
        %2048 = vmatpush.msra.mxu0 0.0
        %2049 = vmatpush.msra.mxu0 0.0
        %2050 = vmatpush.msra.mxu0 0.0
        %2051 = vmatpush.msra.mxu0 0.0
        %2052 = vmatpush.msra.mxu0 0.0
        %2053 = vmatpush.msra.mxu0 %v2037
        %2054 = vmatpush.msra.mxu0 %v2036
        %2055 = vmatpush.msra.mxu0 %v2035
        %2056 = vmatpush.msra.mxu0 %v2034
        %2057 = vmatmul.f32.gmra.mxu0 %v2039
        %v2058 = vpop.f32.mrf.mxu0
        %v2059 = vadd.f32 0.0, %v2058
        %2060 = vdwg.mxu0
        %s2061 = scalar_lea.vmem %s11, 64
        %v2062 = vld [vmem:[%s2061] sm:$0xff]
        %v2063 = vld [vmem:[%s2061 + $0x8] sm:$0xff]
        %v2064 = vld [vmem:[%s2061 + $0x10] sm:$0xff]
        %v2065 = vld [vmem:[%s2061 + $0x18] sm:$0xff]
        %v2067 = vsel %vm1034, %v2009, 0
        %2069 = vmatpush.msra.mxu0 0.0
        %2070 = vmatpush.msra.mxu0 0.0
        %2071 = vmatpush.msra.mxu0 0.0
        %2072 = vmatpush.msra.mxu0 0.0
        %2073 = vmatpush.msra.mxu0 0.0
        %2074 = vmatpush.msra.mxu0 0.0
        %2075 = vmatpush.msra.mxu0 0.0
        %2076 = vmatpush.msra.mxu0 0.0
        %2077 = vmatpush.msra.mxu0 0.0
        %2078 = vmatpush.msra.mxu0 0.0
        %2079 = vmatpush.msra.mxu0 0.0
        %2080 = vmatpush.msra.mxu0 0.0
        %2081 = vmatpush.msra.mxu0 %v2065
        %2082 = vmatpush.msra.mxu0 %v2064
        %2083 = vmatpush.msra.mxu0 %v2063
        %2084 = vmatpush.msra.mxu0 %v2062
        %2085 = vmatmul.f32.gmra.mxu0 %v2067
        %v2086 = vpop.f32.mrf.mxu0
        %v2087 = vadd.f32 0.0, %v2086
        %2088 = vdwg.mxu0
        %s2089 = scalar_lea.vmem %s11, 96
        %v2090 = vld [vmem:[%s2089] sm:$0xff]
        %v2091 = vld [vmem:[%s2089 + $0x8] sm:$0xff]
        %v2092 = vld [vmem:[%s2089 + $0x10] sm:$0xff]
        %v2093 = vld [vmem:[%s2089 + $0x18] sm:$0xff]
        %v2095 = vsel %vm1034, %v2010, 0
        %2097 = vmatpush.msra.mxu0 0.0
        %2098 = vmatpush.msra.mxu0 0.0
        %2099 = vmatpush.msra.mxu0 0.0
        %2100 = vmatpush.msra.mxu0 0.0
        %2101 = vmatpush.msra.mxu0 0.0
        %2102 = vmatpush.msra.mxu0 0.0
        %2103 = vmatpush.msra.mxu0 0.0
        %2104 = vmatpush.msra.mxu0 0.0
        %2105 = vmatpush.msra.mxu0 0.0
        %2106 = vmatpush.msra.mxu0 0.0
        %2107 = vmatpush.msra.mxu0 0.0
        %2108 = vmatpush.msra.mxu0 0.0
        %2109 = vmatpush.msra.mxu0 %v2093
        %2110 = vmatpush.msra.mxu0 %v2092
        %2111 = vmatpush.msra.mxu0 %v2091
        %2112 = vmatpush.msra.mxu0 %v2090
        %2113 = vmatmul.f32.gmra.mxu0 %v2095
        %v2114 = vpop.f32.mrf.mxu0
        %v2115 = vadd.f32 0.0, %v2114
        %2116 = vdwg.mxu0
        %s2117 = scalar_lea.vmem %s11, 128
        %v2118 = vld [vmem:[%s2117] sm:$0xff]
        %v2119 = vld [vmem:[%s2117 + $0x8] sm:$0xff]
        %v2120 = vld [vmem:[%s2117 + $0x10] sm:$0xff]
        %v2121 = vld [vmem:[%s2117 + $0x18] sm:$0xff]
        %v2123 = vsel %vm1034, %v2011, 0
        %2125 = vmatpush.msra.mxu0 0.0
        %2126 = vmatpush.msra.mxu0 0.0
        %2127 = vmatpush.msra.mxu0 0.0
        %2128 = vmatpush.msra.mxu0 0.0
        %2129 = vmatpush.msra.mxu0 0.0
        %2130 = vmatpush.msra.mxu0 0.0
        %2131 = vmatpush.msra.mxu0 0.0
        %2132 = vmatpush.msra.mxu0 0.0
        %2133 = vmatpush.msra.mxu0 0.0
        %2134 = vmatpush.msra.mxu0 0.0
        %2135 = vmatpush.msra.mxu0 0.0
        %2136 = vmatpush.msra.mxu0 0.0
        %2137 = vmatpush.msra.mxu0 %v2121
        %2138 = vmatpush.msra.mxu0 %v2120
        %2139 = vmatpush.msra.mxu0 %v2119
        %2140 = vmatpush.msra.mxu0 %v2118
        %2141 = vmatmul.f32.gmra.mxu0 %v2123
        %v2142 = vpop.f32.mrf.mxu0
        %v2143 = vadd.f32 0.0, %v2142
        %2144 = vdwg.mxu0
        %s2145 = scalar_lea.vmem %s11, 160
        %v2146 = vld [vmem:[%s2145] sm:$0xff]
        %v2147 = vld [vmem:[%s2145 + $0x8] sm:$0xff]
        %v2148 = vld [vmem:[%s2145 + $0x10] sm:$0xff]
        %v2149 = vld [vmem:[%s2145 + $0x18] sm:$0xff]
        %v2151 = vsel %vm1034, %v2012, 0
        %2153 = vmatpush.msra.mxu0 0.0
        %2154 = vmatpush.msra.mxu0 0.0
        %2155 = vmatpush.msra.mxu0 0.0
        %2156 = vmatpush.msra.mxu0 0.0
        %2157 = vmatpush.msra.mxu0 0.0
        %2158 = vmatpush.msra.mxu0 0.0
        %2159 = vmatpush.msra.mxu0 0.0
        %2160 = vmatpush.msra.mxu0 0.0
        %2161 = vmatpush.msra.mxu0 0.0
        %2162 = vmatpush.msra.mxu0 0.0
        %2163 = vmatpush.msra.mxu0 0.0
        %2164 = vmatpush.msra.mxu0 0.0
        %2165 = vmatpush.msra.mxu0 %v2149
        %2166 = vmatpush.msra.mxu0 %v2148
        %2167 = vmatpush.msra.mxu0 %v2147
        %2168 = vmatpush.msra.mxu0 %v2146
        %2169 = vmatmul.f32.gmra.mxu0 %v2151
        %v2170 = vpop.f32.mrf.mxu0
        %v2171 = vadd.f32 0.0, %v2170
        %2172 = vdwg.mxu0
        %s2173 = scalar_lea.vmem %s11, 192
        %v2174 = vld [vmem:[%s2173] sm:$0xff]
        %v2175 = vld [vmem:[%s2173 + $0x8] sm:$0xff]
        %v2176 = vld [vmem:[%s2173 + $0x10] sm:$0xff]
        %v2177 = vld [vmem:[%s2173 + $0x18] sm:$0xff]
        %v2179 = vsel %vm1034, %v2013, 0
        %2181 = vmatpush.msra.mxu0 0.0
        %2182 = vmatpush.msra.mxu0 0.0
        %2183 = vmatpush.msra.mxu0 0.0
        %2184 = vmatpush.msra.mxu0 0.0
        %2185 = vmatpush.msra.mxu0 0.0
        %2186 = vmatpush.msra.mxu0 0.0
        %2187 = vmatpush.msra.mxu0 0.0
        %2188 = vmatpush.msra.mxu0 0.0
        %2189 = vmatpush.msra.mxu0 0.0
        %2190 = vmatpush.msra.mxu0 0.0
        %2191 = vmatpush.msra.mxu0 0.0
        %2192 = vmatpush.msra.mxu0 0.0
        %2193 = vmatpush.msra.mxu0 %v2177
        %2194 = vmatpush.msra.mxu0 %v2176
        %2195 = vmatpush.msra.mxu0 %v2175
        %2196 = vmatpush.msra.mxu0 %v2174
        %2197 = vmatmul.f32.gmra.mxu0 %v2179
        %v2198 = vpop.f32.mrf.mxu0
        %v2199 = vadd.f32 0.0, %v2198
        %2200 = vdwg.mxu0
        %s2201 = scalar_lea.vmem %s11, 224
        %v2202 = vld [vmem:[%s2201] sm:$0xff]
        %v2203 = vld [vmem:[%s2201 + $0x8] sm:$0xff]
        %v2204 = vld [vmem:[%s2201 + $0x10] sm:$0xff]
        %v2205 = vld [vmem:[%s2201 + $0x18] sm:$0xff]
        %v2207 = vsel %vm1034, %v2014, 0
        %2209 = vmatpush.msra.mxu0 0.0
        %2210 = vmatpush.msra.mxu0 0.0
        %2211 = vmatpush.msra.mxu0 0.0
        %2212 = vmatpush.msra.mxu0 0.0
        %2213 = vmatpush.msra.mxu0 0.0
        %2214 = vmatpush.msra.mxu0 0.0
        %2215 = vmatpush.msra.mxu0 0.0
        %2216 = vmatpush.msra.mxu0 0.0
        %2217 = vmatpush.msra.mxu0 0.0
        %2218 = vmatpush.msra.mxu0 0.0
        %2219 = vmatpush.msra.mxu0 0.0
        %2220 = vmatpush.msra.mxu0 0.0
        %2221 = vmatpush.msra.mxu0 %v2205
        %2222 = vmatpush.msra.mxu0 %v2204
        %2223 = vmatpush.msra.mxu0 %v2203
        %2224 = vmatpush.msra.mxu0 %v2202
        %2225 = vmatmul.f32.gmra.mxu0 %v2207
        %v2226 = vpop.f32.mrf.mxu0
        %v2227 = vadd.f32 0.0, %v2226
        %2228 = vdwg.mxu0
        %v2230 = vperm.slane %v2015, 0
        %v2233 = vsel %vm1034, %v2007, 0
        %2235 = vmatpush.msra.mxu0 0.0
        %2236 = vmatpush.msra.mxu0 0.0
        %2237 = vmatpush.msra.mxu0 0.0
        %2238 = vmatpush.msra.mxu0 0.0
        %2239 = vmatpush.msra.mxu0 0.0
        %2240 = vmatpush.msra.mxu0 0.0
        %2241 = vmatpush.msra.mxu0 0.0
        %2242 = vmatpush.msra.mxu0 0.0
        %2243 = vmatpush.msra.mxu0 0.0
        %2244 = vmatpush.msra.mxu0 0.0
        %2245 = vmatpush.msra.mxu0 0.0
        %2246 = vmatpush.msra.mxu0 0.0
        %2247 = vmatpush.msra.mxu0 %v2032
        %2248 = vmatpush.msra.mxu0 %v2031
        %2249 = vmatpush.msra.mxu0 %v2030
        %2250 = vmatpush.msra.mxu0 %v2029
        %2251 = vmatmul.f32.gmra.mxu0 %v2233
        %v2252 = vpop.f32.mrf.mxu0
        %v2253 = vadd.f32 %v2230, %v2252
        %2254 = vdwg.mxu0
        %v2255 = vperm.slane %v2016, 0
        %v2256 = vmul.f32 %v2255, %v2253
        %v2257 = vperm.slane %v2017, 0
        %v2258 = vadd.f32 %v2256, %v2257
        %v2259 = vxor.u32 %v2258, 2147483648
        %v2260 = vmul.f32 %v2259, 1.442695
        %v2261 = vpow.pop %v2260
        %v2262 = vadd.f32 %v2261, 1.0
        %v2263 = vrcp.pop %v2262
        %v2264 = vmul.f32 %v2262, %v2263
        %v2265 = vsub.f32 1.0, %v2264
        %v2266 = vmul.f32 %v2263, %v2265
        %v2267 = vadd.f32 %v2263, %v2266
        %vm2268 = vweird.f32 %v2262
        %vm2269 = vweird.f32 %v2263
        %vm2270 = vmor %vm2268, %vm2269
        %v2271 = vsel %vm2270, %v2263, %v2267
        %v2272 = vand.u32 2147483647, %v2262
        %vm2273 = vcmp.eq.f32.partialorder %v2272, 8.507059e+37
        %v2274 = vand.u32 %v2262, 2147483648
        %v2275 = vor.u32 1.1754944e-38, %v2274
        %v2276 = vsel %vm2273, %v2275, %v2271
        %v2277 = vmul.f32 1.0, %v2276
        %v2278 = vmul.f32 %v2059, %v2059
        %v2279 = vmul.f32 %v2087, %v2087
        %v2280 = vadd.f32 %v2278, %v2279
        %v2281 = vmul.f32 %v2115, %v2115
        %v2282 = vadd.f32 %v2280, %v2281
        %v2283 = vperm.slane %v2016, 1
        %v2284 = vmul.f32 %v2283, %v2282
        %v2285 = vperm.slane %v2017, 1
        %v2286 = vadd.f32 %v2284, %v2285
        %v2287 = vxor.u32 %v2286, 2147483648
        %v2288 = vmul.f32 %v2287, 1.442695
        %v2289 = vpow.pop %v2288
        %v2290 = vadd.f32 %v2289, 1.0
        %v2291 = vrcp.pop %v2290
        %v2292 = vmul.f32 %v2290, %v2291
        %v2293 = vsub.f32 1.0, %v2292
        %v2294 = vmul.f32 %v2291, %v2293
        %v2295 = vadd.f32 %v2291, %v2294
        %vm2296 = vweird.f32 %v2290
        %vm2297 = vweird.f32 %v2291
        %vm2298 = vmor %vm2296, %vm2297
        %v2299 = vsel %vm2298, %v2291, %v2295
        %v2300 = vand.u32 2147483647, %v2290
        %vm2301 = vcmp.eq.f32.partialorder %v2300, 8.507059e+37
        %v2302 = vand.u32 %v2290, 2147483648
        %v2303 = vor.u32 1.1754944e-38, %v2302
        %v2304 = vsel %vm2301, %v2303, %v2299
        %v2305 = vmul.f32 1.0, %v2304
        %v2306 = vmul.f32 %v2143, %v2143
        %v2307 = vmul.f32 %v2171, %v2171
        %v2308 = vadd.f32 %v2306, %v2307
        %v2309 = vmul.f32 %v2199, %v2199
        %v2310 = vadd.f32 %v2308, %v2309
        %v2311 = vperm.slane %v2016, 2
        %v2312 = vmul.f32 %v2311, %v2310
        %v2313 = vperm.slane %v2017, 2
        %v2314 = vadd.f32 %v2312, %v2313
        %v2315 = vxor.u32 %v2314, 2147483648
        %v2316 = vmul.f32 %v2315, 1.442695
        %v2317 = vpow.pop %v2316
        %v2318 = vadd.f32 %v2317, 1.0
        %v2319 = vrcp.pop %v2318
        %v2320 = vmul.f32 %v2318, %v2319
        %v2321 = vsub.f32 1.0, %v2320
        %v2322 = vmul.f32 %v2319, %v2321
        %v2323 = vadd.f32 %v2319, %v2322
        %vm2324 = vweird.f32 %v2318
        %vm2325 = vweird.f32 %v2319
        %vm2326 = vmor %vm2324, %vm2325
        %v2327 = vsel %vm2326, %v2319, %v2323
        %v2328 = vand.u32 2147483647, %v2318
        %vm2329 = vcmp.eq.f32.partialorder %v2328, 8.507059e+37
        %v2330 = vand.u32 %v2318, 2147483648
        %v2331 = vor.u32 1.1754944e-38, %v2330
        %v2332 = vsel %vm2329, %v2331, %v2327
        %v2333 = vmul.f32 1.0, %v2332
        %v2334 = vmul.f32 %v2227, %v2227
        %v2335 = vperm.slane %v2016, 3
        %v2336 = vmul.f32 %v2335, %v2334
        %v2337 = vperm.slane %v2017, 3
        %v2338 = vadd.f32 %v2336, %v2337
        %v2339 = vxor.u32 %v2338, 2147483648
        %v2340 = vmul.f32 %v2339, 1.442695
        %v2341 = vpow.pop %v2340
        %v2342 = vadd.f32 %v2341, 1.0
        %v2343 = vrcp.pop %v2342
        %v2344 = vmul.f32 %v2342, %v2343
        %v2345 = vsub.f32 1.0, %v2344
        %v2346 = vmul.f32 %v2343, %v2345
        %v2347 = vadd.f32 %v2343, %v2346
        %vm2348 = vweird.f32 %v2342
        %vm2349 = vweird.f32 %v2343
        %vm2350 = vmor %vm2348, %vm2349
        %v2351 = vsel %vm2350, %v2343, %v2347
        %v2352 = vand.u32 2147483647, %v2342
        %vm2353 = vcmp.eq.f32.partialorder %v2352, 8.507059e+37
        %v2354 = vand.u32 %v2342, 2147483648
        %v2355 = vor.u32 1.1754944e-38, %v2354
        %v2356 = vsel %vm2353, %v2355, %v2351
        %v2357 = vmul.f32 1.0, %v2356
        %v2358 = vmul.f32 %v2277, %v2253
        %v2359 = vmul.f32 %v2305, %v2059
        %v2360 = vmul.f32 %v2305, %v2087
        %v2361 = vmul.f32 %v2305, %v2115
        %v2362 = vmul.f32 %v2333, %v2143
        %v2363 = vmul.f32 %v2333, %v2171
        %v2364 = vmul.f32 %v2333, %v2199
        %v2365 = vmul.f32 %v2357, %v2227
        %v2366 = vld [vmem:[%s15] sm:$0xff]
        %vm2367 = vcmask 64512
        %v2369 = vsel %vm2367, %v2358, 0
        %2371 = vmatpush.msra.mxu0 0.0
        %2372 = vmatpush.msra.mxu0 0.0
        %2373 = vmatpush.msra.mxu0 0.0
        %2374 = vmatpush.msra.mxu0 0.0
        %2375 = vmatpush.msra.mxu0 0.0
        %2376 = vmatpush.msra.mxu0 0.0
        %2377 = vmatpush.msra.mxu0 0.0
        %2378 = vmatpush.msra.mxu0 0.0
        %2379 = vmatpush.msra.mxu0 0.0
        %2380 = vmatpush.msra.mxu0 0.0
        %2381 = vmatpush.msra.mxu0 0.0
        %2382 = vmatpush.msra.mxu0 0.0
        %2383 = vmatpush.msra.mxu0 0.0
        %2384 = vmatpush.msra.mxu0 0.0
        %2385 = vmatpush.msra.mxu0 0.0
        %2386 = vmatpush.msra.mxu0 %v2366
        %2387 = vmatmul.f32.gmra.mxu0 %v2369
        %v2388 = vpop.f32.mrf.mxu0
        %v2389 = vadd.f32 0.0, %v2388
        %2390 = vdwg.mxu0
        %s2391 = scalar_lea.vmem %s15, 8
        %v2392 = vld [vmem:[%s2391] sm:$0xff]
        %v2394 = vsel %vm2367, %v2359, 0
        %2396 = vmatpush.msra.mxu0 0.0
        %2397 = vmatpush.msra.mxu0 0.0
        %2398 = vmatpush.msra.mxu0 0.0
        %2399 = vmatpush.msra.mxu0 0.0
        %2400 = vmatpush.msra.mxu0 0.0
        %2401 = vmatpush.msra.mxu0 0.0
        %2402 = vmatpush.msra.mxu0 0.0
        %2403 = vmatpush.msra.mxu0 0.0
        %2404 = vmatpush.msra.mxu0 0.0
        %2405 = vmatpush.msra.mxu0 0.0
        %2406 = vmatpush.msra.mxu0 0.0
        %2407 = vmatpush.msra.mxu0 0.0
        %2408 = vmatpush.msra.mxu0 0.0
        %2409 = vmatpush.msra.mxu0 0.0
        %2410 = vmatpush.msra.mxu0 0.0
        %2411 = vmatpush.msra.mxu0 %v2392
        %2412 = vmatmul.f32.gmra.mxu0 %v2394
        %v2413 = vpop.f32.mrf.mxu0
        %v2414 = vadd.f32 0.0, %v2413
        %2415 = vdwg.mxu0
        %s2416 = scalar_lea.vmem %s15, 16
        %v2417 = vld [vmem:[%s2416] sm:$0xff]
        %v2419 = vsel %vm2367, %v2360, 0
        %2421 = vmatpush.msra.mxu0 0.0
        %2422 = vmatpush.msra.mxu0 0.0
        %2423 = vmatpush.msra.mxu0 0.0
        %2424 = vmatpush.msra.mxu0 0.0
        %2425 = vmatpush.msra.mxu0 0.0
        %2426 = vmatpush.msra.mxu0 0.0
        %2427 = vmatpush.msra.mxu0 0.0
        %2428 = vmatpush.msra.mxu0 0.0
        %2429 = vmatpush.msra.mxu0 0.0
        %2430 = vmatpush.msra.mxu0 0.0
        %2431 = vmatpush.msra.mxu0 0.0
        %2432 = vmatpush.msra.mxu0 0.0
        %2433 = vmatpush.msra.mxu0 0.0
        %2434 = vmatpush.msra.mxu0 0.0
        %2435 = vmatpush.msra.mxu0 0.0
        %2436 = vmatpush.msra.mxu0 %v2417
        %2437 = vmatmul.f32.gmra.mxu0 %v2419
        %v2438 = vpop.f32.mrf.mxu0
        %v2439 = vadd.f32 0.0, %v2438
        %2440 = vdwg.mxu0
        %s2441 = scalar_lea.vmem %s15, 24
        %v2442 = vld [vmem:[%s2441] sm:$0xff]
        %v2444 = vsel %vm2367, %v2361, 0
        %2446 = vmatpush.msra.mxu0 0.0
        %2447 = vmatpush.msra.mxu0 0.0
        %2448 = vmatpush.msra.mxu0 0.0
        %2449 = vmatpush.msra.mxu0 0.0
        %2450 = vmatpush.msra.mxu0 0.0
        %2451 = vmatpush.msra.mxu0 0.0
        %2452 = vmatpush.msra.mxu0 0.0
        %2453 = vmatpush.msra.mxu0 0.0
        %2454 = vmatpush.msra.mxu0 0.0
        %2455 = vmatpush.msra.mxu0 0.0
        %2456 = vmatpush.msra.mxu0 0.0
        %2457 = vmatpush.msra.mxu0 0.0
        %2458 = vmatpush.msra.mxu0 0.0
        %2459 = vmatpush.msra.mxu0 0.0
        %2460 = vmatpush.msra.mxu0 0.0
        %2461 = vmatpush.msra.mxu0 %v2442
        %2462 = vmatmul.f32.gmra.mxu0 %v2444
        %v2463 = vpop.f32.mrf.mxu0
        %v2464 = vadd.f32 0.0, %v2463
        %2465 = vdwg.mxu0
        %s2466 = scalar_lea.vmem %s15, 32
        %v2467 = vld [vmem:[%s2466] sm:$0xff]
        %v2469 = vsel %vm2367, %v2362, 0
        %2471 = vmatpush.msra.mxu0 0.0
        %2472 = vmatpush.msra.mxu0 0.0
        %2473 = vmatpush.msra.mxu0 0.0
        %2474 = vmatpush.msra.mxu0 0.0
        %2475 = vmatpush.msra.mxu0 0.0
        %2476 = vmatpush.msra.mxu0 0.0
        %2477 = vmatpush.msra.mxu0 0.0
        %2478 = vmatpush.msra.mxu0 0.0
        %2479 = vmatpush.msra.mxu0 0.0
        %2480 = vmatpush.msra.mxu0 0.0
        %2481 = vmatpush.msra.mxu0 0.0
        %2482 = vmatpush.msra.mxu0 0.0
        %2483 = vmatpush.msra.mxu0 0.0
        %2484 = vmatpush.msra.mxu0 0.0
        %2485 = vmatpush.msra.mxu0 0.0
        %2486 = vmatpush.msra.mxu0 %v2467
        %2487 = vmatmul.f32.gmra.mxu0 %v2469
        %v2488 = vpop.f32.mrf.mxu0
        %v2489 = vadd.f32 0.0, %v2488
        %2490 = vdwg.mxu0
        %s2491 = scalar_lea.vmem %s15, 40
        %v2492 = vld [vmem:[%s2491] sm:$0xff]
        %v2494 = vsel %vm2367, %v2363, 0
        %2496 = vmatpush.msra.mxu0 0.0
        %2497 = vmatpush.msra.mxu0 0.0
        %2498 = vmatpush.msra.mxu0 0.0
        %2499 = vmatpush.msra.mxu0 0.0
        %2500 = vmatpush.msra.mxu0 0.0
        %2501 = vmatpush.msra.mxu0 0.0
        %2502 = vmatpush.msra.mxu0 0.0
        %2503 = vmatpush.msra.mxu0 0.0
        %2504 = vmatpush.msra.mxu0 0.0
        %2505 = vmatpush.msra.mxu0 0.0
        %2506 = vmatpush.msra.mxu0 0.0
        %2507 = vmatpush.msra.mxu0 0.0
        %2508 = vmatpush.msra.mxu0 0.0
        %2509 = vmatpush.msra.mxu0 0.0
        %2510 = vmatpush.msra.mxu0 0.0
        %2511 = vmatpush.msra.mxu0 %v2492
        %2512 = vmatmul.f32.gmra.mxu0 %v2494
        %v2513 = vpop.f32.mrf.mxu0
        %v2514 = vadd.f32 0.0, %v2513
        %2515 = vdwg.mxu0
        %s2516 = scalar_lea.vmem %s15, 48
        %v2517 = vld [vmem:[%s2516] sm:$0xff]
        %v2519 = vsel %vm2367, %v2364, 0
        %2521 = vmatpush.msra.mxu0 0.0
        %2522 = vmatpush.msra.mxu0 0.0
        %2523 = vmatpush.msra.mxu0 0.0
        %2524 = vmatpush.msra.mxu0 0.0
        %2525 = vmatpush.msra.mxu0 0.0
        %2526 = vmatpush.msra.mxu0 0.0
        %2527 = vmatpush.msra.mxu0 0.0
        %2528 = vmatpush.msra.mxu0 0.0
        %2529 = vmatpush.msra.mxu0 0.0
        %2530 = vmatpush.msra.mxu0 0.0
        %2531 = vmatpush.msra.mxu0 0.0
        %2532 = vmatpush.msra.mxu0 0.0
        %2533 = vmatpush.msra.mxu0 0.0
        %2534 = vmatpush.msra.mxu0 0.0
        %2535 = vmatpush.msra.mxu0 0.0
        %2536 = vmatpush.msra.mxu0 %v2517
        %2537 = vmatmul.f32.gmra.mxu0 %v2519
        %v2538 = vpop.f32.mrf.mxu0
        %v2539 = vadd.f32 0.0, %v2538
        %2540 = vdwg.mxu0
        %s2541 = scalar_lea.vmem %s15, 56
        %v2542 = vld [vmem:[%s2541] sm:$0xff]
        %v2544 = vsel %vm2367, %v2365, 0
        %2546 = vmatpush.msra.mxu0 0.0
        %2547 = vmatpush.msra.mxu0 0.0
        %2548 = vmatpush.msra.mxu0 0.0
        %2549 = vmatpush.msra.mxu0 0.0
        %2550 = vmatpush.msra.mxu0 0.0
        %2551 = vmatpush.msra.mxu0 0.0
        %2552 = vmatpush.msra.mxu0 0.0
        %2553 = vmatpush.msra.mxu0 0.0
        %2554 = vmatpush.msra.mxu0 0.0
        %2555 = vmatpush.msra.mxu0 0.0
        %2556 = vmatpush.msra.mxu0 0.0
        %2557 = vmatpush.msra.mxu0 0.0
        %2558 = vmatpush.msra.mxu0 0.0
        %2559 = vmatpush.msra.mxu0 0.0
        %2560 = vmatpush.msra.mxu0 0.0
        %2561 = vmatpush.msra.mxu0 %v2542
        %2562 = vmatmul.f32.gmra.mxu0 %v2544
        %v2563 = vpop.f32.mrf.mxu0
        %v2564 = vadd.f32 0.0, %v2563
        %2565 = vdwg.mxu0
        %v2566 = vmul.f32 %v2389, %v2389
        %v2567 = vmul.f32 %v2566, %v2566
        %v2568 = vadd.f32 %v2567, 1e-16
        %v2569 = vrsqrt.pop %v2568
        %v2570 = vmul.f32 %v2569, %v2568
        %v2571 = vmul.f32 %v2570, %v2569
        %v2572 = vmul.f32 0.5, %v2571
        %v2573 = vsub.f32 1.5, %v2572
        %v2574 = vmul.f32 %v2569, %v2573
        %v2575 = vmul.f32 %v2568, %v2574
        %vm2576 = vcmp.eq.f32.partialorder %v2568, inf
        %v2577 = vsel %vm2576, %v2568, %v2575
        %vm2578 = vcmp.eq.f32.partialorder %v2568, 0.0
        %v2579 = vand.u32 %v2568, 2147483648
        %v2580 = vsel %vm2578, %v2579, %v2577
        %v2581 = vrsqrt.pop %v2580
        %v2582 = vmul.f32 %v2581, %v2580
        %v2583 = vmul.f32 %v2582, %v2581
        %v2584 = vmul.f32 0.5, %v2583
        %v2585 = vsub.f32 1.5, %v2584
        %v2586 = vmul.f32 %v2581, %v2585
        %v2587 = vmul.f32 %v2580, %v2586
        %vm2588 = vcmp.eq.f32.partialorder %v2580, inf
        %v2589 = vsel %vm2588, %v2580, %v2587
        %vm2590 = vcmp.eq.f32.partialorder %v2580, 0.0
        %v2591 = vand.u32 %v2580, 2147483648
        %v2592 = vsel %vm2590, %v2591, %v2589
        %v2593 = vxor.u32 %v2018, 2147483648
        %v2594 = vmul.f32 %v2593, 1.442695
        %v2595 = vpow.pop %v2594
        %v2596 = vadd.f32 %v2595, 1.0
        %v2597 = vrcp.pop %v2596
        %v2598 = vmul.f32 %v2596, %v2597
        %v2599 = vsub.f32 1.0, %v2598
        %v2600 = vmul.f32 %v2597, %v2599
        %v2601 = vadd.f32 %v2597, %v2600
        %vm2602 = vweird.f32 %v2596
        %vm2603 = vweird.f32 %v2597
        %vm2604 = vmor %vm2602, %vm2603
        %v2605 = vsel %vm2604, %v2597, %v2601
        %v2606 = vand.u32 2147483647, %v2596
        %vm2607 = vcmp.eq.f32.partialorder %v2606, 8.507059e+37
        %v2608 = vand.u32 %v2596, 2147483648
        %v2609 = vor.u32 1.1754944e-38, %v2608
        %v2610 = vsel %vm2607, %v2609, %v2605
        %v2611 = vmul.f32 1.0, %v2610
        %v2612 = vsub.f32 %v2592, 1.0
        %v2613 = vperm.slane %v2611, 0
        %v2614 = vmul.f32 %v2613, %v2612
        %v2615 = vadd.f32 %v2614, 1.0
        %v2616 = vadd.f32 %v2615, 1e-06
        %v2617 = vrcp.pop %v2616
        %v2618 = vmul.f32 %v2616, %v2617
        %v2619 = vsub.f32 1.0, %v2618
        %v2620 = vmul.f32 %v2617, %v2619
        %v2621 = vadd.f32 %v2617, %v2620
        %vm2622 = vweird.f32 %v2616
        %vm2623 = vweird.f32 %v2617
        %vm2624 = vmor %vm2622, %vm2623
        %v2625 = vsel %vm2624, %v2617, %v2621
        %v2626 = vand.u32 2147483647, %v2616
        %vm2627 = vcmp.eq.f32.partialorder %v2626, 8.507059e+37
        %v2628 = vand.u32 %v2616, 2147483648
        %v2629 = vor.u32 1.1754944e-38, %v2628
        %v2630 = vsel %vm2627, %v2629, %v2625
        %v2631 = vmul.f32 1.0, %v2630
        %v2632 = vmul.f32 %v2389, %v2631
        %v2633 = vmul.f32 %v2414, %v2414
        %v2634 = vmul.f32 %v2439, %v2439
        %v2635 = vadd.f32 %v2633, %v2634
        %v2636 = vmul.f32 %v2464, %v2464
        %v2637 = vadd.f32 %v2635, %v2636
        %v2638 = vmul.f32 %v2637, %v2637
        %v2639 = vadd.f32 %v2638, 1e-16
        %v2640 = vrsqrt.pop %v2639
        %v2641 = vmul.f32 %v2640, %v2639
        %v2642 = vmul.f32 %v2641, %v2640
        %v2643 = vmul.f32 0.5, %v2642
        %v2644 = vsub.f32 1.5, %v2643
        %v2645 = vmul.f32 %v2640, %v2644
        %v2646 = vmul.f32 %v2639, %v2645
        %vm2647 = vcmp.eq.f32.partialorder %v2639, inf
        %v2648 = vsel %vm2647, %v2639, %v2646
        %vm2649 = vcmp.eq.f32.partialorder %v2639, 0.0
        %v2650 = vand.u32 %v2639, 2147483648
        %v2651 = vsel %vm2649, %v2650, %v2648
        %v2652 = vrsqrt.pop %v2651
        %v2653 = vmul.f32 %v2652, %v2651
        %v2654 = vmul.f32 %v2653, %v2652
        %v2655 = vmul.f32 0.5, %v2654
        %v2656 = vsub.f32 1.5, %v2655
        %v2657 = vmul.f32 %v2652, %v2656
        %v2658 = vmul.f32 %v2651, %v2657
        %vm2659 = vcmp.eq.f32.partialorder %v2651, inf
        %v2660 = vsel %vm2659, %v2651, %v2658
        %vm2661 = vcmp.eq.f32.partialorder %v2651, 0.0
        %v2662 = vand.u32 %v2651, 2147483648
        %v2663 = vsel %vm2661, %v2662, %v2660
        %v2664 = vsub.f32 %v2663, 1.0
        %v2665 = vperm.slane %v2611, 1
        %v2666 = vmul.f32 %v2665, %v2664
        %v2667 = vadd.f32 %v2666, 1.0
        %v2668 = vadd.f32 %v2667, 1e-06
        %v2669 = vrcp.pop %v2668
        %v2670 = vmul.f32 %v2668, %v2669
        %v2671 = vsub.f32 1.0, %v2670
        %v2672 = vmul.f32 %v2669, %v2671
        %v2673 = vadd.f32 %v2669, %v2672
        %vm2674 = vweird.f32 %v2668
        %vm2675 = vweird.f32 %v2669
        %vm2676 = vmor %vm2674, %vm2675
        %v2677 = vsel %vm2676, %v2669, %v2673
        %v2678 = vand.u32 2147483647, %v2668
        %vm2679 = vcmp.eq.f32.partialorder %v2678, 8.507059e+37
        %v2680 = vand.u32 %v2668, 2147483648
        %v2681 = vor.u32 1.1754944e-38, %v2680
        %v2682 = vsel %vm2679, %v2681, %v2677
        %v2683 = vmul.f32 1.0, %v2682
        %v2684 = vmul.f32 %v2414, %v2683
        %v2685 = vmul.f32 %v2439, %v2683
        %v2686 = vmul.f32 %v2464, %v2683
        %v2687 = vmul.f32 %v2489, %v2489
        %v2688 = vmul.f32 %v2514, %v2514
        %v2689 = vadd.f32 %v2687, %v2688
        %v2690 = vmul.f32 %v2539, %v2539
        %v2691 = vadd.f32 %v2689, %v2690
        %v2692 = vmul.f32 %v2691, %v2691
        %v2693 = vadd.f32 %v2692, 1e-16
        %v2694 = vrsqrt.pop %v2693
        %v2695 = vmul.f32 %v2694, %v2693
        %v2696 = vmul.f32 %v2695, %v2694
        %v2697 = vmul.f32 0.5, %v2696
        %v2698 = vsub.f32 1.5, %v2697
        %v2699 = vmul.f32 %v2694, %v2698
        %v2700 = vmul.f32 %v2693, %v2699
        %vm2701 = vcmp.eq.f32.partialorder %v2693, inf
        %v2702 = vsel %vm2701, %v2693, %v2700
        %vm2703 = vcmp.eq.f32.partialorder %v2693, 0.0
        %v2704 = vand.u32 %v2693, 2147483648
        %v2705 = vsel %vm2703, %v2704, %v2702
        %v2706 = vrsqrt.pop %v2705
        %v2707 = vmul.f32 %v2706, %v2705
        %v2708 = vmul.f32 %v2707, %v2706
        %v2709 = vmul.f32 0.5, %v2708
        %v2710 = vsub.f32 1.5, %v2709
        %v2711 = vmul.f32 %v2706, %v2710
        %v2712 = vmul.f32 %v2705, %v2711
        %vm2713 = vcmp.eq.f32.partialorder %v2705, inf
        %v2714 = vsel %vm2713, %v2705, %v2712
        %vm2715 = vcmp.eq.f32.partialorder %v2705, 0.0
        %v2716 = vand.u32 %v2705, 2147483648
        %v2717 = vsel %vm2715, %v2716, %v2714
        %v2718 = vsub.f32 %v2717, 1.0
        %v2719 = vperm.slane %v2611, 2
        %v2720 = vmul.f32 %v2719, %v2718
        %v2721 = vadd.f32 %v2720, 1.0
        %v2722 = vadd.f32 %v2721, 1e-06
        %v2723 = vrcp.pop %v2722
        %v2724 = vmul.f32 %v2722, %v2723
        %v2725 = vsub.f32 1.0, %v2724
        %v2726 = vmul.f32 %v2723, %v2725
        %v2727 = vadd.f32 %v2723, %v2726
        %vm2728 = vweird.f32 %v2722
        %vm2729 = vweird.f32 %v2723
        %vm2730 = vmor %vm2728, %vm2729
        %v2731 = vsel %vm2730, %v2723, %v2727
        %v2732 = vand.u32 2147483647, %v2722
        %vm2733 = vcmp.eq.f32.partialorder %v2732, 8.507059e+37
        %v2734 = vand.u32 %v2722, 2147483648
        %v2735 = vor.u32 1.1754944e-38, %v2734
        %v2736 = vsel %vm2733, %v2735, %v2731
        %v2737 = vmul.f32 1.0, %v2736
        %v2738 = vmul.f32 %v2489, %v2737
        %v2739 = vmul.f32 %v2514, %v2737
        %v2740 = vmul.f32 %v2539, %v2737
        %v2741 = vmul.f32 %v2564, %v2564
        %v2742 = vmul.f32 %v2741, %v2741
        %v2743 = vadd.f32 %v2742, 1e-16
        %v2744 = vrsqrt.pop %v2743
        %v2745 = vmul.f32 %v2744, %v2743
        %v2746 = vmul.f32 %v2745, %v2744
        %v2747 = vmul.f32 0.5, %v2746
        %v2748 = vsub.f32 1.5, %v2747
        %v2749 = vmul.f32 %v2744, %v2748
        %v2750 = vmul.f32 %v2743, %v2749
        %vm2751 = vcmp.eq.f32.partialorder %v2743, inf
        %v2752 = vsel %vm2751, %v2743, %v2750
        %vm2753 = vcmp.eq.f32.partialorder %v2743, 0.0
        %v2754 = vand.u32 %v2743, 2147483648
        %v2755 = vsel %vm2753, %v2754, %v2752
        %v2756 = vrsqrt.pop %v2755
        %v2757 = vmul.f32 %v2756, %v2755
        %v2758 = vmul.f32 %v2757, %v2756
        %v2759 = vmul.f32 0.5, %v2758
        %v2760 = vsub.f32 1.5, %v2759
        %v2761 = vmul.f32 %v2756, %v2760
        %v2762 = vmul.f32 %v2755, %v2761
        %vm2763 = vcmp.eq.f32.partialorder %v2755, inf
        %v2764 = vsel %vm2763, %v2755, %v2762
        %vm2765 = vcmp.eq.f32.partialorder %v2755, 0.0
        %v2766 = vand.u32 %v2755, 2147483648
        %v2767 = vsel %vm2765, %v2766, %v2764
        %v2768 = vsub.f32 %v2767, 1.0
        %v2769 = vperm.slane %v2611, 3
        %v2770 = vmul.f32 %v2769, %v2768
        %v2771 = vadd.f32 %v2770, 1.0
        %v2772 = vadd.f32 %v2771, 1e-06
        %v2773 = vrcp.pop %v2772
        %v2774 = vmul.f32 %v2772, %v2773
        %v2775 = vsub.f32 1.0, %v2774
        %v2776 = vmul.f32 %v2773, %v2775
        %v2777 = vadd.f32 %v2773, %v2776
        %vm2778 = vweird.f32 %v2772
        %vm2779 = vweird.f32 %v2773
        %vm2780 = vmor %vm2778, %vm2779
        %v2781 = vsel %vm2780, %v2773, %v2777
        %v2782 = vand.u32 2147483647, %v2772
        %vm2783 = vcmp.eq.f32.partialorder %v2782, 8.507059e+37
        %v2784 = vand.u32 %v2772, 2147483648
        %v2785 = vor.u32 1.1754944e-38, %v2784
        %v2786 = vsel %vm2783, %v2785, %v2781
        %v2787 = vmul.f32 1.0, %v2786
        %v2788 = vmul.f32 %v2564, %v2787
        %v2789 = vld [vmem:[%s17] sm:$0xff]
        %s2790 = scalar_lea.vmem %s17, 8
        %v2791 = vld [vmem:[%s2790] sm:$0xff]
        %s2792 = scalar_lea.vmem %s17, 16
        %v2793 = vld [vmem:[%s2792] sm:$0xff]
        %s2794 = scalar_lea.vmem %s17, 24
        %v2795 = vld [vmem:[%s2794] sm:$0xff]
        %s2796 = scalar_lea.vmem %s17, 32
        %v2797 = vld [vmem:[%s2796] sm:$0xff]
        %s2798 = scalar_lea.vmem %s17, 40
        %v2799 = vld [vmem:[%s2798] sm:$0xff]
        %s2800 = scalar_lea.vmem %s17, 48
        %v2801 = vld [vmem:[%s2800] sm:$0xff]
        %s2802 = scalar_lea.vmem %s17, 56
        %v2803 = vld [vmem:[%s2802] sm:$0xff]
        %v2805 = vperm.slane %v2019, 0
        %2807 = vmatpush.msra.mxu0 0.0
        %2808 = vmatpush.msra.mxu0 0.0
        %2809 = vmatpush.msra.mxu0 0.0
        %2810 = vmatpush.msra.mxu0 0.0
        %2811 = vmatpush.msra.mxu0 0.0
        %2812 = vmatpush.msra.mxu0 0.0
        %2813 = vmatpush.msra.mxu0 0.0
        %2814 = vmatpush.msra.mxu0 0.0
        %2815 = vmatpush.msra.mxu0 0.0
        %2816 = vmatpush.msra.mxu0 0.0
        %2817 = vmatpush.msra.mxu0 0.0
        %2818 = vmatpush.msra.mxu0 0.0
        %2819 = vmatpush.msra.mxu0 0.0
        %2820 = vmatpush.msra.mxu0 0.0
        %2821 = vmatpush.msra.mxu0 0.0
        %2822 = vmatpush.msra.mxu0 %v2789
        %2823 = vmatmul.f32.gmra.mxu0 %v2369
        %v2824 = vpop.f32.mrf.mxu0
        %v2825 = vadd.f32 %v2805, %v2824
        %2826 = vdwg.mxu0
        %v2827 = vmul.f32 %v2358, %v2632
        %v2828 = vperm.slane %v2020, 0
        %v2829 = vmul.f32 %v2828, %v2827
        %v2830 = vmul.f32 %v2358, %v2684
        %v2831 = vperm.slane %v2020, 1
        %v2832 = vmul.f32 %v2831, %v2830
        %v2833 = vmul.f32 %v2358, %v2685
        %v2834 = vperm.slane %v2020, 2
        %v2835 = vmul.f32 %v2834, %v2833
        %v2836 = vmul.f32 %v2358, %v2686
        %v2837 = vperm.slane %v2020, 3
        %v2838 = vmul.f32 %v2837, %v2836
        %v2839 = vmul.f32 %v2358, %v2738
        %v2840 = vperm.slane %v2020, 4
        %v2841 = vmul.f32 %v2840, %v2839
        %v2842 = vmul.f32 %v2358, %v2739
        %v2843 = vperm.slane %v2020, 5
        %v2844 = vmul.f32 %v2843, %v2842
        %v2845 = vmul.f32 %v2358, %v2740
        %v2846 = vperm.slane %v2020, 6
        %v2847 = vmul.f32 %v2846, %v2845
        %v2848 = vmul.f32 %v2358, %v2788
        %v2849 = vperm.slane %v2020, 7
        %v2850 = vmul.f32 %v2849, %v2848
        %v2851 = vmul.f32 %v2359, %v2684
        %v2852 = vperm.slane %v2021, 0
        %v2853 = vmul.f32 %v2852, %v2851
        %v2854 = vadd.f32 %v2829, %v2853
        %v2855 = vmul.f32 %v2359, %v2632
        %v2856 = vperm.slane %v2021, 1
        %v2857 = vmul.f32 %v2856, %v2855
        %v2858 = vadd.f32 %v2832, %v2857
        %v2859 = vmul.f32 %v2359, %v2738
        %v2860 = vperm.slane %v2021, 2
        %v2861 = vmul.f32 %v2860, %v2859
        %v2862 = vadd.f32 %v2835, %v2861
        %v2863 = vmul.f32 %v2359, %v2739
        %v2864 = vperm.slane %v2021, 3
        %v2865 = vmul.f32 %v2864, %v2863
        %v2866 = vadd.f32 %v2838, %v2865
        %v2867 = vmul.f32 %v2359, %v2685
        %v2868 = vperm.slane %v2021, 4
        %v2869 = vmul.f32 %v2868, %v2867
        %v2870 = vadd.f32 %v2841, %v2869
        %v2871 = vmul.f32 %v2359, %v2686
        %v2872 = vperm.slane %v2021, 5
        %v2873 = vmul.f32 %v2872, %v2871
        %v2874 = vadd.f32 %v2844, %v2873
        %v2875 = vmul.f32 %v2359, %v2788
        %v2876 = vperm.slane %v2021, 6
        %v2877 = vmul.f32 %v2876, %v2875
        %v2878 = vadd.f32 %v2847, %v2877
        %v2879 = vmul.f32 %v2359, %v2740
        %v2880 = vperm.slane %v2021, 7
        %v2881 = vmul.f32 %v2880, %v2879
        %v2882 = vadd.f32 %v2850, %v2881
        %v2883 = vmul.f32 %v2360, %v2685
        %v2884 = vperm.slane %v2022, 0
        %v2885 = vmul.f32 %v2884, %v2883
        %v2886 = vadd.f32 %v2854, %v2885
        %v2887 = vmul.f32 %v2360, %v2738
        %v2888 = vperm.slane %v2022, 1
        %v2889 = vmul.f32 %v2888, %v2887
        %v2890 = vadd.f32 %v2858, %v2889
        %v2891 = vmul.f32 %v2360, %v2632
        %v2892 = vperm.slane %v2022, 2
        %v2893 = vmul.f32 %v2892, %v2891
        %v2894 = vadd.f32 %v2862, %v2893
        %v2895 = vmul.f32 %v2360, %v2740
        %v2896 = vperm.slane %v2022, 3
        %v2897 = vmul.f32 %v2896, %v2895
        %v2898 = vadd.f32 %v2866, %v2897
        %v2899 = vmul.f32 %v2360, %v2684
        %v2900 = vperm.slane %v2022, 4
        %v2901 = vmul.f32 %v2900, %v2899
        %v2902 = vadd.f32 %v2870, %v2901
        %v2903 = vmul.f32 %v2360, %v2788
        %v2904 = vperm.slane %v2022, 5
        %v2905 = vmul.f32 %v2904, %v2903
        %v2906 = vadd.f32 %v2874, %v2905
        %v2907 = vmul.f32 %v2360, %v2686
        %v2908 = vperm.slane %v2022, 6
        %v2909 = vmul.f32 %v2908, %v2907
        %v2910 = vadd.f32 %v2878, %v2909
        %v2911 = vmul.f32 %v2360, %v2739
        %v2912 = vperm.slane %v2022, 7
        %v2913 = vmul.f32 %v2912, %v2911
        %v2914 = vadd.f32 %v2882, %v2913
        %v2915 = vmul.f32 %v2361, %v2686
        %v2916 = vperm.slane %v2023, 0
        %v2917 = vmul.f32 %v2916, %v2915
        %v2918 = vadd.f32 %v2886, %v2917
        %v2919 = vmul.f32 %v2361, %v2739
        %v2920 = vperm.slane %v2023, 1
        %v2921 = vmul.f32 %v2920, %v2919
        %v2922 = vadd.f32 %v2890, %v2921
        %v2923 = vmul.f32 %v2361, %v2740
        %v2924 = vperm.slane %v2023, 2
        %v2925 = vmul.f32 %v2924, %v2923
        %v2926 = vadd.f32 %v2894, %v2925
        %v2927 = vmul.f32 %v2361, %v2632
        %v2928 = vperm.slane %v2023, 3
        %v2929 = vmul.f32 %v2928, %v2927
        %v2930 = vadd.f32 %v2898, %v2929
        %v2931 = vmul.f32 %v2361, %v2788
        %v2932 = vperm.slane %v2023, 4
        %v2933 = vmul.f32 %v2932, %v2931
        %v2934 = vadd.f32 %v2902, %v2933
        %v2935 = vmul.f32 %v2361, %v2684
        %v2936 = vperm.slane %v2023, 5
        %v2937 = vmul.f32 %v2936, %v2935
        %v2938 = vadd.f32 %v2906, %v2937
        %v2939 = vmul.f32 %v2361, %v2685
        %v2940 = vperm.slane %v2023, 6
        %v2941 = vmul.f32 %v2940, %v2939
        %v2942 = vadd.f32 %v2910, %v2941
        %v2943 = vmul.f32 %v2361, %v2738
        %v2944 = vperm.slane %v2023, 7
        %v2945 = vmul.f32 %v2944, %v2943
        %v2946 = vadd.f32 %v2914, %v2945
        %v2947 = vmul.f32 %v2362, %v2738
        %v2948 = vperm.slane %v2024, 0
        %v2949 = vmul.f32 %v2948, %v2947
        %v2950 = vadd.f32 %v2918, %v2949
        %v2951 = vmul.f32 %v2362, %v2685
        %v2952 = vperm.slane %v2024, 1
        %v2953 = vmul.f32 %v2952, %v2951
        %v2954 = vadd.f32 %v2922, %v2953
        %v2955 = vmul.f32 %v2362, %v2684
        %v2956 = vperm.slane %v2024, 2
        %v2957 = vmul.f32 %v2956, %v2955
        %v2958 = vadd.f32 %v2926, %v2957
        %v2959 = vmul.f32 %v2362, %v2788
        %v2960 = vperm.slane %v2024, 3
        %v2961 = vmul.f32 %v2960, %v2959
        %v2962 = vadd.f32 %v2930, %v2961
        %v2963 = vmul.f32 %v2362, %v2632
        %v2964 = vperm.slane %v2024, 4
        %v2965 = vmul.f32 %v2964, %v2963
        %v2966 = vadd.f32 %v2934, %v2965
        %v2967 = vmul.f32 %v2362, %v2740
        %v2968 = vperm.slane %v2024, 5
        %v2969 = vmul.f32 %v2968, %v2967
        %v2970 = vadd.f32 %v2938, %v2969
        %v2971 = vmul.f32 %v2362, %v2739
        %v2972 = vperm.slane %v2024, 6
        %v2973 = vmul.f32 %v2972, %v2971
        %v2974 = vadd.f32 %v2942, %v2973
        %v2975 = vmul.f32 %v2362, %v2686
        %v2976 = vperm.slane %v2024, 7
        %v2977 = vmul.f32 %v2976, %v2975
        %v2978 = vadd.f32 %v2946, %v2977
        %v2979 = vmul.f32 %v2363, %v2739
        %v2980 = vperm.slane %v2025, 0
        %v2981 = vmul.f32 %v2980, %v2979
        %v2982 = vadd.f32 %v2950, %v2981
        %v2983 = vmul.f32 %v2363, %v2686
        %v2984 = vperm.slane %v2025, 1
        %v2985 = vmul.f32 %v2984, %v2983
        %v2986 = vadd.f32 %v2954, %v2985
        %v2987 = vmul.f32 %v2363, %v2788
        %v2988 = vperm.slane %v2025, 2
        %v2989 = vmul.f32 %v2988, %v2987
        %v2990 = vadd.f32 %v2958, %v2989
        %v2991 = vmul.f32 %v2363, %v2684
        %v2992 = vperm.slane %v2025, 3
        %v2993 = vmul.f32 %v2992, %v2991
        %v2994 = vadd.f32 %v2962, %v2993
        %v2995 = vmul.f32 %v2363, %v2740
        %v2996 = vperm.slane %v2025, 4
        %v2997 = vmul.f32 %v2996, %v2995
        %v2998 = vadd.f32 %v2966, %v2997
        %v2999 = vmul.f32 %v2363, %v2632
        %v3000 = vperm.slane %v2025, 5
        %v3001 = vmul.f32 %v3000, %v2999
        %v3002 = vadd.f32 %v2970, %v3001
        %v3003 = vmul.f32 %v2363, %v2738
        %v3004 = vperm.slane %v2025, 6
        %v3005 = vmul.f32 %v3004, %v3003
        %v3006 = vadd.f32 %v2974, %v3005
        %v3007 = vmul.f32 %v2363, %v2685
        %v3008 = vperm.slane %v2025, 7
        %v3009 = vmul.f32 %v3008, %v3007
        %v3010 = vadd.f32 %v2978, %v3009
        %v3011 = vmul.f32 %v2364, %v2740
        %v3012 = vperm.slane %v2026, 0
        %v3013 = vmul.f32 %v3012, %v3011
        %v3014 = vadd.f32 %v2982, %v3013
        %v3015 = vmul.f32 %v2364, %v2788
        %v3016 = vperm.slane %v2026, 1
        %v3017 = vmul.f32 %v3016, %v3015
        %v3018 = vadd.f32 %v2986, %v3017
        %v3019 = vmul.f32 %v2364, %v2686
        %v3020 = vperm.slane %v2026, 2
        %v3021 = vmul.f32 %v3020, %v3019
        %v3022 = vadd.f32 %v2990, %v3021
        %v3023 = vmul.f32 %v2364, %v2685
        %v3024 = vperm.slane %v2026, 3
        %v3025 = vmul.f32 %v3024, %v3023
        %v3026 = vadd.f32 %v2994, %v3025
        %v3027 = vmul.f32 %v2364, %v2739
        %v3028 = vperm.slane %v2026, 4
        %v3029 = vmul.f32 %v3028, %v3027
        %v3030 = vadd.f32 %v2998, %v3029
        %v3031 = vmul.f32 %v2364, %v2738
        %v3032 = vperm.slane %v2026, 5
        %v3033 = vmul.f32 %v3032, %v3031
        %v3034 = vadd.f32 %v3002, %v3033
        %v3035 = vmul.f32 %v2364, %v2632
        %v3036 = vperm.slane %v2026, 6
        %v3037 = vmul.f32 %v3036, %v3035
        %v3038 = vadd.f32 %v3006, %v3037
        %v3039 = vmul.f32 %v2364, %v2684
        %v3040 = vperm.slane %v2026, 7
        %v3041 = vmul.f32 %v3040, %v3039
        %v3042 = vadd.f32 %v3010, %v3041
        %v3043 = vmul.f32 %v2365, %v2788
        %v3044 = vperm.slane %v2027, 0
        %v3045 = vmul.f32 %v3044, %v3043
        %v3046 = vadd.f32 %v3014, %v3045
        %v3047 = vmul.f32 %v2365, %v2740
        %v3048 = vperm.slane %v2027, 1
        %v3049 = vmul.f32 %v3048, %v3047
        %v3050 = vadd.f32 %v3018, %v3049
        %v3051 = vmul.f32 %v2365, %v2739
        %v3052 = vperm.slane %v2027, 2
        %v3053 = vmul.f32 %v3052, %v3051
        %v3054 = vadd.f32 %v3022, %v3053
        %v3055 = vmul.f32 %v2365, %v2738
        %v3056 = vperm.slane %v2027, 3
        %v3057 = vmul.f32 %v3056, %v3055
        %v3058 = vadd.f32 %v3026, %v3057
        %v3059 = vmul.f32 %v2365, %v2686
        %v3060 = vperm.slane %v2027, 4
        %v3061 = vmul.f32 %v3060, %v3059
        %v3062 = vadd.f32 %v3030, %v3061
        %v3063 = vmul.f32 %v2365, %v2685
        %v3064 = vperm.slane %v2027, 5
        %v3065 = vmul.f32 %v3064, %v3063
        %v3066 = vadd.f32 %v3034, %v3065
        %v3067 = vmul.f32 %v2365, %v2684
        %v3068 = vperm.slane %v2027, 6
        %v3069 = vmul.f32 %v3068, %v3067
        %v3070 = vadd.f32 %v3038, %v3069
        %v3071 = vmul.f32 %v2365, %v2632
        %v3072 = vperm.slane %v2027, 7
        %v3073 = vmul.f32 %v3072, %v3071
        %v3074 = vadd.f32 %v3042, %v3073
        %v3075 = vadd.f32 %v2825, %v3046
        %v3076 = vmul.f32 %v3075, 0.70710677
        %3077 = vmatpush.msra.mxu0 0.0
        %3078 = vmatpush.msra.mxu0 0.0
        %3079 = vmatpush.msra.mxu0 0.0
        %3080 = vmatpush.msra.mxu0 0.0
        %3081 = vmatpush.msra.mxu0 0.0
        %3082 = vmatpush.msra.mxu0 0.0
        %3083 = vmatpush.msra.mxu0 0.0
        %3084 = vmatpush.msra.mxu0 0.0
        %3085 = vmatpush.msra.mxu0 0.0
        %3086 = vmatpush.msra.mxu0 0.0
        %3087 = vmatpush.msra.mxu0 0.0
        %3088 = vmatpush.msra.mxu0 0.0
        %3089 = vmatpush.msra.mxu0 0.0
        %3090 = vmatpush.msra.mxu0 0.0
        %3091 = vmatpush.msra.mxu0 0.0
        %3092 = vmatpush.msra.mxu0 %v2791
        %3093 = vmatmul.f32.gmra.mxu0 %v2394
        %v3094 = vpop.f32.mrf.mxu0
        %v3095 = vadd.f32 %v3050, %v3094
        %3096 = vdwg.mxu0
        %v3097 = vmul.f32 %v3095, 0.70710677
        %3098 = vmatpush.msra.mxu0 0.0
        %3099 = vmatpush.msra.mxu0 0.0
        %3100 = vmatpush.msra.mxu0 0.0
        %3101 = vmatpush.msra.mxu0 0.0
        %3102 = vmatpush.msra.mxu0 0.0
        %3103 = vmatpush.msra.mxu0 0.0
        %3104 = vmatpush.msra.mxu0 0.0
        %3105 = vmatpush.msra.mxu0 0.0
        %3106 = vmatpush.msra.mxu0 0.0
        %3107 = vmatpush.msra.mxu0 0.0
        %3108 = vmatpush.msra.mxu0 0.0
        %3109 = vmatpush.msra.mxu0 0.0
        %3110 = vmatpush.msra.mxu0 0.0
        %3111 = vmatpush.msra.mxu0 0.0
        %3112 = vmatpush.msra.mxu0 0.0
        %3113 = vmatpush.msra.mxu0 %v2793
        %3114 = vmatmul.f32.gmra.mxu0 %v2419
        %v3115 = vpop.f32.mrf.mxu0
        %v3116 = vadd.f32 %v3054, %v3115
        %3117 = vdwg.mxu0
        %v3118 = vmul.f32 %v3116, 0.70710677
        %3119 = vmatpush.msra.mxu0 0.0
        %3120 = vmatpush.msra.mxu0 0.0
        %3121 = vmatpush.msra.mxu0 0.0
        %3122 = vmatpush.msra.mxu0 0.0
        %3123 = vmatpush.msra.mxu0 0.0
        %3124 = vmatpush.msra.mxu0 0.0
        %3125 = vmatpush.msra.mxu0 0.0
        %3126 = vmatpush.msra.mxu0 0.0
        %3127 = vmatpush.msra.mxu0 0.0
        %3128 = vmatpush.msra.mxu0 0.0
        %3129 = vmatpush.msra.mxu0 0.0
        %3130 = vmatpush.msra.mxu0 0.0
        %3131 = vmatpush.msra.mxu0 0.0
        %3132 = vmatpush.msra.mxu0 0.0
        %3133 = vmatpush.msra.mxu0 0.0
        %3134 = vmatpush.msra.mxu0 %v2795
        %3135 = vmatmul.f32.gmra.mxu0 %v2444
        %v3136 = vpop.f32.mrf.mxu0
        %v3137 = vadd.f32 %v3058, %v3136
        %3138 = vdwg.mxu0
        %v3139 = vmul.f32 %v3137, 0.70710677
        %3140 = vmatpush.msra.mxu0 0.0
        %3141 = vmatpush.msra.mxu0 0.0
        %3142 = vmatpush.msra.mxu0 0.0
        %3143 = vmatpush.msra.mxu0 0.0
        %3144 = vmatpush.msra.mxu0 0.0
        %3145 = vmatpush.msra.mxu0 0.0
        %3146 = vmatpush.msra.mxu0 0.0
        %3147 = vmatpush.msra.mxu0 0.0
        %3148 = vmatpush.msra.mxu0 0.0
        %3149 = vmatpush.msra.mxu0 0.0
        %3150 = vmatpush.msra.mxu0 0.0
        %3151 = vmatpush.msra.mxu0 0.0
        %3152 = vmatpush.msra.mxu0 0.0
        %3153 = vmatpush.msra.mxu0 0.0
        %3154 = vmatpush.msra.mxu0 0.0
        %3155 = vmatpush.msra.mxu0 %v2797
        %3156 = vmatmul.f32.gmra.mxu0 %v2469
        %v3157 = vpop.f32.mrf.mxu0
        %v3158 = vadd.f32 %v3062, %v3157
        %3159 = vdwg.mxu0
        %v3160 = vmul.f32 %v3158, 0.70710677
        %3161 = vmatpush.msra.mxu0 0.0
        %3162 = vmatpush.msra.mxu0 0.0
        %3163 = vmatpush.msra.mxu0 0.0
        %3164 = vmatpush.msra.mxu0 0.0
        %3165 = vmatpush.msra.mxu0 0.0
        %3166 = vmatpush.msra.mxu0 0.0
        %3167 = vmatpush.msra.mxu0 0.0
        %3168 = vmatpush.msra.mxu0 0.0
        %3169 = vmatpush.msra.mxu0 0.0
        %3170 = vmatpush.msra.mxu0 0.0
        %3171 = vmatpush.msra.mxu0 0.0
        %3172 = vmatpush.msra.mxu0 0.0
        %3173 = vmatpush.msra.mxu0 0.0
        %3174 = vmatpush.msra.mxu0 0.0
        %3175 = vmatpush.msra.mxu0 0.0
        %3176 = vmatpush.msra.mxu0 %v2799
        %3177 = vmatmul.f32.gmra.mxu0 %v2494
        %v3178 = vpop.f32.mrf.mxu0
        %v3179 = vadd.f32 %v3066, %v3178
        %3180 = vdwg.mxu0
        %v3181 = vmul.f32 %v3179, 0.70710677
        %3182 = vmatpush.msra.mxu0 0.0
        %3183 = vmatpush.msra.mxu0 0.0
        %3184 = vmatpush.msra.mxu0 0.0
        %3185 = vmatpush.msra.mxu0 0.0
        %3186 = vmatpush.msra.mxu0 0.0
        %3187 = vmatpush.msra.mxu0 0.0
        %3188 = vmatpush.msra.mxu0 0.0
        %3189 = vmatpush.msra.mxu0 0.0
        %3190 = vmatpush.msra.mxu0 0.0
        %3191 = vmatpush.msra.mxu0 0.0
        %3192 = vmatpush.msra.mxu0 0.0
        %3193 = vmatpush.msra.mxu0 0.0
        %3194 = vmatpush.msra.mxu0 0.0
        %3195 = vmatpush.msra.mxu0 0.0
        %3196 = vmatpush.msra.mxu0 0.0
        %3197 = vmatpush.msra.mxu0 %v2801
        %3198 = vmatmul.f32.gmra.mxu0 %v2519
        %v3199 = vpop.f32.mrf.mxu0
        %v3200 = vadd.f32 %v3070, %v3199
        %3201 = vdwg.mxu0
        %v3202 = vmul.f32 %v3200, 0.70710677
        %3203 = vmatpush.msra.mxu0 0.0
        %3204 = vmatpush.msra.mxu0 0.0
        %3205 = vmatpush.msra.mxu0 0.0
        %3206 = vmatpush.msra.mxu0 0.0
        %3207 = vmatpush.msra.mxu0 0.0
        %3208 = vmatpush.msra.mxu0 0.0
        %3209 = vmatpush.msra.mxu0 0.0
        %3210 = vmatpush.msra.mxu0 0.0
        %3211 = vmatpush.msra.mxu0 0.0
        %3212 = vmatpush.msra.mxu0 0.0
        %3213 = vmatpush.msra.mxu0 0.0
        %3214 = vmatpush.msra.mxu0 0.0
        %3215 = vmatpush.msra.mxu0 0.0
        %3216 = vmatpush.msra.mxu0 0.0
        %3217 = vmatpush.msra.mxu0 0.0
        %3218 = vmatpush.msra.mxu0 %v2803
        %3219 = vmatmul.f32.gmra.mxu0 %v2544
        %v3220 = vpop.f32.mrf.mxu0
        %v3221 = vadd.f32 %v3074, %v3220
        %3222 = vdwg.mxu0
        %v3223 = vmul.f32 %v3221, 0.70710677
        %v3224 = vmul.f32 %v3076, %v3076
        %v3225 = vmul.f32 %v3097, %v3097
        %v3226 = vadd.f32 %v3224, %v3225
        %v3227 = vmul.f32 %v3118, %v3118
        %v3228 = vadd.f32 %v3226, %v3227
        %v3229 = vmul.f32 %v3139, %v3139
        %v3230 = vadd.f32 %v3228, %v3229
        %v3231 = vmul.f32 %v3160, %v3160
        %v3232 = vadd.f32 %v3230, %v3231
        %v3233 = vmul.f32 %v3181, %v3181
        %v3234 = vadd.f32 %v3232, %v3233
        %v3235 = vmul.f32 %v3202, %v3202
        %v3236 = vadd.f32 %v3234, %v3235
        %v3237 = vmul.f32 %v3223, %v3223
        %v3238 = vadd.f32 %v3236, %v3237
        %v3239 = vmul.f32 %v3238, %v3238
        %v3240 = vadd.f32 %v3239, 1e-16
        %v3241 = vrsqrt.pop %v3240
        %v3242 = vmul.f32 %v3241, %v3240
        %v3243 = vmul.f32 %v3242, %v3241
        %v3244 = vmul.f32 0.5, %v3243
        %v3245 = vsub.f32 1.5, %v3244
        %v3246 = vmul.f32 %v3241, %v3245
        %v3247 = vmul.f32 %v3240, %v3246
        %vm3248 = vcmp.eq.f32.partialorder %v3240, inf
        %v3249 = vsel %vm3248, %v3240, %v3247
        %vm3250 = vcmp.eq.f32.partialorder %v3240, 0.0
        %v3251 = vand.u32 %v3240, 2147483648
        %v3252 = vsel %vm3250, %v3251, %v3249
        %v3253 = vrsqrt.pop %v3252
        %v3254 = vmul.f32 %v3253, %v3252
        %v3255 = vmul.f32 %v3254, %v3253
        %v3256 = vmul.f32 0.5, %v3255
        %v3257 = vsub.f32 1.5, %v3256
        %v3258 = vmul.f32 %v3253, %v3257
        %v3259 = vmul.f32 %v3252, %v3258
        %vm3260 = vcmp.eq.f32.partialorder %v3252, inf
        %v3261 = vsel %vm3260, %v3252, %v3259
        %vm3262 = vcmp.eq.f32.partialorder %v3252, 0.0
        %v3263 = vand.u32 %v3252, 2147483648
        %v3264 = vsel %vm3262, %v3263, %v3261
        %v3265 = vsel %vm2367, %v3264, 0.0
        %3266 = vadd.xlane.f32.xlu0 %v3265
        %v3267 = vpop.xlane.xlu0 %3266
        %v3268 = vrcp.pop 8.0
        %v3269 = vmul.f32 8.0, %v3268
        %v3270 = vsub.f32 1.0, %v3269
        %v3271 = vmul.f32 %v3268, %v3270
        %v3272 = vadd.f32 %v3268, %v3271
        %vm3273 = vweird.f32 %v3268
        %v3274 = vsel %vm3273, %v3268, %v3272
        %v3275 = vmul.f32 %v3267, %v3274
        %v3276 = vadd.f32 %v3275, 1e-06
        %v3278 = vperm.slane %v2028, 0
        %v3280 = vrcp.pop %v3276
        %v3281 = vmul.f32 %v3276, %v3280
        %v3282 = vsub.f32 1.0, %v3281
        %v3283 = vmul.f32 %v3280, %v3282
        %v3284 = vadd.f32 %v3280, %v3283
        %vm3285 = vweird.f32 %v3276
        %vm3286 = vweird.f32 %v3280
        %vm3287 = vmor %vm3285, %vm3286
        %v3288 = vsel %vm3287, %v3280, %v3284
        %v3289 = vand.u32 2147483647, %v3276
        %vm3290 = vcmp.eq.f32.partialorder %v3289, 8.507059e+37
        %v3291 = vand.u32 %v3276, 2147483648
        %v3292 = vor.u32 1.1754944e-38, %v3291
        %v3293 = vsel %vm3290, %v3292, %v3288
        %v3294 = vmul.f32 %v3278, %v3293
        %v3295 = vmul.f32 %v3076, %v3294
        %v3296 = vmul.f32 %v3097, %v3294
        %v3297 = vmul.f32 %v3118, %v3294
        %v3298 = vmul.f32 %v3139, %v3294
        %v3299 = vmul.f32 %v3160, %v3294
        %v3300 = vmul.f32 %v3181, %v3294
        %v3301 = vmul.f32 %v3202, %v3294
        %v3302 = vmul.f32 %v3223, %v3294
        %3303 = vst.msk [vmem:[%s668] sm:$0xff] %vm2367, %v3295
        %3305 = vrot.lane.b32.xlu0 %v3296, 8
        %v3306 = vpop.permute.xlu0 %3305
        %vm3308 = vcmask 130112
        %3309 = vst.msk [vmem:[%s668] sm:$0xff] %vm3308, %v3306
        %3311 = vrot.lane.b32.xlu0 %v3297, 16
        %v3312 = vpop.permute.xlu0 %3311
        %vm3314 = vcmask 195712
        %3315 = vst.msk [vmem:[%s668] sm:$0xff] %vm3314, %v3312
        %3317 = vrot.lane.b32.xlu0 %v3298, 24
        %v3318 = vpop.permute.xlu0 %3317
        %vm3320 = vcmask 261312
        %3321 = vst.msk [vmem:[%s668] sm:$0xff] %vm3320, %v3318
        %3323 = vrot.lane.b32.xlu0 %v3299, 32
        %v3324 = vpop.permute.xlu0 %3323
        %vm3326 = vcmask 326912
        %3327 = vst.msk [vmem:[%s668] sm:$0xff] %vm3326, %v3324
        %3329 = vrot.lane.b32.xlu0 %v3300, 40
        %v3330 = vpop.permute.xlu0 %3329
        %vm3332 = vcmask 392512
        %3333 = vst.msk [vmem:[%s668] sm:$0xff] %vm3332, %v3330
        %3335 = vrot.lane.b32.xlu0 %v3301, 48
        %v3336 = vpop.permute.xlu0 %3335
        %vm3338 = vcmask 458112
        %3339 = vst.msk [vmem:[%s668] sm:$0xff] %vm3338, %v3336
        %3341 = vrot.lane.b32.xlu0 %v3302, 56
        %v3342 = vpop.permute.xlu0 %3341
        %vm3344 = vcmask 523712
        %3345 = vst.msk [vmem:[%s668] sm:$0xff] %vm3344, %v3342
        %p3346 = scmp.lt.s32.totalorder %s33, 1
        %s3347 = scalar_select %p3346, %s33, 1
        %s3348 = smul.addr %s3347, 8
        %s3349 = scalar_lea.vmem %s21, %s3348
        // Predicated region
        $region109: #{cemlp_forward.1} parent=103 // pred_check
          %p3350 = pneg %p497
        $region110: #{cemlp_forward.1} parent=103 // pred_check_branch
          %3352 = sbr.rel (%p3350) target = $region112
        $region111: #{cemlp_forward.1} parent=103 // pred_region
          _
        $region112: #{cemlp_forward.1} parent=103 // pred_fallthru
          _
      $region104: #{cemlp_forward.1} parent=5 // pred_fallthru
        _
      %p3353 = scmp.le.s32.totalorder 2, %s28
      // Predicated region
      $region113: #{cemlp_forward.1} parent=5 // pred_check
        %p3354 = pneg %p3353
      $region114: #{cemlp_forward.1} parent=5 // pred_check_branch
        %3356 = sbr.rel (%p3354) target = $region116
      $region115: #{cemlp_forward.1} parent=5 // pred_region
        %s3357 = ssub.s32 %s28, 2
        // Predicated region
        $region117: #{cemlp_forward.1} parent=115 // pred_check
          %p3358 = pneg %p503
        $region118: #{cemlp_forward.1} parent=115 // pred_check_branch
          %3360 = sbr.rel (%p3358) target = $region120
        $region119: #{cemlp_forward.1} parent=115 // pred_region
          %p3361 = scmp.lt.s32.totalorder %s34, 1
          %s3362 = scalar_select %p3361, %s34, 1
          %s3363 = smul.addr %s3362, 8
          %s3364 = scalar_lea.vmem %s21, %s3363
        $region120: #{cemlp_forward.1} parent=115 // pred_fallthru
          _
      $region116: #{cemlp_forward.1} parent=5 // pred_fallthru
        _
    $region6: #{cemlp_forward.1} parent=1 // loop_footer
      %s32 = sadd.s32 1, %s28
    $region7: #{cemlp_forward.1} parent=1 // loop_footer_branch
      %27 = sbr.rel target = $region3
    $region8: #{cemlp_forward.1} parent=1 // loop_exit
      _
    %3365 = vsyncpa [#allocation3], 1
    %s3366 = scalar_lea.sflag [#allocation3], 1
    %3367 = vsyncpa %s3366, 1

</llo_original>
